<compile_context>
chip_gen: v7x
topology: tpu7x:2x2x1
jax: 0.10.0
libtpu: 0.0.40
codegen_flags: <defaults>
</compile_context>

<pallas_src>
import functools
import math

import jax
import jax.numpy as jnp
from jax.experimental import pallas as pl
from jax.experimental.pallas import tpu as pltpu


# ----------------------------- fused kernel ---------------------------------

ENCODER_PARAM_NAMES = ('wqkv', 'bqkv', 'wo', 'bo', 'ln1_g', 'ln1_b',
                       'w1', 'b1', 'w2', 'b2', 'ln2_g', 'ln2_b')


def _full_spec(shape):
    # Full-array block, constant index map (grid=(1,)).
    return pl.BlockSpec(shape, lambda *_: (0,) * len(shape))


def _layer_norm(y, gamma, beta, eps=1e-5):
    mu = jnp.mean(y, axis=-1, keepdims=True)
    var = jnp.mean((y - mu) ** 2, axis=-1, keepdims=True)
    return (y - mu) * jax.lax.rsqrt(var + eps) * gamma + beta


def _make_fused_kernel(S, B, H, F, nhead, n_embed, n_enc):
    hd = H // nhead
    inv_sqrt_hd = 1.0 / math.sqrt(hd)

    def kernel(*refs):
        it = iter(refs)
        x_ref = next(it)          # (B*S, H)  batch-major rows
        pad_ref = next(it)        # (B, S)    1.0 where key is padded
        sm_ref = next(it)         # (B*S, 1)  sequence mask, batch-major rows
        if n_embed:
            emb_w_ref = next(it)  # (n_embed, H, H)
            emb_b_ref = next(it)  # (n_embed, 1, H)
        if n_enc:
            (wqkv_ref, bqkv_ref, wo_ref, bo_ref, ln1g_ref, ln1b_ref,
             w1_ref, b1_ref, w2_ref, b2_ref, ln2g_ref, ln2b_ref) = (
                next(it), next(it), next(it), next(it), next(it), next(it),
                next(it), next(it), next(it), next(it), next(it), next(it))
        o_ref = next(it)          # (B*S, H)
        attn_scr = next(it)       # VMEM scratch (B*S, H)

        act = x_ref[...]
        sm = sm_ref[...]
        pad = pad_ref[...]

        # --------------------- embedding: Linear + ReLU ---------------------
        if n_embed:
            for i in range(n_embed):
                act = jnp.dot(act, emb_w_ref[i],
                              preferred_element_type=jnp.float32)
                act = jnp.maximum(act + emb_b_ref[i], 0.0)
            act = act * sm

        # ----------------- transformer encoder layers -----------------------
        if n_enc:
            # hoisted: additive key-padding bias per batch (layer-invariant)
            neg = -1e9
            pad_bias = [pad[b:b + 1, :] * neg for b in range(B)]   # each (1, S)

            for l in range(n_enc):
                # packed QKV projection on the full (B*S, H) slab: 1 matmul
                qkv = jnp.dot(act, wqkv_ref[l],
                              preferred_element_type=jnp.float32) + bqkv_ref[l]

                # per-batch, per-head scaled-dot-product attention; head
                # outputs written in place into the VMEM scratch slab.
                for b in range(B):
                    qkv_b = qkv[b * S:(b + 1) * S, :]
                    bias_b = pad_bias[b]
                    for h in range(nhead):
                        qh = qkv_b[:,           h * hd:          (h + 1) * hd]
                        kh = qkv_b[:,     H  +  h * hd:    H  +  (h + 1) * hd]
                        vh = qkv_b[:, 2 * H  +  h * hd: 2 * H +  (h + 1) * hd]
                        s = jax.lax.dot_general(
                            qh, kh, (((1,), (1,)), ((), ())),
                            preferred_element_type=jnp.float32)     # (S, S)
                        s = s * inv_sqrt_hd + bias_b
                        s = s - jnp.max(s, axis=-1, keepdims=True)
                        e = jnp.exp(s)
                        denom = jnp.maximum(
                            jnp.sum(e, axis=-1, keepdims=True), 1e-30)
                        p = e * pl.reciprocal(denom, approx=True)
                        attn_scr[b * S:(b + 1) * S, h * hd:(h + 1) * hd] = (
                            jnp.dot(p, vh, preferred_element_type=jnp.float32))

                # output projection + residual + LayerNorm1 (post-norm)
                attn = jnp.dot(attn_scr[...], wo_ref[l],
                               preferred_element_type=jnp.float32) + bo_ref[l]
                y = _layer_norm(act + attn, ln1g_ref[l], ln1b_ref[l])

                # feed-forward (ReLU) on the full (B*S, H) slab + LayerNorm2
                h1 = jnp.maximum(
                    jnp.dot(y, w1_ref[l],
                            preferred_element_type=jnp.float32) + b1_ref[l], 0.0)
                h2 = jnp.dot(h1, w2_ref[l],
                             preferred_element_type=jnp.float32) + b2_ref[l]
                act = _layer_norm(y + h2, ln2g_ref[l], ln2b_ref[l])

            act = act * sm

        # single lane-contiguous store of the final activation
        o_ref[...] = act

    return kernel


# ------------------------------ module wrapper -------------------------------

def branch_encoder_forward(x, padding_mask, sequence_mask, params, nhead):
    S, B, H = x.shape
    emb = params.get('embedding')
    enc = params.get('encoder')
    n_embed = int(emb['w'].shape[0]) if emb is not None else 0
    n_enc = int(enc['wqkv'].shape[0]) if enc is not None else 0
    if n_embed == 0 and n_enc == 0:
        return x
    F = int(enc['w1'].shape[2]) if n_enc else H

    # Tiny layout plumbing (a few KB, fused by XLA): batch-major (B*S, H)
    # activation slab plus matching masks so the kernel is transpose-free.
    x2 = jnp.transpose(x, (1, 0, 2)).reshape(B * S, H).astype(jnp.float32)
    pad_f = padding_mask.astype(jnp.float32)                         # (B, S)
    sm2 = jnp.transpose(sequence_mask, (1, 0, 2)).reshape(B * S, 1).astype(jnp.float32)

    args = [x2, pad_f, sm2]
    if n_embed:
        args += [emb['w'], emb['b']]
    if n_enc:
        args += [enc[name] for name in ENCODER_PARAM_NAMES]
    in_specs = [_full_spec(a.shape) for a in args]

    kernel = _make_fused_kernel(S, B, H, F, nhead, n_embed, n_enc)
    out2 = pl.pallas_call(
        kernel,
        out_shape=jax.ShapeDtypeStruct((B * S, H), jnp.float32),
        grid=(1,),
        in_specs=in_specs,
        out_specs=_full_spec((B * S, H)),
        scratch_shapes=[pltpu.VMEM((B * S, H), jnp.float32)],
        compiler_params=pltpu.CompilerParams(
            dimension_semantics=("arbitrary",)),
    )(*args)

    return jnp.transpose(out2.reshape(B, S, H), (1, 0, 2))          # (S, B, H)


def init_params(key, H, F, n_embed, n_enc):
    # Weights stored stacked per layer, laid out (in, out) for x @ W.
    kE, kQ, kO, k1, k2 = jax.random.split(key, 5)
    sH, sF = 1.0 / math.sqrt(H), 1.0 / math.sqrt(F)
    params = {'embedding': None, 'encoder': None}
    if n_embed > 0:
        params['embedding'] = {
            'w': jax.random.normal(kE, (n_embed, H, H), jnp.float32) * sH,
            'b': jnp.zeros((n_embed, 1, H), jnp.float32),
        }
    if n_enc > 0:
        params['encoder'] = {
            'wqkv': jax.random.normal(kQ, (n_enc, H, 3 * H), jnp.float32) * sH,
            'bqkv': jnp.zeros((n_enc, 1, 3 * H), jnp.float32),
            'wo': jax.random.normal(kO, (n_enc, H, H), jnp.float32) * sH,
            'bo': jnp.zeros((n_enc, 1, H), jnp.float32),
            'ln1_g': jnp.ones((n_enc, 1, H), jnp.float32),
            'ln1_b': jnp.zeros((n_enc, 1, H), jnp.float32),
            'w1': jax.random.normal(k1, (n_enc, H, F), jnp.float32) * sH,
            'b1': jnp.zeros((n_enc, 1, F), jnp.float32),
            'w2': jax.random.normal(k2, (n_enc, F, H), jnp.float32) * sF,
            'b2': jnp.zeros((n_enc, 1, H), jnp.float32),
            'ln2_g': jnp.ones((n_enc, 1, H), jnp.float32),
            'ln2_b': jnp.zeros((n_enc, 1, H), jnp.float32),
        }
    return params


if __name__ == "__main__":
    # Options: hidden_dim=32, num_branch_embedding_layers=2, num_branch_encoder_layers=2
    # transformer_options = (d_model=32, nhead=4, dim_feedforward=64, dropout=0.0, 'relu')
    S, B, H, nhead, F = 8, 2, 32, 4, 64
    n_embed, n_enc = 2, 2

    key = jax.random.PRNGKey(0)
    kx, kp = jax.random.split(key)
    x = jax.random.normal(kx, (S, B, H), jnp.float32)

    lengths = jnp.array([8, 5], dtype=jnp.int32)                 # valid jets per event
    pos = jnp.arange(S, dtype=jnp.int32)
    padding_mask = pos[None, :] >= lengths[:, None]              # (B, S) True = padded
    sequence_mask = (~padding_mask).astype(jnp.float32).T.reshape(S, B, 1)

    params = init_params(kp, H, F, n_embed, n_enc)

    fwd = jax.jit(functools.partial(branch_encoder_forward, nhead=nhead))
    out = fwd(x, padding_mask, sequence_mask, params)
    out = jax.block_until_ready(out)

    assert out.shape == (S, B, H), out.shape
    assert bool(jnp.all(jnp.isfinite(out)))
    # padded positions must be zeroed by the sequence mask
    assert bool(jnp.all(jnp.abs(out[5:, 1, :]) == 0.0))
    print("KERNEL_OK")
</pallas_src>

<mosaic_0001>
module attributes {stable_mosaic.version = 11 : i64} {
  func.func @kernel(%arg0: i32, %arg1: memref<16x32xf32, #tpu.memory_space<vmem>>, %arg2: memref<2x8xf32, #tpu.memory_space<vmem>>, %arg3: memref<16x1xf32, #tpu.memory_space<vmem>>, %arg4: memref<2x32x32xf32, #tpu.memory_space<vmem>>, %arg5: memref<2x1x32xf32, #tpu.memory_space<vmem>>, %arg6: memref<2x32x96xf32, #tpu.memory_space<vmem>>, %arg7: memref<2x1x96xf32, #tpu.memory_space<vmem>>, %arg8: memref<2x32x32xf32, #tpu.memory_space<vmem>>, %arg9: memref<2x1x32xf32, #tpu.memory_space<vmem>>, %arg10: memref<2x1x32xf32, #tpu.memory_space<vmem>>, %arg11: memref<2x1x32xf32, #tpu.memory_space<vmem>>, %arg12: memref<2x32x64xf32, #tpu.memory_space<vmem>>, %arg13: memref<2x1x64xf32, #tpu.memory_space<vmem>>, %arg14: memref<2x64x32xf32, #tpu.memory_space<vmem>>, %arg15: memref<2x1x32xf32, #tpu.memory_space<vmem>>, %arg16: memref<2x1x32xf32, #tpu.memory_space<vmem>>, %arg17: memref<2x1x32xf32, #tpu.memory_space<vmem>>, %arg18: memref<16x32xf32, #tpu.memory_space<vmem>>, %arg19: memref<16x32xf32, #tpu.memory_space<vmem>>) attributes {dimension_semantics = [#tpu.dimension_semantics<arbitrary>], iteration_bounds = array<i64: 1>, scalar_prefetch = 0 : i64, scratch_operands = 1 : i64, tpu.core_type = #tpu.core_type<tc>, window_params = [{pipeline_mode = #tpu.pipeline_mode<synchronous>, transform_indices = @transform_0, window_bounds = array<i64: 16, 32>}, {pipeline_mode = #tpu.pipeline_mode<synchronous>, transform_indices = @transform_1, window_bounds = array<i64: 2, 8>}, {pipeline_mode = #tpu.pipeline_mode<synchronous>, transform_indices = @transform_2, window_bounds = array<i64: 16, 1>}, {pipeline_mode = #tpu.pipeline_mode<synchronous>, transform_indices = @transform_3, window_bounds = array<i64: 2, 32, 32>}, {pipeline_mode = #tpu.pipeline_mode<synchronous>, transform_indices = @transform_4, window_bounds = array<i64: 2, 1, 32>}, {pipeline_mode = #tpu.pipeline_mode<synchronous>, transform_indices = @transform_5, window_bounds = array<i64: 2, 32, 96>}, {pipeline_mode = #tpu.pipeline_mode<synchronous>, transform_indices = @transform_6, window_bounds = array<i64: 2, 1, 96>}, {pipeline_mode = #tpu.pipeline_mode<synchronous>, transform_indices = @transform_7, window_bounds = array<i64: 2, 32, 32>}, {pipeline_mode = #tpu.pipeline_mode<synchronous>, transform_indices = @transform_8, window_bounds = array<i64: 2, 1, 32>}, {pipeline_mode = #tpu.pipeline_mode<synchronous>, transform_indices = @transform_9, window_bounds = array<i64: 2, 1, 32>}, {pipeline_mode = #tpu.pipeline_mode<synchronous>, transform_indices = @transform_10, window_bounds = array<i64: 2, 1, 32>}, {pipeline_mode = #tpu.pipeline_mode<synchronous>, transform_indices = @transform_11, window_bounds = array<i64: 2, 32, 64>}, {pipeline_mode = #tpu.pipeline_mode<synchronous>, transform_indices = @transform_12, window_bounds = array<i64: 2, 1, 64>}, {pipeline_mode = #tpu.pipeline_mode<synchronous>, transform_indices = @transform_13, window_bounds = array<i64: 2, 64, 32>}, {pipeline_mode = #tpu.pipeline_mode<synchronous>, transform_indices = @transform_14, window_bounds = array<i64: 2, 1, 32>}, {pipeline_mode = #tpu.pipeline_mode<synchronous>, transform_indices = @transform_15, window_bounds = array<i64: 2, 1, 32>}, {pipeline_mode = #tpu.pipeline_mode<synchronous>, transform_indices = @transform_16, window_bounds = array<i64: 2, 1, 32>}, {pipeline_mode = #tpu.pipeline_mode<synchronous>, transform_indices = @transform_17, window_bounds = array<i64: 16, 32>}]} {
    %c0 = arith.constant 0 : index
    %c0_0 = arith.constant 0 : index
    %0 = vector.load %arg1[%c0, %c0_0] : memref<16x32xf32, #tpu.memory_space<vmem>>, vector<16x32xf32>
    %c0_1 = arith.constant 0 : index
    %c0_2 = arith.constant 0 : index
    %1 = vector.load %arg3[%c0_1, %c0_2] : memref<16x1xf32, #tpu.memory_space<vmem>>, vector<16x1xf32>
    %c0_3 = arith.constant 0 : index
    %c0_4 = arith.constant 0 : index
    %2 = vector.load %arg2[%c0_3, %c0_4] : memref<2x8xf32, #tpu.memory_space<vmem>>, vector<2x8xf32>
    %c0_5 = arith.constant 0 : index
    %c0_6 = arith.constant 0 : index
    %c0_7 = arith.constant 0 : index
    %3 = vector.load %arg4[%c0_5, %c0_6, %c0_7] : memref<2x32x32xf32, #tpu.memory_space<vmem>>, vector<1x32x32xf32>
    %4 = vector.shape_cast %3 : vector<1x32x32xf32> to vector<32x32xf32>
    %cst = arith.constant dense<0.000000e+00> : vector<16x32xf32>
    %5 = tpu.matmul %0, %4, %cst {dimension_numbers = #tpu.dot_dimension_numbers<[1], [0], [0], [1], [0, 0, 1, 1], [], []>} : vector<16x32xf32>, vector<32x32xf32>, vector<16x32xf32> -> vector<16x32xf32>
    %c0_8 = arith.constant 0 : index
    %c0_9 = arith.constant 0 : index
    %c0_10 = arith.constant 0 : index
    %6 = vector.load %arg5[%c0_8, %c0_9, %c0_10] : memref<2x1x32xf32, #tpu.memory_space<vmem>>, vector<1x1x32xf32>
    %7 = vector.shape_cast %6 : vector<1x1x32xf32> to vector<1x32xf32>
    %8 = vector.broadcast %7 : vector<1x32xf32> to vector<16x32xf32>
    %9 = arith.addf %5, %8 : vector<16x32xf32>
    %cst_11 = arith.constant 0.000000e+00 : f32
    %10 = vector.broadcast %cst_11 : f32 to vector<16x32xf32>
    %11 = arith.maximumf %9, %10 : vector<16x32xf32>
    %c1 = arith.constant 1 : index
    %c0_12 = arith.constant 0 : index
    %c0_13 = arith.constant 0 : index
    %12 = vector.load %arg4[%c1, %c0_12, %c0_13] : memref<2x32x32xf32, #tpu.memory_space<vmem>>, vector<1x32x32xf32>
    %13 = vector.shape_cast %12 : vector<1x32x32xf32> to vector<32x32xf32>
    %cst_14 = arith.constant dense<0.000000e+00> : vector<16x32xf32>
    %14 = tpu.matmul %11, %13, %cst_14 {dimension_numbers = #tpu.dot_dimension_numbers<[1], [0], [0], [1], [0, 0, 1, 1], [], []>} : vector<16x32xf32>, vector<32x32xf32>, vector<16x32xf32> -> vector<16x32xf32>
    %c1_15 = arith.constant 1 : index
    %c0_16 = arith.constant 0 : index
    %c0_17 = arith.constant 0 : index
    %15 = vector.load %arg5[%c1_15, %c0_16, %c0_17] : memref<2x1x32xf32, #tpu.memory_space<vmem>>, vector<1x1x32xf32>
    %16 = vector.shape_cast %15 : vector<1x1x32xf32> to vector<1x32xf32>
    %17 = vector.broadcast %16 : vector<1x32xf32> to vector<16x32xf32>
    %18 = arith.addf %14, %17 : vector<16x32xf32>
    %cst_18 = arith.constant 0.000000e+00 : f32
    %19 = vector.broadcast %cst_18 : f32 to vector<16x32xf32>
    %20 = arith.maximumf %18, %19 : vector<16x32xf32>
    %21 = vector.broadcast %1 : vector<16x1xf32> to vector<16x32xf32>
    %22 = arith.mulf %20, %21 : vector<16x32xf32>
    %23 = vector.extract_strided_slice %2 {offsets = [0, 0], sizes = [1, 8], strides = [1, 1]} : vector<2x8xf32> to vector<1x8xf32>
    %cst_19 = arith.constant -1.000000e+09 : f32
    %24 = vector.broadcast %cst_19 : f32 to vector<1x8xf32>
    %25 = arith.mulf %23, %24 : vector<1x8xf32>
    %26 = vector.extract_strided_slice %2 {offsets = [1, 0], sizes = [1, 8], strides = [1, 1]} : vector<2x8xf32> to vector<1x8xf32>
    %cst_20 = arith.constant -1.000000e+09 : f32
    %27 = vector.broadcast %cst_20 : f32 to vector<1x8xf32>
    %28 = arith.mulf %26, %27 : vector<1x8xf32>
    %c0_21 = arith.constant 0 : index
    %c0_22 = arith.constant 0 : index
    %c0_23 = arith.constant 0 : index
    %29 = vector.load %arg6[%c0_21, %c0_22, %c0_23] : memref<2x32x96xf32, #tpu.memory_space<vmem>>, vector<1x32x96xf32>
    %30 = vector.shape_cast %29 : vector<1x32x96xf32> to vector<32x96xf32>
    %cst_24 = arith.constant dense<0.000000e+00> : vector<16x96xf32>
    %31 = tpu.matmul %22, %30, %cst_24 {dimension_numbers = #tpu.dot_dimension_numbers<[1], [0], [0], [1], [0, 0, 1, 1], [], []>} : vector<16x32xf32>, vector<32x96xf32>, vector<16x96xf32> -> vector<16x96xf32>
    %c0_25 = arith.constant 0 : index
    %c0_26 = arith.constant 0 : index
    %c0_27 = arith.constant 0 : index
    %32 = vector.load %arg7[%c0_25, %c0_26, %c0_27] : memref<2x1x96xf32, #tpu.memory_space<vmem>>, vector<1x1x96xf32>
    %33 = vector.shape_cast %32 : vector<1x1x96xf32> to vector<1x96xf32>
    %34 = vector.broadcast %33 : vector<1x96xf32> to vector<16x96xf32>
    %35 = arith.addf %31, %34 : vector<16x96xf32>
    %36 = vector.extract_strided_slice %35 {offsets = [0, 0], sizes = [8, 96], strides = [1, 1]} : vector<16x96xf32> to vector<8x96xf32>
    %37 = vector.extract_strided_slice %36 {offsets = [0, 0], sizes = [8, 8], strides = [1, 1]} : vector<8x96xf32> to vector<8x8xf32>
    %38 = vector.extract_strided_slice %36 {offsets = [0, 32], sizes = [8, 8], strides = [1, 1]} : vector<8x96xf32> to vector<8x8xf32>
    %39 = vector.extract_strided_slice %36 {offsets = [0, 64], sizes = [8, 8], strides = [1, 1]} : vector<8x96xf32> to vector<8x8xf32>
    %cst_28 = arith.constant dense<0.000000e+00> : vector<8x8xf32>
    %40 = tpu.matmul %37, %38, %cst_28 {dimension_numbers = #tpu.dot_dimension_numbers<[1], [1], [0], [0], [0, 0, 1, 0], [], []>} : vector<8x8xf32>, vector<8x8xf32>, vector<8x8xf32> -> vector<8x8xf32>
    %cst_29 = arith.constant 0.353553385 : f32
    %41 = vector.broadcast %cst_29 : f32 to vector<8x8xf32>
    %42 = arith.mulf %40, %41 : vector<8x8xf32>
    %43 = vector.broadcast %25 : vector<1x8xf32> to vector<8x8xf32>
    %44 = arith.addf %42, %43 : vector<8x8xf32>
    %cst_30 = arith.constant dense<0xFF800000> : vector<8xf32>
    %45 = vector.multi_reduction <maximumf>, %44, %cst_30 [1] : vector<8x8xf32> to vector<8xf32>
    %46 = vector.shape_cast %45 : vector<8xf32> to vector<8x1xf32>
    %47 = vector.broadcast %46 : vector<8x1xf32> to vector<8x8xf32>
    %48 = arith.subf %44, %47 : vector<8x8xf32>
    %49 = math.exp %48 : vector<8x8xf32>
    %cst_31 = arith.constant dense<0.000000e+00> : vector<8xf32>
    %50 = vector.multi_reduction <add>, %49, %cst_31 [1] : vector<8x8xf32> to vector<8xf32>
    %51 = vector.shape_cast %50 : vector<8xf32> to vector<8x1xf32>
    %cst_32 = arith.constant 1.000000e-30 : f32
    %52 = vector.broadcast %cst_32 : f32 to vector<8x1xf32>
    %53 = arith.maximumf %51, %52 : vector<8x1xf32>
    %54 = tpu.reciprocal %53 {approx = true} : vector<8x1xf32> -> vector<8x1xf32>
    %55 = vector.broadcast %54 : vector<8x1xf32> to vector<8x8xf32>
    %56 = arith.mulf %49, %55 : vector<8x8xf32>
    %cst_33 = arith.constant dense<0.000000e+00> : vector<8x8xf32>
    %57 = tpu.matmul %56, %39, %cst_33 {dimension_numbers = #tpu.dot_dimension_numbers<[1], [0], [0], [1], [0, 0, 1, 1], [], []>} : vector<8x8xf32>, vector<8x8xf32>, vector<8x8xf32> -> vector<8x8xf32>
    %c0_34 = arith.constant 0 : index
    %c0_35 = arith.constant 0 : index
    %58 = vector.load %arg19[%c0_34, %c0_35] : memref<16x32xf32, #tpu.memory_space<vmem>>, vector<8x8xf32>
    tpu.vector_store %arg19[%c0_34, %c0_35], %57 {strides = array<i32>} : memref<16x32xf32, #tpu.memory_space<vmem>>, vector<8x8xf32>,
    %59 = vector.extract_strided_slice %36 {offsets = [0, 8], sizes = [8, 8], strides = [1, 1]} : vector<8x96xf32> to vector<8x8xf32>
    %60 = vector.extract_strided_slice %36 {offsets = [0, 40], sizes = [8, 8], strides = [1, 1]} : vector<8x96xf32> to vector<8x8xf32>
    %61 = vector.extract_strided_slice %36 {offsets = [0, 72], sizes = [8, 8], strides = [1, 1]} : vector<8x96xf32> to vector<8x8xf32>
    %cst_36 = arith.constant dense<0.000000e+00> : vector<8x8xf32>
    %62 = tpu.matmul %59, %60, %cst_36 {dimension_numbers = #tpu.dot_dimension_numbers<[1], [1], [0], [0], [0, 0, 1, 0], [], []>} : vector<8x8xf32>, vector<8x8xf32>, vector<8x8xf32> -> vector<8x8xf32>
    %cst_37 = arith.constant 0.353553385 : f32
    %63 = vector.broadcast %cst_37 : f32 to vector<8x8xf32>
    %64 = arith.mulf %62, %63 : vector<8x8xf32>
    %65 = vector.broadcast %25 : vector<1x8xf32> to vector<8x8xf32>
    %66 = arith.addf %64, %65 : vector<8x8xf32>
    %cst_38 = arith.constant dense<0xFF800000> : vector<8xf32>
    %67 = vector.multi_reduction <maximumf>, %66, %cst_38 [1] : vector<8x8xf32> to vector<8xf32>
    %68 = vector.shape_cast %67 : vector<8xf32> to vector<8x1xf32>
    %69 = vector.broadcast %68 : vector<8x1xf32> to vector<8x8xf32>
    %70 = arith.subf %66, %69 : vector<8x8xf32>
    %71 = math.exp %70 : vector<8x8xf32>
    %cst_39 = arith.constant dense<0.000000e+00> : vector<8xf32>
    %72 = vector.multi_reduction <add>, %71, %cst_39 [1] : vector<8x8xf32> to vector<8xf32>
    %73 = vector.shape_cast %72 : vector<8xf32> to vector<8x1xf32>
    %cst_40 = arith.constant 1.000000e-30 : f32
    %74 = vector.broadcast %cst_40 : f32 to vector<8x1xf32>
    %75 = arith.maximumf %73, %74 : vector<8x1xf32>
    %76 = tpu.reciprocal %75 {approx = true} : vector<8x1xf32> -> vector<8x1xf32>
    %77 = vector.broadcast %76 : vector<8x1xf32> to vector<8x8xf32>
    %78 = arith.mulf %71, %77 : vector<8x8xf32>
    %cst_41 = arith.constant dense<0.000000e+00> : vector<8x8xf32>
    %79 = tpu.matmul %78, %61, %cst_41 {dimension_numbers = #tpu.dot_dimension_numbers<[1], [0], [0], [1], [0, 0, 1, 1], [], []>} : vector<8x8xf32>, vector<8x8xf32>, vector<8x8xf32> -> vector<8x8xf32>
    %c0_42 = arith.constant 0 : index
    %c8 = arith.constant 8 : index
    %80 = vector.load %arg19[%c0_42, %c8] : memref<16x32xf32, #tpu.memory_space<vmem>>, vector<8x8xf32>
    tpu.vector_store %arg19[%c0_42, %c8], %79 {strides = array<i32>} : memref<16x32xf32, #tpu.memory_space<vmem>>, vector<8x8xf32>,
    %81 = vector.extract_strided_slice %36 {offsets = [0, 16], sizes = [8, 8], strides = [1, 1]} : vector<8x96xf32> to vector<8x8xf32>
    %82 = vector.extract_strided_slice %36 {offsets = [0, 48], sizes = [8, 8], strides = [1, 1]} : vector<8x96xf32> to vector<8x8xf32>
    %83 = vector.extract_strided_slice %36 {offsets = [0, 80], sizes = [8, 8], strides = [1, 1]} : vector<8x96xf32> to vector<8x8xf32>
    %cst_43 = arith.constant dense<0.000000e+00> : vector<8x8xf32>
    %84 = tpu.matmul %81, %82, %cst_43 {dimension_numbers = #tpu.dot_dimension_numbers<[1], [1], [0], [0], [0, 0, 1, 0], [], []>} : vector<8x8xf32>, vector<8x8xf32>, vector<8x8xf32> -> vector<8x8xf32>
    %cst_44 = arith.constant 0.353553385 : f32
    %85 = vector.broadcast %cst_44 : f32 to vector<8x8xf32>
    %86 = arith.mulf %84, %85 : vector<8x8xf32>
    %87 = vector.broadcast %25 : vector<1x8xf32> to vector<8x8xf32>
    %88 = arith.addf %86, %87 : vector<8x8xf32>
    %cst_45 = arith.constant dense<0xFF800000> : vector<8xf32>
    %89 = vector.multi_reduction <maximumf>, %88, %cst_45 [1] : vector<8x8xf32> to vector<8xf32>
    %90 = vector.shape_cast %89 : vector<8xf32> to vector<8x1xf32>
    %91 = vector.broadcast %90 : vector<8x1xf32> to vector<8x8xf32>
    %92 = arith.subf %88, %91 : vector<8x8xf32>
    %93 = math.exp %92 : vector<8x8xf32>
    %cst_46 = arith.constant dense<0.000000e+00> : vector<8xf32>
    %94 = vector.multi_reduction <add>, %93, %cst_46 [1] : vector<8x8xf32> to vector<8xf32>
    %95 = vector.shape_cast %94 : vector<8xf32> to vector<8x1xf32>
    %cst_47 = arith.constant 1.000000e-30 : f32
    %96 = vector.broadcast %cst_47 : f32 to vector<8x1xf32>
    %97 = arith.maximumf %95, %96 : vector<8x1xf32>
    %98 = tpu.reciprocal %97 {approx = true} : vector<8x1xf32> -> vector<8x1xf32>
    %99 = vector.broadcast %98 : vector<8x1xf32> to vector<8x8xf32>
    %100 = arith.mulf %93, %99 : vector<8x8xf32>
    %cst_48 = arith.constant dense<0.000000e+00> : vector<8x8xf32>
    %101 = tpu.matmul %100, %83, %cst_48 {dimension_numbers = #tpu.dot_dimension_numbers<[1], [0], [0], [1], [0, 0, 1, 1], [], []>} : vector<8x8xf32>, vector<8x8xf32>, vector<8x8xf32> -> vector<8x8xf32>
    %c0_49 = arith.constant 0 : index
    %c16 = arith.constant 16 : index
    %102 = vector.load %arg19[%c0_49, %c16] : memref<16x32xf32, #tpu.memory_space<vmem>>, vector<8x8xf32>
    tpu.vector_store %arg19[%c0_49, %c16], %101 {strides = array<i32>} : memref<16x32xf32, #tpu.memory_space<vmem>>, vector<8x8xf32>,
    %103 = vector.extract_strided_slice %36 {offsets = [0, 24], sizes = [8, 8], strides = [1, 1]} : vector<8x96xf32> to vector<8x8xf32>
    %104 = vector.extract_strided_slice %36 {offsets = [0, 56], sizes = [8, 8], strides = [1, 1]} : vector<8x96xf32> to vector<8x8xf32>
    %105 = vector.extract_strided_slice %36 {offsets = [0, 88], sizes = [8, 8], strides = [1, 1]} : vector<8x96xf32> to vector<8x8xf32>
    %cst_50 = arith.constant dense<0.000000e+00> : vector<8x8xf32>
    %106 = tpu.matmul %103, %104, %cst_50 {dimension_numbers = #tpu.dot_dimension_numbers<[1], [1], [0], [0], [0, 0, 1, 0], [], []>} : vector<8x8xf32>, vector<8x8xf32>, vector<8x8xf32> -> vector<8x8xf32>
    %cst_51 = arith.constant 0.353553385 : f32
    %107 = vector.broadcast %cst_51 : f32 to vector<8x8xf32>
    %108 = arith.mulf %106, %107 : vector<8x8xf32>
    %109 = vector.broadcast %25 : vector<1x8xf32> to vector<8x8xf32>
    %110 = arith.addf %108, %109 : vector<8x8xf32>
    %cst_52 = arith.constant dense<0xFF800000> : vector<8xf32>
    %111 = vector.multi_reduction <maximumf>, %110, %cst_52 [1] : vector<8x8xf32> to vector<8xf32>
    %112 = vector.shape_cast %111 : vector<8xf32> to vector<8x1xf32>
    %113 = vector.broadcast %112 : vector<8x1xf32> to vector<8x8xf32>
    %114 = arith.subf %110, %113 : vector<8x8xf32>
    %115 = math.exp %114 : vector<8x8xf32>
    %cst_53 = arith.constant dense<0.000000e+00> : vector<8xf32>
    %116 = vector.multi_reduction <add>, %115, %cst_53 [1] : vector<8x8xf32> to vector<8xf32>
    %117 = vector.shape_cast %116 : vector<8xf32> to vector<8x1xf32>
    %cst_54 = arith.constant 1.000000e-30 : f32
    %118 = vector.broadcast %cst_54 : f32 to vector<8x1xf32>
    %119 = arith.maximumf %117, %118 : vector<8x1xf32>
    %120 = tpu.reciprocal %119 {approx = true} : vector<8x1xf32> -> vector<8x1xf32>
    %121 = vector.broadcast %120 : vector<8x1xf32> to vector<8x8xf32>
    %122 = arith.mulf %115, %121 : vector<8x8xf32>
    %cst_55 = arith.constant dense<0.000000e+00> : vector<8x8xf32>
    %123 = tpu.matmul %122, %105, %cst_55 {dimension_numbers = #tpu.dot_dimension_numbers<[1], [0], [0], [1], [0, 0, 1, 1], [], []>} : vector<8x8xf32>, vector<8x8xf32>, vector<8x8xf32> -> vector<8x8xf32>
    %c0_56 = arith.constant 0 : index
    %c24 = arith.constant 24 : index
    %124 = vector.load %arg19[%c0_56, %c24] : memref<16x32xf32, #tpu.memory_space<vmem>>, vector<8x8xf32>
    tpu.vector_store %arg19[%c0_56, %c24], %123 {strides = array<i32>} : memref<16x32xf32, #tpu.memory_space<vmem>>, vector<8x8xf32>,
    %125 = vector.extract_strided_slice %35 {offsets = [8, 0], sizes = [8, 96], strides = [1, 1]} : vector<16x96xf32> to vector<8x96xf32>
    %126 = vector.extract_strided_slice %125 {offsets = [0, 0], sizes = [8, 8], strides = [1, 1]} : vector<8x96xf32> to vector<8x8xf32>
    %127 = vector.extract_strided_slice %125 {offsets = [0, 32], sizes = [8, 8], strides = [1, 1]} : vector<8x96xf32> to vector<8x8xf32>
    %128 = vector.extract_strided_slice %125 {offsets = [0, 64], sizes = [8, 8], strides = [1, 1]} : vector<8x96xf32> to vector<8x8xf32>
    %cst_57 = arith.constant dense<0.000000e+00> : vector<8x8xf32>
    %129 = tpu.matmul %126, %127, %cst_57 {dimension_numbers = #tpu.dot_dimension_numbers<[1], [1], [0], [0], [0, 0, 1, 0], [], []>} : vector<8x8xf32>, vector<8x8xf32>, vector<8x8xf32> -> vector<8x8xf32>
    %cst_58 = arith.constant 0.353553385 : f32
    %130 = vector.broadcast %cst_58 : f32 to vector<8x8xf32>
    %131 = arith.mulf %129, %130 : vector<8x8xf32>
    %132 = vector.broadcast %28 : vector<1x8xf32> to vector<8x8xf32>
    %133 = arith.addf %131, %132 : vector<8x8xf32>
    %cst_59 = arith.constant dense<0xFF800000> : vector<8xf32>
    %134 = vector.multi_reduction <maximumf>, %133, %cst_59 [1] : vector<8x8xf32> to vector<8xf32>
    %135 = vector.shape_cast %134 : vector<8xf32> to vector<8x1xf32>
    %136 = vector.broadcast %135 : vector<8x1xf32> to vector<8x8xf32>
    %137 = arith.subf %133, %136 : vector<8x8xf32>
    %138 = math.exp %137 : vector<8x8xf32>
    %cst_60 = arith.constant dense<0.000000e+00> : vector<8xf32>
    %139 = vector.multi_reduction <add>, %138, %cst_60 [1] : vector<8x8xf32> to vector<8xf32>
    %140 = vector.shape_cast %139 : vector<8xf32> to vector<8x1xf32>
    %cst_61 = arith.constant 1.000000e-30 : f32
    %141 = vector.broadcast %cst_61 : f32 to vector<8x1xf32>
    %142 = arith.maximumf %140, %141 : vector<8x1xf32>
    %143 = tpu.reciprocal %142 {approx = true} : vector<8x1xf32> -> vector<8x1xf32>
    %144 = vector.broadcast %143 : vector<8x1xf32> to vector<8x8xf32>
    %145 = arith.mulf %138, %144 : vector<8x8xf32>
    %cst_62 = arith.constant dense<0.000000e+00> : vector<8x8xf32>
    %146 = tpu.matmul %145, %128, %cst_62 {dimension_numbers = #tpu.dot_dimension_numbers<[1], [0], [0], [1], [0, 0, 1, 1], [], []>} : vector<8x8xf32>, vector<8x8xf32>, vector<8x8xf32> -> vector<8x8xf32>
    %c8_63 = arith.constant 8 : index
    %c0_64 = arith.constant 0 : index
    %147 = vector.load %arg19[%c8_63, %c0_64] : memref<16x32xf32, #tpu.memory_space<vmem>>, vector<8x8xf32>
    tpu.vector_store %arg19[%c8_63, %c0_64], %146 {strides = array<i32>} : memref<16x32xf32, #tpu.memory_space<vmem>>, vector<8x8xf32>,
    %148 = vector.extract_strided_slice %125 {offsets = [0, 8], sizes = [8, 8], strides = [1, 1]} : vector<8x96xf32> to vector<8x8xf32>
    %149 = vector.extract_strided_slice %125 {offsets = [0, 40], sizes = [8, 8], strides = [1, 1]} : vector<8x96xf32> to vector<8x8xf32>
    %150 = vector.extract_strided_slice %125 {offsets = [0, 72], sizes = [8, 8], strides = [1, 1]} : vector<8x96xf32> to vector<8x8xf32>
    %cst_65 = arith.constant dense<0.000000e+00> : vector<8x8xf32>
    %151 = tpu.matmul %148, %149, %cst_65 {dimension_numbers = #tpu.dot_dimension_numbers<[1], [1], [0], [0], [0, 0, 1, 0], [], []>} : vector<8x8xf32>, vector<8x8xf32>, vector<8x8xf32> -> vector<8x8xf32>
    %cst_66 = arith.constant 0.353553385 : f32
    %152 = vector.broadcast %cst_66 : f32 to vector<8x8xf32>
    %153 = arith.mulf %151, %152 : vector<8x8xf32>
    %154 = vector.broadcast %28 : vector<1x8xf32> to vector<8x8xf32>
    %155 = arith.addf %153, %154 : vector<8x8xf32>
    %cst_67 = arith.constant dense<0xFF800000> : vector<8xf32>
    %156 = vector.multi_reduction <maximumf>, %155, %cst_67 [1] : vector<8x8xf32> to vector<8xf32>
    %157 = vector.shape_cast %156 : vector<8xf32> to vector<8x1xf32>
    %158 = vector.broadcast %157 : vector<8x1xf32> to vector<8x8xf32>
    %159 = arith.subf %155, %158 : vector<8x8xf32>
    %160 = math.exp %159 : vector<8x8xf32>
    %cst_68 = arith.constant dense<0.000000e+00> : vector<8xf32>
    %161 = vector.multi_reduction <add>, %160, %cst_68 [1] : vector<8x8xf32> to vector<8xf32>
    %162 = vector.shape_cast %161 : vector<8xf32> to vector<8x1xf32>
    %cst_69 = arith.constant 1.000000e-30 : f32
    %163 = vector.broadcast %cst_69 : f32 to vector<8x1xf32>
    %164 = arith.maximumf %162, %163 : vector<8x1xf32>
    %165 = tpu.reciprocal %164 {approx = true} : vector<8x1xf32> -> vector<8x1xf32>
    %166 = vector.broadcast %165 : vector<8x1xf32> to vector<8x8xf32>
    %167 = arith.mulf %160, %166 : vector<8x8xf32>
    %cst_70 = arith.constant dense<0.000000e+00> : vector<8x8xf32>
    %168 = tpu.matmul %167, %150, %cst_70 {dimension_numbers = #tpu.dot_dimension_numbers<[1], [0], [0], [1], [0, 0, 1, 1], [], []>} : vector<8x8xf32>, vector<8x8xf32>, vector<8x8xf32> -> vector<8x8xf32>
    %c8_71 = arith.constant 8 : index
    %c8_72 = arith.constant 8 : index
    %169 = vector.load %arg19[%c8_71, %c8_72] : memref<16x32xf32, #tpu.memory_space<vmem>>, vector<8x8xf32>
    tpu.vector_store %arg19[%c8_71, %c8_72], %168 {strides = array<i32>} : memref<16x32xf32, #tpu.memory_space<vmem>>, vector<8x8xf32>,
    %170 = vector.extract_strided_slice %125 {offsets = [0, 16], sizes = [8, 8], strides = [1, 1]} : vector<8x96xf32> to vector<8x8xf32>
    %171 = vector.extract_strided_slice %125 {offsets = [0, 48], sizes = [8, 8], strides = [1, 1]} : vector<8x96xf32> to vector<8x8xf32>
    %172 = vector.extract_strided_slice %125 {offsets = [0, 80], sizes = [8, 8], strides = [1, 1]} : vector<8x96xf32> to vector<8x8xf32>
    %cst_73 = arith.constant dense<0.000000e+00> : vector<8x8xf32>
    %173 = tpu.matmul %170, %171, %cst_73 {dimension_numbers = #tpu.dot_dimension_numbers<[1], [1], [0], [0], [0, 0, 1, 0], [], []>} : vector<8x8xf32>, vector<8x8xf32>, vector<8x8xf32> -> vector<8x8xf32>
    %cst_74 = arith.constant 0.353553385 : f32
    %174 = vector.broadcast %cst_74 : f32 to vector<8x8xf32>
    %175 = arith.mulf %173, %174 : vector<8x8xf32>
    %176 = vector.broadcast %28 : vector<1x8xf32> to vector<8x8xf32>
    %177 = arith.addf %175, %176 : vector<8x8xf32>
    %cst_75 = arith.constant dense<0xFF800000> : vector<8xf32>
    %178 = vector.multi_reduction <maximumf>, %177, %cst_75 [1] : vector<8x8xf32> to vector<8xf32>
    %179 = vector.shape_cast %178 : vector<8xf32> to vector<8x1xf32>
    %180 = vector.broadcast %179 : vector<8x1xf32> to vector<8x8xf32>
    %181 = arith.subf %177, %180 : vector<8x8xf32>
    %182 = math.exp %181 : vector<8x8xf32>
    %cst_76 = arith.constant dense<0.000000e+00> : vector<8xf32>
    %183 = vector.multi_reduction <add>, %182, %cst_76 [1] : vector<8x8xf32> to vector<8xf32>
    %184 = vector.shape_cast %183 : vector<8xf32> to vector<8x1xf32>
    %cst_77 = arith.constant 1.000000e-30 : f32
    %185 = vector.broadcast %cst_77 : f32 to vector<8x1xf32>
    %186 = arith.maximumf %184, %185 : vector<8x1xf32>
    %187 = tpu.reciprocal %186 {approx = true} : vector<8x1xf32> -> vector<8x1xf32>
    %188 = vector.broadcast %187 : vector<8x1xf32> to vector<8x8xf32>
    %189 = arith.mulf %182, %188 : vector<8x8xf32>
    %cst_78 = arith.constant dense<0.000000e+00> : vector<8x8xf32>
    %190 = tpu.matmul %189, %172, %cst_78 {dimension_numbers = #tpu.dot_dimension_numbers<[1], [0], [0], [1], [0, 0, 1, 1], [], []>} : vector<8x8xf32>, vector<8x8xf32>, vector<8x8xf32> -> vector<8x8xf32>
    %c8_79 = arith.constant 8 : index
    %c16_80 = arith.constant 16 : index
    %191 = vector.load %arg19[%c8_79, %c16_80] : memref<16x32xf32, #tpu.memory_space<vmem>>, vector<8x8xf32>
    tpu.vector_store %arg19[%c8_79, %c16_80], %190 {strides = array<i32>} : memref<16x32xf32, #tpu.memory_space<vmem>>, vector<8x8xf32>,
    %192 = vector.extract_strided_slice %125 {offsets = [0, 24], sizes = [8, 8], strides = [1, 1]} : vector<8x96xf32> to vector<8x8xf32>
    %193 = vector.extract_strided_slice %125 {offsets = [0, 56], sizes = [8, 8], strides = [1, 1]} : vector<8x96xf32> to vector<8x8xf32>
    %194 = vector.extract_strided_slice %125 {offsets = [0, 88], sizes = [8, 8], strides = [1, 1]} : vector<8x96xf32> to vector<8x8xf32>
    %cst_81 = arith.constant dense<0.000000e+00> : vector<8x8xf32>
    %195 = tpu.matmul %192, %193, %cst_81 {dimension_numbers = #tpu.dot_dimension_numbers<[1], [1], [0], [0], [0, 0, 1, 0], [], []>} : vector<8x8xf32>, vector<8x8xf32>, vector<8x8xf32> -> vector<8x8xf32>
    %cst_82 = arith.constant 0.353553385 : f32
    %196 = vector.broadcast %cst_82 : f32 to vector<8x8xf32>
    %197 = arith.mulf %195, %196 : vector<8x8xf32>
    %198 = vector.broadcast %28 : vector<1x8xf32> to vector<8x8xf32>
    %199 = arith.addf %197, %198 : vector<8x8xf32>
    %cst_83 = arith.constant dense<0xFF800000> : vector<8xf32>
    %200 = vector.multi_reduction <maximumf>, %199, %cst_83 [1] : vector<8x8xf32> to vector<8xf32>
    %201 = vector.shape_cast %200 : vector<8xf32> to vector<8x1xf32>
    %202 = vector.broadcast %201 : vector<8x1xf32> to vector<8x8xf32>
    %203 = arith.subf %199, %202 : vector<8x8xf32>
    %204 = math.exp %203 : vector<8x8xf32>
    %cst_84 = arith.constant dense<0.000000e+00> : vector<8xf32>
    %205 = vector.multi_reduction <add>, %204, %cst_84 [1] : vector<8x8xf32> to vector<8xf32>
    %206 = vector.shape_cast %205 : vector<8xf32> to vector<8x1xf32>
    %cst_85 = arith.constant 1.000000e-30 : f32
    %207 = vector.broadcast %cst_85 : f32 to vector<8x1xf32>
    %208 = arith.maximumf %206, %207 : vector<8x1xf32>
    %209 = tpu.reciprocal %208 {approx = true} : vector<8x1xf32> -> vector<8x1xf32>
    %210 = vector.broadcast %209 : vector<8x1xf32> to vector<8x8xf32>
    %211 = arith.mulf %204, %210 : vector<8x8xf32>
    %cst_86 = arith.constant dense<0.000000e+00> : vector<8x8xf32>
    %212 = tpu.matmul %211, %194, %cst_86 {dimension_numbers = #tpu.dot_dimension_numbers<[1], [0], [0], [1], [0, 0, 1, 1], [], []>} : vector<8x8xf32>, vector<8x8xf32>, vector<8x8xf32> -> vector<8x8xf32>
    %c8_87 = arith.constant 8 : index
    %c24_88 = arith.constant 24 : index
    %213 = vector.load %arg19[%c8_87, %c24_88] : memref<16x32xf32, #tpu.memory_space<vmem>>, vector<8x8xf32>
    tpu.vector_store %arg19[%c8_87, %c24_88], %212 {strides = array<i32>} : memref<16x32xf32, #tpu.memory_space<vmem>>, vector<8x8xf32>,
    %c0_89 = arith.constant 0 : index
    %c0_90 = arith.constant 0 : index
    %214 = vector.load %arg19[%c0_89, %c0_90] : memref<16x32xf32, #tpu.memory_space<vmem>>, vector<16x32xf32>
    %c0_91 = arith.constant 0 : index
    %c0_92 = arith.constant 0 : index
    %c0_93 = arith.constant 0 : index
    %215 = vector.load %arg8[%c0_91, %c0_92, %c0_93] : memref<2x32x32xf32, #tpu.memory_space<vmem>>, vector<1x32x32xf32>
    %216 = vector.shape_cast %215 : vector<1x32x32xf32> to vector<32x32xf32>
    %cst_94 = arith.constant dense<0.000000e+00> : vector<16x32xf32>
    %217 = tpu.matmul %214, %216, %cst_94 {dimension_numbers = #tpu.dot_dimension_numbers<[1], [0], [0], [1], [0, 0, 1, 1], [], []>} : vector<16x32xf32>, vector<32x32xf32>, vector<16x32xf32> -> vector<16x32xf32>
    %c0_95 = arith.constant 0 : index
    %c0_96 = arith.constant 0 : index
    %c0_97 = arith.constant 0 : index
    %218 = vector.load %arg9[%c0_95, %c0_96, %c0_97] : memref<2x1x32xf32, #tpu.memory_space<vmem>>, vector<1x1x32xf32>
    %219 = vector.shape_cast %218 : vector<1x1x32xf32> to vector<1x32xf32>
    %220 = vector.broadcast %219 : vector<1x32xf32> to vector<16x32xf32>
    %221 = arith.addf %217, %220 : vector<16x32xf32>
    %222 = arith.addf %22, %221 : vector<16x32xf32>
    %c0_98 = arith.constant 0 : index
    %c0_99 = arith.constant 0 : index
    %c0_100 = arith.constant 0 : index
    %223 = vector.load %arg10[%c0_98, %c0_99, %c0_100] : memref<2x1x32xf32, #tpu.memory_space<vmem>>, vector<1x1x32xf32>
    %224 = vector.shape_cast %223 : vector<1x1x32xf32> to vector<1x32xf32>
    %c0_101 = arith.constant 0 : index
    %c0_102 = arith.constant 0 : index
    %c0_103 = arith.constant 0 : index
    %225 = vector.load %arg11[%c0_101, %c0_102, %c0_103] : memref<2x1x32xf32, #tpu.memory_space<vmem>>, vector<1x1x32xf32>
    %226 = vector.shape_cast %225 : vector<1x1x32xf32> to vector<1x32xf32>
    %cst_104 = arith.constant dense<0.000000e+00> : vector<16xf32>
    %227 = vector.multi_reduction <add>, %222, %cst_104 [1] : vector<16x32xf32> to vector<16xf32>
    %228 = vector.shape_cast %227 : vector<16xf32> to vector<16x1xf32>
    %cst_105 = arith.constant 3.200000e+01 : f32
    %229 = vector.broadcast %cst_105 : f32 to vector<16x1xf32>
    %230 = arith.divf %228, %229 : vector<16x1xf32>
    %231 = vector.broadcast %230 : vector<16x1xf32> to vector<16x32xf32>
    %232 = arith.subf %222, %231 : vector<16x32xf32>
    %233 = arith.mulf %232, %232 : vector<16x32xf32>
    %cst_106 = arith.constant dense<0.000000e+00> : vector<16xf32>
    %234 = vector.multi_reduction <add>, %233, %cst_106 [1] : vector<16x32xf32> to vector<16xf32>
    %235 = vector.shape_cast %234 : vector<16xf32> to vector<16x1xf32>
    %cst_107 = arith.constant 3.200000e+01 : f32
    %236 = vector.broadcast %cst_107 : f32 to vector<16x1xf32>
    %237 = arith.divf %235, %236 : vector<16x1xf32>
    %238 = vector.broadcast %230 : vector<16x1xf32> to vector<16x32xf32>
    %239 = arith.subf %222, %238 : vector<16x32xf32>
    %cst_108 = arith.constant 9.99999974E-6 : f32
    %240 = vector.broadcast %cst_108 : f32 to vector<16x1xf32>
    %241 = arith.addf %237, %240 : vector<16x1xf32>
    %242 = math.rsqrt %241 : vector<16x1xf32>
    %243 = vector.broadcast %242 : vector<16x1xf32> to vector<16x32xf32>
    %244 = arith.mulf %239, %243 : vector<16x32xf32>
    %245 = vector.broadcast %224 : vector<1x32xf32> to vector<16x32xf32>
    %246 = arith.mulf %244, %245 : vector<16x32xf32>
    %247 = vector.broadcast %226 : vector<1x32xf32> to vector<16x32xf32>
    %248 = arith.addf %246, %247 : vector<16x32xf32>
    %c0_109 = arith.constant 0 : index
    %c0_110 = arith.constant 0 : index
    %c0_111 = arith.constant 0 : index
    %249 = vector.load %arg12[%c0_109, %c0_110, %c0_111] : memref<2x32x64xf32, #tpu.memory_space<vmem>>, vector<1x32x64xf32>
    %250 = vector.shape_cast %249 : vector<1x32x64xf32> to vector<32x64xf32>
    %cst_112 = arith.constant dense<0.000000e+00> : vector<16x64xf32>
    %251 = tpu.matmul %248, %250, %cst_112 {dimension_numbers = #tpu.dot_dimension_numbers<[1], [0], [0], [1], [0, 0, 1, 1], [], []>} : vector<16x32xf32>, vector<32x64xf32>, vector<16x64xf32> -> vector<16x64xf32>
    %c0_113 = arith.constant 0 : index
    %c0_114 = arith.constant 0 : index
    %c0_115 = arith.constant 0 : index
    %252 = vector.load %arg13[%c0_113, %c0_114, %c0_115] : memref<2x1x64xf32, #tpu.memory_space<vmem>>, vector<1x1x64xf32>
    %253 = vector.shape_cast %252 : vector<1x1x64xf32> to vector<1x64xf32>
    %254 = vector.broadcast %253 : vector<1x64xf32> to vector<16x64xf32>
    %255 = arith.addf %251, %254 : vector<16x64xf32>
    %cst_116 = arith.constant 0.000000e+00 : f32
    %256 = vector.broadcast %cst_116 : f32 to vector<16x64xf32>
    %257 = arith.maximumf %255, %256 : vector<16x64xf32>
    %c0_117 = arith.constant 0 : index
    %c0_118 = arith.constant 0 : index
    %c0_119 = arith.constant 0 : index
    %258 = vector.load %arg14[%c0_117, %c0_118, %c0_119] : memref<2x64x32xf32, #tpu.memory_space<vmem>>, vector<1x64x32xf32>
    %259 = vector.shape_cast %258 : vector<1x64x32xf32> to vector<64x32xf32>
    %cst_120 = arith.constant dense<0.000000e+00> : vector<16x32xf32>
    %260 = tpu.matmul %257, %259, %cst_120 {dimension_numbers = #tpu.dot_dimension_numbers<[1], [0], [0], [1], [0, 0, 1, 1], [], []>} : vector<16x64xf32>, vector<64x32xf32>, vector<16x32xf32> -> vector<16x32xf32>
    %c0_121 = arith.constant 0 : index
    %c0_122 = arith.constant 0 : index
    %c0_123 = arith.constant 0 : index
    %261 = vector.load %arg15[%c0_121, %c0_122, %c0_123] : memref<2x1x32xf32, #tpu.memory_space<vmem>>, vector<1x1x32xf32>
    %262 = vector.shape_cast %261 : vector<1x1x32xf32> to vector<1x32xf32>
    %263 = vector.broadcast %262 : vector<1x32xf32> to vector<16x32xf32>
    %264 = arith.addf %260, %263 : vector<16x32xf32>
    %265 = arith.addf %248, %264 : vector<16x32xf32>
    %c0_124 = arith.constant 0 : index
    %c0_125 = arith.constant 0 : index
    %c0_126 = arith.constant 0 : index
    %266 = vector.load %arg16[%c0_124, %c0_125, %c0_126] : memref<2x1x32xf32, #tpu.memory_space<vmem>>, vector<1x1x32xf32>
    %267 = vector.shape_cast %266 : vector<1x1x32xf32> to vector<1x32xf32>
    %c0_127 = arith.constant 0 : index
    %c0_128 = arith.constant 0 : index
    %c0_129 = arith.constant 0 : index
    %268 = vector.load %arg17[%c0_127, %c0_128, %c0_129] : memref<2x1x32xf32, #tpu.memory_space<vmem>>, vector<1x1x32xf32>
    %269 = vector.shape_cast %268 : vector<1x1x32xf32> to vector<1x32xf32>
    %cst_130 = arith.constant dense<0.000000e+00> : vector<16xf32>
    %270 = vector.multi_reduction <add>, %265, %cst_130 [1] : vector<16x32xf32> to vector<16xf32>
    %271 = vector.shape_cast %270 : vector<16xf32> to vector<16x1xf32>
    %cst_131 = arith.constant 3.200000e+01 : f32
    %272 = vector.broadcast %cst_131 : f32 to vector<16x1xf32>
    %273 = arith.divf %271, %272 : vector<16x1xf32>
    %274 = vector.broadcast %273 : vector<16x1xf32> to vector<16x32xf32>
    %275 = arith.subf %265, %274 : vector<16x32xf32>
    %276 = arith.mulf %275, %275 : vector<16x32xf32>
    %cst_132 = arith.constant dense<0.000000e+00> : vector<16xf32>
    %277 = vector.multi_reduction <add>, %276, %cst_132 [1] : vector<16x32xf32> to vector<16xf32>
    %278 = vector.shape_cast %277 : vector<16xf32> to vector<16x1xf32>
    %cst_133 = arith.constant 3.200000e+01 : f32
    %279 = vector.broadcast %cst_133 : f32 to vector<16x1xf32>
    %280 = arith.divf %278, %279 : vector<16x1xf32>
    %281 = vector.broadcast %273 : vector<16x1xf32> to vector<16x32xf32>
    %282 = arith.subf %265, %281 : vector<16x32xf32>
    %cst_134 = arith.constant 9.99999974E-6 : f32
    %283 = vector.broadcast %cst_134 : f32 to vector<16x1xf32>
    %284 = arith.addf %280, %283 : vector<16x1xf32>
    %285 = math.rsqrt %284 : vector<16x1xf32>
    %286 = vector.broadcast %285 : vector<16x1xf32> to vector<16x32xf32>
    %287 = arith.mulf %282, %286 : vector<16x32xf32>
    %288 = vector.broadcast %267 : vector<1x32xf32> to vector<16x32xf32>
    %289 = arith.mulf %287, %288 : vector<16x32xf32>
    %290 = vector.broadcast %269 : vector<1x32xf32> to vector<16x32xf32>
    %291 = arith.addf %289, %290 : vector<16x32xf32>
    %c1_135 = arith.constant 1 : index
    %c0_136 = arith.constant 0 : index
    %c0_137 = arith.constant 0 : index
    %292 = vector.load %arg6[%c1_135, %c0_136, %c0_137] : memref<2x32x96xf32, #tpu.memory_space<vmem>>, vector<1x32x96xf32>
    %293 = vector.shape_cast %292 : vector<1x32x96xf32> to vector<32x96xf32>
    %cst_138 = arith.constant dense<0.000000e+00> : vector<16x96xf32>
    %294 = tpu.matmul %291, %293, %cst_138 {dimension_numbers = #tpu.dot_dimension_numbers<[1], [0], [0], [1], [0, 0, 1, 1], [], []>} : vector<16x32xf32>, vector<32x96xf32>, vector<16x96xf32> -> vector<16x96xf32>
    %c1_139 = arith.constant 1 : index
    %c0_140 = arith.constant 0 : index
    %c0_141 = arith.constant 0 : index
    %295 = vector.load %arg7[%c1_139, %c0_140, %c0_141] : memref<2x1x96xf32, #tpu.memory_space<vmem>>, vector<1x1x96xf32>
    %296 = vector.shape_cast %295 : vector<1x1x96xf32> to vector<1x96xf32>
    %297 = vector.broadcast %296 : vector<1x96xf32> to vector<16x96xf32>
    %298 = arith.addf %294, %297 : vector<16x96xf32>
    %299 = vector.extract_strided_slice %298 {offsets = [0, 0], sizes = [8, 96], strides = [1, 1]} : vector<16x96xf32> to vector<8x96xf32>
    %300 = vector.extract_strided_slice %299 {offsets = [0, 0], sizes = [8, 8], strides = [1, 1]} : vector<8x96xf32> to vector<8x8xf32>
    %301 = vector.extract_strided_slice %299 {offsets = [0, 32], sizes = [8, 8], strides = [1, 1]} : vector<8x96xf32> to vector<8x8xf32>
    %302 = vector.extract_strided_slice %299 {offsets = [0, 64], sizes = [8, 8], strides = [1, 1]} : vector<8x96xf32> to vector<8x8xf32>
    %cst_142 = arith.constant dense<0.000000e+00> : vector<8x8xf32>
    %303 = tpu.matmul %300, %301, %cst_142 {dimension_numbers = #tpu.dot_dimension_numbers<[1], [1], [0], [0], [0, 0, 1, 0], [], []>} : vector<8x8xf32>, vector<8x8xf32>, vector<8x8xf32> -> vector<8x8xf32>
    %cst_143 = arith.constant 0.353553385 : f32
    %304 = vector.broadcast %cst_143 : f32 to vector<8x8xf32>
    %305 = arith.mulf %303, %304 : vector<8x8xf32>
    %306 = vector.broadcast %25 : vector<1x8xf32> to vector<8x8xf32>
    %307 = arith.addf %305, %306 : vector<8x8xf32>
    %cst_144 = arith.constant dense<0xFF800000> : vector<8xf32>
    %308 = vector.multi_reduction <maximumf>, %307, %cst_144 [1] : vector<8x8xf32> to vector<8xf32>
    %309 = vector.shape_cast %308 : vector<8xf32> to vector<8x1xf32>
    %310 = vector.broadcast %309 : vector<8x1xf32> to vector<8x8xf32>
    %311 = arith.subf %307, %310 : vector<8x8xf32>
    %312 = math.exp %311 : vector<8x8xf32>
    %cst_145 = arith.constant dense<0.000000e+00> : vector<8xf32>
    %313 = vector.multi_reduction <add>, %312, %cst_145 [1] : vector<8x8xf32> to vector<8xf32>
    %314 = vector.shape_cast %313 : vector<8xf32> to vector<8x1xf32>
    %cst_146 = arith.constant 1.000000e-30 : f32
    %315 = vector.broadcast %cst_146 : f32 to vector<8x1xf32>
    %316 = arith.maximumf %314, %315 : vector<8x1xf32>
    %317 = tpu.reciprocal %316 {approx = true} : vector<8x1xf32> -> vector<8x1xf32>
    %318 = vector.broadcast %317 : vector<8x1xf32> to vector<8x8xf32>
    %319 = arith.mulf %312, %318 : vector<8x8xf32>
    %cst_147 = arith.constant dense<0.000000e+00> : vector<8x8xf32>
    %320 = tpu.matmul %319, %302, %cst_147 {dimension_numbers = #tpu.dot_dimension_numbers<[1], [0], [0], [1], [0, 0, 1, 1], [], []>} : vector<8x8xf32>, vector<8x8xf32>, vector<8x8xf32> -> vector<8x8xf32>
    %c0_148 = arith.constant 0 : index
    %c0_149 = arith.constant 0 : index
    %321 = vector.load %arg19[%c0_148, %c0_149] : memref<16x32xf32, #tpu.memory_space<vmem>>, vector<8x8xf32>
    tpu.vector_store %arg19[%c0_148, %c0_149], %320 {strides = array<i32>} : memref<16x32xf32, #tpu.memory_space<vmem>>, vector<8x8xf32>,
    %322 = vector.extract_strided_slice %299 {offsets = [0, 8], sizes = [8, 8], strides = [1, 1]} : vector<8x96xf32> to vector<8x8xf32>
    %323 = vector.extract_strided_slice %299 {offsets = [0, 40], sizes = [8, 8], strides = [1, 1]} : vector<8x96xf32> to vector<8x8xf32>
    %324 = vector.extract_strided_slice %299 {offsets = [0, 72], sizes = [8, 8], strides = [1, 1]} : vector<8x96xf32> to vector<8x8xf32>
    %cst_150 = arith.constant dense<0.000000e+00> : vector<8x8xf32>
    %325 = tpu.matmul %322, %323, %cst_150 {dimension_numbers = #tpu.dot_dimension_numbers<[1], [1], [0], [0], [0, 0, 1, 0], [], []>} : vector<8x8xf32>, vector<8x8xf32>, vector<8x8xf32> -> vector<8x8xf32>
    %cst_151 = arith.constant 0.353553385 : f32
    %326 = vector.broadcast %cst_151 : f32 to vector<8x8xf32>
    %327 = arith.mulf %325, %326 : vector<8x8xf32>
    %328 = vector.broadcast %25 : vector<1x8xf32> to vector<8x8xf32>
    %329 = arith.addf %327, %328 : vector<8x8xf32>
    %cst_152 = arith.constant dense<0xFF800000> : vector<8xf32>
    %330 = vector.multi_reduction <maximumf>, %329, %cst_152 [1] : vector<8x8xf32> to vector<8xf32>
    %331 = vector.shape_cast %330 : vector<8xf32> to vector<8x1xf32>
    %332 = vector.broadcast %331 : vector<8x1xf32> to vector<8x8xf32>
    %333 = arith.subf %329, %332 : vector<8x8xf32>
    %334 = math.exp %333 : vector<8x8xf32>
    %cst_153 = arith.constant dense<0.000000e+00> : vector<8xf32>
    %335 = vector.multi_reduction <add>, %334, %cst_153 [1] : vector<8x8xf32> to vector<8xf32>
    %336 = vector.shape_cast %335 : vector<8xf32> to vector<8x1xf32>
    %cst_154 = arith.constant 1.000000e-30 : f32
    %337 = vector.broadcast %cst_154 : f32 to vector<8x1xf32>
    %338 = arith.maximumf %336, %337 : vector<8x1xf32>
    %339 = tpu.reciprocal %338 {approx = true} : vector<8x1xf32> -> vector<8x1xf32>
    %340 = vector.broadcast %339 : vector<8x1xf32> to vector<8x8xf32>
    %341 = arith.mulf %334, %340 : vector<8x8xf32>
    %cst_155 = arith.constant dense<0.000000e+00> : vector<8x8xf32>
    %342 = tpu.matmul %341, %324, %cst_155 {dimension_numbers = #tpu.dot_dimension_numbers<[1], [0], [0], [1], [0, 0, 1, 1], [], []>} : vector<8x8xf32>, vector<8x8xf32>, vector<8x8xf32> -> vector<8x8xf32>
    %c0_156 = arith.constant 0 : index
    %c8_157 = arith.constant 8 : index
    %343 = vector.load %arg19[%c0_156, %c8_157] : memref<16x32xf32, #tpu.memory_space<vmem>>, vector<8x8xf32>
    tpu.vector_store %arg19[%c0_156, %c8_157], %342 {strides = array<i32>} : memref<16x32xf32, #tpu.memory_space<vmem>>, vector<8x8xf32>,
    %344 = vector.extract_strided_slice %299 {offsets = [0, 16], sizes = [8, 8], strides = [1, 1]} : vector<8x96xf32> to vector<8x8xf32>
    %345 = vector.extract_strided_slice %299 {offsets = [0, 48], sizes = [8, 8], strides = [1, 1]} : vector<8x96xf32> to vector<8x8xf32>
    %346 = vector.extract_strided_slice %299 {offsets = [0, 80], sizes = [8, 8], strides = [1, 1]} : vector<8x96xf32> to vector<8x8xf32>
    %cst_158 = arith.constant dense<0.000000e+00> : vector<8x8xf32>
    %347 = tpu.matmul %344, %345, %cst_158 {dimension_numbers = #tpu.dot_dimension_numbers<[1], [1], [0], [0], [0, 0, 1, 0], [], []>} : vector<8x8xf32>, vector<8x8xf32>, vector<8x8xf32> -> vector<8x8xf32>
    %cst_159 = arith.constant 0.353553385 : f32
    %348 = vector.broadcast %cst_159 : f32 to vector<8x8xf32>
    %349 = arith.mulf %347, %348 : vector<8x8xf32>
    %350 = vector.broadcast %25 : vector<1x8xf32> to vector<8x8xf32>
    %351 = arith.addf %349, %350 : vector<8x8xf32>
    %cst_160 = arith.constant dense<0xFF800000> : vector<8xf32>
    %352 = vector.multi_reduction <maximumf>, %351, %cst_160 [1] : vector<8x8xf32> to vector<8xf32>
    %353 = vector.shape_cast %352 : vector<8xf32> to vector<8x1xf32>
    %354 = vector.broadcast %353 : vector<8x1xf32> to vector<8x8xf32>
    %355 = arith.subf %351, %354 : vector<8x8xf32>
    %356 = math.exp %355 : vector<8x8xf32>
    %cst_161 = arith.constant dense<0.000000e+00> : vector<8xf32>
    %357 = vector.multi_reduction <add>, %356, %cst_161 [1] : vector<8x8xf32> to vector<8xf32>
    %358 = vector.shape_cast %357 : vector<8xf32> to vector<8x1xf32>
    %cst_162 = arith.constant 1.000000e-30 : f32
    %359 = vector.broadcast %cst_162 : f32 to vector<8x1xf32>
    %360 = arith.maximumf %358, %359 : vector<8x1xf32>
    %361 = tpu.reciprocal %360 {approx = true} : vector<8x1xf32> -> vector<8x1xf32>
    %362 = vector.broadcast %361 : vector<8x1xf32> to vector<8x8xf32>
    %363 = arith.mulf %356, %362 : vector<8x8xf32>
    %cst_163 = arith.constant dense<0.000000e+00> : vector<8x8xf32>
    %364 = tpu.matmul %363, %346, %cst_163 {dimension_numbers = #tpu.dot_dimension_numbers<[1], [0], [0], [1], [0, 0, 1, 1], [], []>} : vector<8x8xf32>, vector<8x8xf32>, vector<8x8xf32> -> vector<8x8xf32>
    %c0_164 = arith.constant 0 : index
    %c16_165 = arith.constant 16 : index
    %365 = vector.load %arg19[%c0_164, %c16_165] : memref<16x32xf32, #tpu.memory_space<vmem>>, vector<8x8xf32>
    tpu.vector_store %arg19[%c0_164, %c16_165], %364 {strides = array<i32>} : memref<16x32xf32, #tpu.memory_space<vmem>>, vector<8x8xf32>,
    %366 = vector.extract_strided_slice %299 {offsets = [0, 24], sizes = [8, 8], strides = [1, 1]} : vector<8x96xf32> to vector<8x8xf32>
    %367 = vector.extract_strided_slice %299 {offsets = [0, 56], sizes = [8, 8], strides = [1, 1]} : vector<8x96xf32> to vector<8x8xf32>
    %368 = vector.extract_strided_slice %299 {offsets = [0, 88], sizes = [8, 8], strides = [1, 1]} : vector<8x96xf32> to vector<8x8xf32>
    %cst_166 = arith.constant dense<0.000000e+00> : vector<8x8xf32>
    %369 = tpu.matmul %366, %367, %cst_166 {dimension_numbers = #tpu.dot_dimension_numbers<[1], [1], [0], [0], [0, 0, 1, 0], [], []>} : vector<8x8xf32>, vector<8x8xf32>, vector<8x8xf32> -> vector<8x8xf32>
    %cst_167 = arith.constant 0.353553385 : f32
    %370 = vector.broadcast %cst_167 : f32 to vector<8x8xf32>
    %371 = arith.mulf %369, %370 : vector<8x8xf32>
    %372 = vector.broadcast %25 : vector<1x8xf32> to vector<8x8xf32>
    %373 = arith.addf %371, %372 : vector<8x8xf32>
    %cst_168 = arith.constant dense<0xFF800000> : vector<8xf32>
    %374 = vector.multi_reduction <maximumf>, %373, %cst_168 [1] : vector<8x8xf32> to vector<8xf32>
    %375 = vector.shape_cast %374 : vector<8xf32> to vector<8x1xf32>
    %376 = vector.broadcast %375 : vector<8x1xf32> to vector<8x8xf32>
    %377 = arith.subf %373, %376 : vector<8x8xf32>
    %378 = math.exp %377 : vector<8x8xf32>
    %cst_169 = arith.constant dense<0.000000e+00> : vector<8xf32>
    %379 = vector.multi_reduction <add>, %378, %cst_169 [1] : vector<8x8xf32> to vector<8xf32>
    %380 = vector.shape_cast %379 : vector<8xf32> to vector<8x1xf32>
    %cst_170 = arith.constant 1.000000e-30 : f32
    %381 = vector.broadcast %cst_170 : f32 to vector<8x1xf32>
    %382 = arith.maximumf %380, %381 : vector<8x1xf32>
    %383 = tpu.reciprocal %382 {approx = true} : vector<8x1xf32> -> vector<8x1xf32>
    %384 = vector.broadcast %383 : vector<8x1xf32> to vector<8x8xf32>
    %385 = arith.mulf %378, %384 : vector<8x8xf32>
    %cst_171 = arith.constant dense<0.000000e+00> : vector<8x8xf32>
    %386 = tpu.matmul %385, %368, %cst_171 {dimension_numbers = #tpu.dot_dimension_numbers<[1], [0], [0], [1], [0, 0, 1, 1], [], []>} : vector<8x8xf32>, vector<8x8xf32>, vector<8x8xf32> -> vector<8x8xf32>
    %c0_172 = arith.constant 0 : index
    %c24_173 = arith.constant 24 : index
    %387 = vector.load %arg19[%c0_172, %c24_173] : memref<16x32xf32, #tpu.memory_space<vmem>>, vector<8x8xf32>
    tpu.vector_store %arg19[%c0_172, %c24_173], %386 {strides = array<i32>} : memref<16x32xf32, #tpu.memory_space<vmem>>, vector<8x8xf32>,
    %388 = vector.extract_strided_slice %298 {offsets = [8, 0], sizes = [8, 96], strides = [1, 1]} : vector<16x96xf32> to vector<8x96xf32>
    %389 = vector.extract_strided_slice %388 {offsets = [0, 0], sizes = [8, 8], strides = [1, 1]} : vector<8x96xf32> to vector<8x8xf32>
    %390 = vector.extract_strided_slice %388 {offsets = [0, 32], sizes = [8, 8], strides = [1, 1]} : vector<8x96xf32> to vector<8x8xf32>
    %391 = vector.extract_strided_slice %388 {offsets = [0, 64], sizes = [8, 8], strides = [1, 1]} : vector<8x96xf32> to vector<8x8xf32>
    %cst_174 = arith.constant dense<0.000000e+00> : vector<8x8xf32>
    %392 = tpu.matmul %389, %390, %cst_174 {dimension_numbers = #tpu.dot_dimension_numbers<[1], [1], [0], [0], [0, 0, 1, 0], [], []>} : vector<8x8xf32>, vector<8x8xf32>, vector<8x8xf32> -> vector<8x8xf32>
    %cst_175 = arith.constant 0.353553385 : f32
    %393 = vector.broadcast %cst_175 : f32 to vector<8x8xf32>
    %394 = arith.mulf %392, %393 : vector<8x8xf32>
    %395 = vector.broadcast %28 : vector<1x8xf32> to vector<8x8xf32>
    %396 = arith.addf %394, %395 : vector<8x8xf32>
    %cst_176 = arith.constant dense<0xFF800000> : vector<8xf32>
    %397 = vector.multi_reduction <maximumf>, %396, %cst_176 [1] : vector<8x8xf32> to vector<8xf32>
    %398 = vector.shape_cast %397 : vector<8xf32> to vector<8x1xf32>
    %399 = vector.broadcast %398 : vector<8x1xf32> to vector<8x8xf32>
    %400 = arith.subf %396, %399 : vector<8x8xf32>
    %401 = math.exp %400 : vector<8x8xf32>
    %cst_177 = arith.constant dense<0.000000e+00> : vector<8xf32>
    %402 = vector.multi_reduction <add>, %401, %cst_177 [1] : vector<8x8xf32> to vector<8xf32>
    %403 = vector.shape_cast %402 : vector<8xf32> to vector<8x1xf32>
    %cst_178 = arith.constant 1.000000e-30 : f32
    %404 = vector.broadcast %cst_178 : f32 to vector<8x1xf32>
    %405 = arith.maximumf %403, %404 : vector<8x1xf32>
    %406 = tpu.reciprocal %405 {approx = true} : vector<8x1xf32> -> vector<8x1xf32>
    %407 = vector.broadcast %406 : vector<8x1xf32> to vector<8x8xf32>
    %408 = arith.mulf %401, %407 : vector<8x8xf32>
    %cst_179 = arith.constant dense<0.000000e+00> : vector<8x8xf32>
    %409 = tpu.matmul %408, %391, %cst_179 {dimension_numbers = #tpu.dot_dimension_numbers<[1], [0], [0], [1], [0, 0, 1, 1], [], []>} : vector<8x8xf32>, vector<8x8xf32>, vector<8x8xf32> -> vector<8x8xf32>
    %c8_180 = arith.constant 8 : index
    %c0_181 = arith.constant 0 : index
    %410 = vector.load %arg19[%c8_180, %c0_181] : memref<16x32xf32, #tpu.memory_space<vmem>>, vector<8x8xf32>
    tpu.vector_store %arg19[%c8_180, %c0_181], %409 {strides = array<i32>} : memref<16x32xf32, #tpu.memory_space<vmem>>, vector<8x8xf32>,
    %411 = vector.extract_strided_slice %388 {offsets = [0, 8], sizes = [8, 8], strides = [1, 1]} : vector<8x96xf32> to vector<8x8xf32>
    %412 = vector.extract_strided_slice %388 {offsets = [0, 40], sizes = [8, 8], strides = [1, 1]} : vector<8x96xf32> to vector<8x8xf32>
    %413 = vector.extract_strided_slice %388 {offsets = [0, 72], sizes = [8, 8], strides = [1, 1]} : vector<8x96xf32> to vector<8x8xf32>
    %cst_182 = arith.constant dense<0.000000e+00> : vector<8x8xf32>
    %414 = tpu.matmul %411, %412, %cst_182 {dimension_numbers = #tpu.dot_dimension_numbers<[1], [1], [0], [0], [0, 0, 1, 0], [], []>} : vector<8x8xf32>, vector<8x8xf32>, vector<8x8xf32> -> vector<8x8xf32>
    %cst_183 = arith.constant 0.353553385 : f32
    %415 = vector.broadcast %cst_183 : f32 to vector<8x8xf32>
    %416 = arith.mulf %414, %415 : vector<8x8xf32>
    %417 = vector.broadcast %28 : vector<1x8xf32> to vector<8x8xf32>
    %418 = arith.addf %416, %417 : vector<8x8xf32>
    %cst_184 = arith.constant dense<0xFF800000> : vector<8xf32>
    %419 = vector.multi_reduction <maximumf>, %418, %cst_184 [1] : vector<8x8xf32> to vector<8xf32>
    %420 = vector.shape_cast %419 : vector<8xf32> to vector<8x1xf32>
    %421 = vector.broadcast %420 : vector<8x1xf32> to vector<8x8xf32>
    %422 = arith.subf %418, %421 : vector<8x8xf32>
    %423 = math.exp %422 : vector<8x8xf32>
    %cst_185 = arith.constant dense<0.000000e+00> : vector<8xf32>
    %424 = vector.multi_reduction <add>, %423, %cst_185 [1] : vector<8x8xf32> to vector<8xf32>
    %425 = vector.shape_cast %424 : vector<8xf32> to vector<8x1xf32>
    %cst_186 = arith.constant 1.000000e-30 : f32
    %426 = vector.broadcast %cst_186 : f32 to vector<8x1xf32>
    %427 = arith.maximumf %425, %426 : vector<8x1xf32>
    %428 = tpu.reciprocal %427 {approx = true} : vector<8x1xf32> -> vector<8x1xf32>
    %429 = vector.broadcast %428 : vector<8x1xf32> to vector<8x8xf32>
    %430 = arith.mulf %423, %429 : vector<8x8xf32>
    %cst_187 = arith.constant dense<0.000000e+00> : vector<8x8xf32>
    %431 = tpu.matmul %430, %413, %cst_187 {dimension_numbers = #tpu.dot_dimension_numbers<[1], [0], [0], [1], [0, 0, 1, 1], [], []>} : vector<8x8xf32>, vector<8x8xf32>, vector<8x8xf32> -> vector<8x8xf32>
    %c8_188 = arith.constant 8 : index
    %c8_189 = arith.constant 8 : index
    %432 = vector.load %arg19[%c8_188, %c8_189] : memref<16x32xf32, #tpu.memory_space<vmem>>, vector<8x8xf32>
    tpu.vector_store %arg19[%c8_188, %c8_189], %431 {strides = array<i32>} : memref<16x32xf32, #tpu.memory_space<vmem>>, vector<8x8xf32>,
    %433 = vector.extract_strided_slice %388 {offsets = [0, 16], sizes = [8, 8], strides = [1, 1]} : vector<8x96xf32> to vector<8x8xf32>
    %434 = vector.extract_strided_slice %388 {offsets = [0, 48], sizes = [8, 8], strides = [1, 1]} : vector<8x96xf32> to vector<8x8xf32>
    %435 = vector.extract_strided_slice %388 {offsets = [0, 80], sizes = [8, 8], strides = [1, 1]} : vector<8x96xf32> to vector<8x8xf32>
    %cst_190 = arith.constant dense<0.000000e+00> : vector<8x8xf32>
    %436 = tpu.matmul %433, %434, %cst_190 {dimension_numbers = #tpu.dot_dimension_numbers<[1], [1], [0], [0], [0, 0, 1, 0], [], []>} : vector<8x8xf32>, vector<8x8xf32>, vector<8x8xf32> -> vector<8x8xf32>
    %cst_191 = arith.constant 0.353553385 : f32
    %437 = vector.broadcast %cst_191 : f32 to vector<8x8xf32>
    %438 = arith.mulf %436, %437 : vector<8x8xf32>
    %439 = vector.broadcast %28 : vector<1x8xf32> to vector<8x8xf32>
    %440 = arith.addf %438, %439 : vector<8x8xf32>
    %cst_192 = arith.constant dense<0xFF800000> : vector<8xf32>
    %441 = vector.multi_reduction <maximumf>, %440, %cst_192 [1] : vector<8x8xf32> to vector<8xf32>
    %442 = vector.shape_cast %441 : vector<8xf32> to vector<8x1xf32>
    %443 = vector.broadcast %442 : vector<8x1xf32> to vector<8x8xf32>
    %444 = arith.subf %440, %443 : vector<8x8xf32>
    %445 = math.exp %444 : vector<8x8xf32>
    %cst_193 = arith.constant dense<0.000000e+00> : vector<8xf32>
    %446 = vector.multi_reduction <add>, %445, %cst_193 [1] : vector<8x8xf32> to vector<8xf32>
    %447 = vector.shape_cast %446 : vector<8xf32> to vector<8x1xf32>
    %cst_194 = arith.constant 1.000000e-30 : f32
    %448 = vector.broadcast %cst_194 : f32 to vector<8x1xf32>
    %449 = arith.maximumf %447, %448 : vector<8x1xf32>
    %450 = tpu.reciprocal %449 {approx = true} : vector<8x1xf32> -> vector<8x1xf32>
    %451 = vector.broadcast %450 : vector<8x1xf32> to vector<8x8xf32>
    %452 = arith.mulf %445, %451 : vector<8x8xf32>
    %cst_195 = arith.constant dense<0.000000e+00> : vector<8x8xf32>
    %453 = tpu.matmul %452, %435, %cst_195 {dimension_numbers = #tpu.dot_dimension_numbers<[1], [0], [0], [1], [0, 0, 1, 1], [], []>} : vector<8x8xf32>, vector<8x8xf32>, vector<8x8xf32> -> vector<8x8xf32>
    %c8_196 = arith.constant 8 : index
    %c16_197 = arith.constant 16 : index
    %454 = vector.load %arg19[%c8_196, %c16_197] : memref<16x32xf32, #tpu.memory_space<vmem>>, vector<8x8xf32>
    tpu.vector_store %arg19[%c8_196, %c16_197], %453 {strides = array<i32>} : memref<16x32xf32, #tpu.memory_space<vmem>>, vector<8x8xf32>,
    %455 = vector.extract_strided_slice %388 {offsets = [0, 24], sizes = [8, 8], strides = [1, 1]} : vector<8x96xf32> to vector<8x8xf32>
    %456 = vector.extract_strided_slice %388 {offsets = [0, 56], sizes = [8, 8], strides = [1, 1]} : vector<8x96xf32> to vector<8x8xf32>
    %457 = vector.extract_strided_slice %388 {offsets = [0, 88], sizes = [8, 8], strides = [1, 1]} : vector<8x96xf32> to vector<8x8xf32>
    %cst_198 = arith.constant dense<0.000000e+00> : vector<8x8xf32>
    %458 = tpu.matmul %455, %456, %cst_198 {dimension_numbers = #tpu.dot_dimension_numbers<[1], [1], [0], [0], [0, 0, 1, 0], [], []>} : vector<8x8xf32>, vector<8x8xf32>, vector<8x8xf32> -> vector<8x8xf32>
    %cst_199 = arith.constant 0.353553385 : f32
    %459 = vector.broadcast %cst_199 : f32 to vector<8x8xf32>
    %460 = arith.mulf %458, %459 : vector<8x8xf32>
    %461 = vector.broadcast %28 : vector<1x8xf32> to vector<8x8xf32>
    %462 = arith.addf %460, %461 : vector<8x8xf32>
    %cst_200 = arith.constant dense<0xFF800000> : vector<8xf32>
    %463 = vector.multi_reduction <maximumf>, %462, %cst_200 [1] : vector<8x8xf32> to vector<8xf32>
    %464 = vector.shape_cast %463 : vector<8xf32> to vector<8x1xf32>
    %465 = vector.broadcast %464 : vector<8x1xf32> to vector<8x8xf32>
    %466 = arith.subf %462, %465 : vector<8x8xf32>
    %467 = math.exp %466 : vector<8x8xf32>
    %cst_201 = arith.constant dense<0.000000e+00> : vector<8xf32>
    %468 = vector.multi_reduction <add>, %467, %cst_201 [1] : vector<8x8xf32> to vector<8xf32>
    %469 = vector.shape_cast %468 : vector<8xf32> to vector<8x1xf32>
    %cst_202 = arith.constant 1.000000e-30 : f32
    %470 = vector.broadcast %cst_202 : f32 to vector<8x1xf32>
    %471 = arith.maximumf %469, %470 : vector<8x1xf32>
    %472 = tpu.reciprocal %471 {approx = true} : vector<8x1xf32> -> vector<8x1xf32>
    %473 = vector.broadcast %472 : vector<8x1xf32> to vector<8x8xf32>
    %474 = arith.mulf %467, %473 : vector<8x8xf32>
    %cst_203 = arith.constant dense<0.000000e+00> : vector<8x8xf32>
    %475 = tpu.matmul %474, %457, %cst_203 {dimension_numbers = #tpu.dot_dimension_numbers<[1], [0], [0], [1], [0, 0, 1, 1], [], []>} : vector<8x8xf32>, vector<8x8xf32>, vector<8x8xf32> -> vector<8x8xf32>
    %c8_204 = arith.constant 8 : index
    %c24_205 = arith.constant 24 : index
    %476 = vector.load %arg19[%c8_204, %c24_205] : memref<16x32xf32, #tpu.memory_space<vmem>>, vector<8x8xf32>
    tpu.vector_store %arg19[%c8_204, %c24_205], %475 {strides = array<i32>} : memref<16x32xf32, #tpu.memory_space<vmem>>, vector<8x8xf32>,
    %c0_206 = arith.constant 0 : index
    %c0_207 = arith.constant 0 : index
    %477 = vector.load %arg19[%c0_206, %c0_207] : memref<16x32xf32, #tpu.memory_space<vmem>>, vector<16x32xf32>
    %c1_208 = arith.constant 1 : index
    %c0_209 = arith.constant 0 : index
    %c0_210 = arith.constant 0 : index
    %478 = vector.load %arg8[%c1_208, %c0_209, %c0_210] : memref<2x32x32xf32, #tpu.memory_space<vmem>>, vector<1x32x32xf32>
    %479 = vector.shape_cast %478 : vector<1x32x32xf32> to vector<32x32xf32>
    %cst_211 = arith.constant dense<0.000000e+00> : vector<16x32xf32>
    %480 = tpu.matmul %477, %479, %cst_211 {dimension_numbers = #tpu.dot_dimension_numbers<[1], [0], [0], [1], [0, 0, 1, 1], [], []>} : vector<16x32xf32>, vector<32x32xf32>, vector<16x32xf32> -> vector<16x32xf32>
    %c1_212 = arith.constant 1 : index
    %c0_213 = arith.constant 0 : index
    %c0_214 = arith.constant 0 : index
    %481 = vector.load %arg9[%c1_212, %c0_213, %c0_214] : memref<2x1x32xf32, #tpu.memory_space<vmem>>, vector<1x1x32xf32>
    %482 = vector.shape_cast %481 : vector<1x1x32xf32> to vector<1x32xf32>
    %483 = vector.broadcast %482 : vector<1x32xf32> to vector<16x32xf32>
    %484 = arith.addf %480, %483 : vector<16x32xf32>
    %485 = arith.addf %291, %484 : vector<16x32xf32>
    %c1_215 = arith.constant 1 : index
    %c0_216 = arith.constant 0 : index
    %c0_217 = arith.constant 0 : index
    %486 = vector.load %arg10[%c1_215, %c0_216, %c0_217] : memref<2x1x32xf32, #tpu.memory_space<vmem>>, vector<1x1x32xf32>
    %487 = vector.shape_cast %486 : vector<1x1x32xf32> to vector<1x32xf32>
    %c1_218 = arith.constant 1 : index
    %c0_219 = arith.constant 0 : index
    %c0_220 = arith.constant 0 : index
    %488 = vector.load %arg11[%c1_218, %c0_219, %c0_220] : memref<2x1x32xf32, #tpu.memory_space<vmem>>, vector<1x1x32xf32>
    %489 = vector.shape_cast %488 : vector<1x1x32xf32> to vector<1x32xf32>
    %cst_221 = arith.constant dense<0.000000e+00> : vector<16xf32>
    %490 = vector.multi_reduction <add>, %485, %cst_221 [1] : vector<16x32xf32> to vector<16xf32>
    %491 = vector.shape_cast %490 : vector<16xf32> to vector<16x1xf32>
    %cst_222 = arith.constant 3.200000e+01 : f32
    %492 = vector.broadcast %cst_222 : f32 to vector<16x1xf32>
    %493 = arith.divf %491, %492 : vector<16x1xf32>
    %494 = vector.broadcast %493 : vector<16x1xf32> to vector<16x32xf32>
    %495 = arith.subf %485, %494 : vector<16x32xf32>
    %496 = arith.mulf %495, %495 : vector<16x32xf32>
    %cst_223 = arith.constant dense<0.000000e+00> : vector<16xf32>
    %497 = vector.multi_reduction <add>, %496, %cst_223 [1] : vector<16x32xf32> to vector<16xf32>
    %498 = vector.shape_cast %497 : vector<16xf32> to vector<16x1xf32>
    %cst_224 = arith.constant 3.200000e+01 : f32
    %499 = vector.broadcast %cst_224 : f32 to vector<16x1xf32>
    %500 = arith.divf %498, %499 : vector<16x1xf32>
    %501 = vector.broadcast %493 : vector<16x1xf32> to vector<16x32xf32>
    %502 = arith.subf %485, %501 : vector<16x32xf32>
    %cst_225 = arith.constant 9.99999974E-6 : f32
    %503 = vector.broadcast %cst_225 : f32 to vector<16x1xf32>
    %504 = arith.addf %500, %503 : vector<16x1xf32>
    %505 = math.rsqrt %504 : vector<16x1xf32>
    %506 = vector.broadcast %505 : vector<16x1xf32> to vector<16x32xf32>
    %507 = arith.mulf %502, %506 : vector<16x32xf32>
    %508 = vector.broadcast %487 : vector<1x32xf32> to vector<16x32xf32>
    %509 = arith.mulf %507, %508 : vector<16x32xf32>
    %510 = vector.broadcast %489 : vector<1x32xf32> to vector<16x32xf32>
    %511 = arith.addf %509, %510 : vector<16x32xf32>
    %c1_226 = arith.constant 1 : index
    %c0_227 = arith.constant 0 : index
    %c0_228 = arith.constant 0 : index
    %512 = vector.load %arg12[%c1_226, %c0_227, %c0_228] : memref<2x32x64xf32, #tpu.memory_space<vmem>>, vector<1x32x64xf32>
    %513 = vector.shape_cast %512 : vector<1x32x64xf32> to vector<32x64xf32>
    %cst_229 = arith.constant dense<0.000000e+00> : vector<16x64xf32>
    %514 = tpu.matmul %511, %513, %cst_229 {dimension_numbers = #tpu.dot_dimension_numbers<[1], [0], [0], [1], [0, 0, 1, 1], [], []>} : vector<16x32xf32>, vector<32x64xf32>, vector<16x64xf32> -> vector<16x64xf32>
    %c1_230 = arith.constant 1 : index
    %c0_231 = arith.constant 0 : index
    %c0_232 = arith.constant 0 : index
    %515 = vector.load %arg13[%c1_230, %c0_231, %c0_232] : memref<2x1x64xf32, #tpu.memory_space<vmem>>, vector<1x1x64xf32>
    %516 = vector.shape_cast %515 : vector<1x1x64xf32> to vector<1x64xf32>
    %517 = vector.broadcast %516 : vector<1x64xf32> to vector<16x64xf32>
    %518 = arith.addf %514, %517 : vector<16x64xf32>
    %cst_233 = arith.constant 0.000000e+00 : f32
    %519 = vector.broadcast %cst_233 : f32 to vector<16x64xf32>
    %520 = arith.maximumf %518, %519 : vector<16x64xf32>
    %c1_234 = arith.constant 1 : index
    %c0_235 = arith.constant 0 : index
    %c0_236 = arith.constant 0 : index
    %521 = vector.load %arg14[%c1_234, %c0_235, %c0_236] : memref<2x64x32xf32, #tpu.memory_space<vmem>>, vector<1x64x32xf32>
    %522 = vector.shape_cast %521 : vector<1x64x32xf32> to vector<64x32xf32>
    %cst_237 = arith.constant dense<0.000000e+00> : vector<16x32xf32>
    %523 = tpu.matmul %520, %522, %cst_237 {dimension_numbers = #tpu.dot_dimension_numbers<[1], [0], [0], [1], [0, 0, 1, 1], [], []>} : vector<16x64xf32>, vector<64x32xf32>, vector<16x32xf32> -> vector<16x32xf32>
    %c1_238 = arith.constant 1 : index
    %c0_239 = arith.constant 0 : index
    %c0_240 = arith.constant 0 : index
    %524 = vector.load %arg15[%c1_238, %c0_239, %c0_240] : memref<2x1x32xf32, #tpu.memory_space<vmem>>, vector<1x1x32xf32>
    %525 = vector.shape_cast %524 : vector<1x1x32xf32> to vector<1x32xf32>
    %526 = vector.broadcast %525 : vector<1x32xf32> to vector<16x32xf32>
    %527 = arith.addf %523, %526 : vector<16x32xf32>
    %528 = arith.addf %511, %527 : vector<16x32xf32>
    %c1_241 = arith.constant 1 : index
    %c0_242 = arith.constant 0 : index
    %c0_243 = arith.constant 0 : index
    %529 = vector.load %arg16[%c1_241, %c0_242, %c0_243] : memref<2x1x32xf32, #tpu.memory_space<vmem>>, vector<1x1x32xf32>
    %530 = vector.shape_cast %529 : vector<1x1x32xf32> to vector<1x32xf32>
    %c1_244 = arith.constant 1 : index
    %c0_245 = arith.constant 0 : index
    %c0_246 = arith.constant 0 : index
    %531 = vector.load %arg17[%c1_244, %c0_245, %c0_246] : memref<2x1x32xf32, #tpu.memory_space<vmem>>, vector<1x1x32xf32>
    %532 = vector.shape_cast %531 : vector<1x1x32xf32> to vector<1x32xf32>
    %cst_247 = arith.constant dense<0.000000e+00> : vector<16xf32>
    %533 = vector.multi_reduction <add>, %528, %cst_247 [1] : vector<16x32xf32> to vector<16xf32>
    %534 = vector.shape_cast %533 : vector<16xf32> to vector<16x1xf32>
    %cst_248 = arith.constant 3.200000e+01 : f32
    %535 = vector.broadcast %cst_248 : f32 to vector<16x1xf32>
    %536 = arith.divf %534, %535 : vector<16x1xf32>
    %537 = vector.broadcast %536 : vector<16x1xf32> to vector<16x32xf32>
    %538 = arith.subf %528, %537 : vector<16x32xf32>
    %539 = arith.mulf %538, %538 : vector<16x32xf32>
    %cst_249 = arith.constant dense<0.000000e+00> : vector<16xf32>
    %540 = vector.multi_reduction <add>, %539, %cst_249 [1] : vector<16x32xf32> to vector<16xf32>
    %541 = vector.shape_cast %540 : vector<16xf32> to vector<16x1xf32>
    %cst_250 = arith.constant 3.200000e+01 : f32
    %542 = vector.broadcast %cst_250 : f32 to vector<16x1xf32>
    %543 = arith.divf %541, %542 : vector<16x1xf32>
    %544 = vector.broadcast %536 : vector<16x1xf32> to vector<16x32xf32>
    %545 = arith.subf %528, %544 : vector<16x32xf32>
    %cst_251 = arith.constant 9.99999974E-6 : f32
    %546 = vector.broadcast %cst_251 : f32 to vector<16x1xf32>
    %547 = arith.addf %543, %546 : vector<16x1xf32>
    %548 = math.rsqrt %547 : vector<16x1xf32>
    %549 = vector.broadcast %548 : vector<16x1xf32> to vector<16x32xf32>
    %550 = arith.mulf %545, %549 : vector<16x32xf32>
    %551 = vector.broadcast %530 : vector<1x32xf32> to vector<16x32xf32>
    %552 = arith.mulf %550, %551 : vector<16x32xf32>
    %553 = vector.broadcast %532 : vector<1x32xf32> to vector<16x32xf32>
    %554 = arith.addf %552, %553 : vector<16x32xf32>
    %555 = vector.broadcast %1 : vector<16x1xf32> to vector<16x32xf32>
    %556 = arith.mulf %554, %555 : vector<16x32xf32>
    %c0_252 = arith.constant 0 : index
    %c0_253 = arith.constant 0 : index
    %557 = vector.load %arg18[%c0_252, %c0_253] : memref<16x32xf32, #tpu.memory_space<vmem>>, vector<16x32xf32>
    tpu.vector_store %arg18[%c0_252, %c0_253], %556 {strides = array<i32>} : memref<16x32xf32, #tpu.memory_space<vmem>>, vector<16x32xf32>,
    return
  }
  func.func @transform_0(%arg0: i32) -> (i32, i32) {
    %c0_i32 = arith.constant 0 : i32
    %c0_i32_0 = arith.constant 0 : i32
    %c0_i32_1 = arith.constant 0 : i32
    return %c0_i32, %c0_i32_0 : i32, i32
  }
  func.func @transform_1(%arg0: i32) -> (i32, i32) {
    %c0_i32 = arith.constant 0 : i32
    %c0_i32_0 = arith.constant 0 : i32
    %c0_i32_1 = arith.constant 0 : i32
    return %c0_i32, %c0_i32_0 : i32, i32
  }
  func.func @transform_2(%arg0: i32) -> (i32, i32) {
    %c0_i32 = arith.constant 0 : i32
    %c0_i32_0 = arith.constant 0 : i32
    %c0_i32_1 = arith.constant 0 : i32
    return %c0_i32, %c0_i32_0 : i32, i32
  }
  func.func @transform_3(%arg0: i32) -> (i32, i32, i32) {
    %c0_i32 = arith.constant 0 : i32
    %c0_i32_0 = arith.constant 0 : i32
    %c0_i32_1 = arith.constant 0 : i32
    %c0_i32_2 = arith.constant 0 : i32
    return %c0_i32, %c0_i32_0, %c0_i32_1 : i32, i32, i32
  }
  func.func @transform_4(%arg0: i32) -> (i32, i32, i32) {
    %c0_i32 = arith.constant 0 : i32
    %c0_i32_0 = arith.constant 0 : i32
    %c0_i32_1 = arith.constant 0 : i32
    %c0_i32_2 = arith.constant 0 : i32
    return %c0_i32, %c0_i32_0, %c0_i32_1 : i32, i32, i32
  }
  func.func @transform_5(%arg0: i32) -> (i32, i32, i32) {
    %c0_i32 = arith.constant 0 : i32
    %c0_i32_0 = arith.constant 0 : i32
    %c0_i32_1 = arith.constant 0 : i32
    %c0_i32_2 = arith.constant 0 : i32
    return %c0_i32, %c0_i32_0, %c0_i32_1 : i32, i32, i32
  }
  func.func @transform_6(%arg0: i32) -> (i32, i32, i32) {
    %c0_i32 = arith.constant 0 : i32
    %c0_i32_0 = arith.constant 0 : i32
    %c0_i32_1 = arith.constant 0 : i32
    %c0_i32_2 = arith.constant 0 : i32
    return %c0_i32, %c0_i32_0, %c0_i32_1 : i32, i32, i32
  }
  func.func @transform_7(%arg0: i32) -> (i32, i32, i32) {
    %c0_i32 = arith.constant 0 : i32
    %c0_i32_0 = arith.constant 0 : i32
    %c0_i32_1 = arith.constant 0 : i32
    %c0_i32_2 = arith.constant 0 : i32
    return %c0_i32, %c0_i32_0, %c0_i32_1 : i32, i32, i32
  }
  func.func @transform_8(%arg0: i32) -> (i32, i32, i32) {
    %c0_i32 = arith.constant 0 : i32
    %c0_i32_0 = arith.constant 0 : i32
    %c0_i32_1 = arith.constant 0 : i32
    %c0_i32_2 = arith.constant 0 : i32
    return %c0_i32, %c0_i32_0, %c0_i32_1 : i32, i32, i32
  }
  func.func @transform_9(%arg0: i32) -> (i32, i32, i32) {
    %c0_i32 = arith.constant 0 : i32
    %c0_i32_0 = arith.constant 0 : i32
    %c0_i32_1 = arith.constant 0 : i32
    %c0_i32_2 = arith.constant 0 : i32
    return %c0_i32, %c0_i32_0, %c0_i32_1 : i32, i32, i32
  }
  func.func @transform_10(%arg0: i32) -> (i32, i32, i32) {
    %c0_i32 = arith.constant 0 : i32
    %c0_i32_0 = arith.constant 0 : i32
    %c0_i32_1 = arith.constant 0 : i32
    %c0_i32_2 = arith.constant 0 : i32
    return %c0_i32, %c0_i32_0, %c0_i32_1 : i32, i32, i32
  }
  func.func @transform_11(%arg0: i32) -> (i32, i32, i32) {
    %c0_i32 = arith.constant 0 : i32
    %c0_i32_0 = arith.constant 0 : i32
    %c0_i32_1 = arith.constant 0 : i32
    %c0_i32_2 = arith.constant 0 : i32
    return %c0_i32, %c0_i32_0, %c0_i32_1 : i32, i32, i32
  }
  func.func @transform_12(%arg0: i32) -> (i32, i32, i32) {
    %c0_i32 = arith.constant 0 : i32
    %c0_i32_0 = arith.constant 0 : i32
    %c0_i32_1 = arith.constant 0 : i32
    %c0_i32_2 = arith.constant 0 : i32
    return %c0_i32, %c0_i32_0, %c0_i32_1 : i32, i32, i32
  }
  func.func @transform_13(%arg0: i32) -> (i32, i32, i32) {
    %c0_i32 = arith.constant 0 : i32
    %c0_i32_0 = arith.constant 0 : i32
    %c0_i32_1 = arith.constant 0 : i32
    %c0_i32_2 = arith.constant 0 : i32
    return %c0_i32, %c0_i32_0, %c0_i32_1 : i32, i32, i32
  }
  func.func @transform_14(%arg0: i32) -> (i32, i32, i32) {
    %c0_i32 = arith.constant 0 : i32
    %c0_i32_0 = arith.constant 0 : i32
    %c0_i32_1 = arith.constant 0 : i32
    %c0_i32_2 = arith.constant 0 : i32
    return %c0_i32, %c0_i32_0, %c0_i32_1 : i32, i32, i32
  }
  func.func @transform_15(%arg0: i32) -> (i32, i32, i32) {
    %c0_i32 = arith.constant 0 : i32
    %c0_i32_0 = arith.constant 0 : i32
    %c0_i32_1 = arith.constant 0 : i32
    %c0_i32_2 = arith.constant 0 : i32
    return %c0_i32, %c0_i32_0, %c0_i32_1 : i32, i32, i32
  }
  func.func @transform_16(%arg0: i32) -> (i32, i32, i32) {
    %c0_i32 = arith.constant 0 : i32
    %c0_i32_0 = arith.constant 0 : i32
    %c0_i32_1 = arith.constant 0 : i32
    %c0_i32_2 = arith.constant 0 : i32
    return %c0_i32, %c0_i32_0, %c0_i32_1 : i32, i32, i32
  }
  func.func @transform_17(%arg0: i32) -> (i32, i32) {
    %c0_i32 = arith.constant 0 : i32
    %c0_i32_0 = arith.constant 0 : i32
    %c0_i32_1 = arith.constant 0 : i32
    return %c0_i32, %c0_i32_0 : i32, i32
  }
}

</mosaic_0001>

<llo_original>
// kernel: branch_encoder_forward.1
$region0: #{branch_encoder_forward.1}
  #allocation0 [shape = 'u32[]', space=smem, size = 0x4, offset = 0x4, fixed_abs, tag = 'smem constant byte address 0x4 - core index']
  #allocation1 [shape = 'u32[144,128]{1,0:T(1,128)}', space=vmem, size = 0x12000, scoped, tag = 'internal scratch']
  #allocation2 [shape = 'f32[16,32]{1,0:T(8,128)}', space=vmem, size = 0x2000, scoped, tag = 'scratch operand']
  %s0 = inlined_call_operand.vmem [shape: f32[16,32], index: 0, kind: input, shape index: {}]
  %s1 = inlined_call_operand.vmem [shape: f32[2,8], index: 1, kind: input, shape index: {}]
  %s2 = inlined_call_operand.vmem [shape: f32[16,1], index: 2, kind: input, shape index: {}]
  %s3 = inlined_call_operand.vmem [shape: f32[2,32,32], index: 3, kind: input, shape index: {}]
  %s4 = inlined_call_operand.vmem [shape: f32[2,1,32], index: 4, kind: input, shape index: {}]
  %s5 = inlined_call_operand.vmem [shape: f32[2,32,96], index: 5, kind: input, shape index: {}]
  %s6 = inlined_call_operand.vmem [shape: f32[2,1,96], index: 6, kind: input, shape index: {}]
  %s7 = inlined_call_operand.vmem [shape: f32[2,32,32], index: 7, kind: input, shape index: {}]
  %s8 = inlined_call_operand.vmem [shape: f32[2,1,32], index: 8, kind: input, shape index: {}]
  %s9 = inlined_call_operand.vmem [shape: f32[2,1,32], index: 9, kind: input, shape index: {}]
  %s10 = inlined_call_operand.vmem [shape: f32[2,1,32], index: 10, kind: input, shape index: {}]
  %s11 = inlined_call_operand.hbm [shape: f32[2,32,64], index: 11, kind: input, shape index: {}]
  %s12 = inlined_call_operand.vmem [shape: f32[2,1,64], index: 12, kind: input, shape index: {}]
  %s13 = inlined_call_operand.vmem [shape: f32[2,64,32], index: 13, kind: input, shape index: {}]
  %s14 = inlined_call_operand.vmem [shape: f32[2,1,32], index: 14, kind: input, shape index: {}]
  %s15 = inlined_call_operand.vmem [shape: f32[2,1,32], index: 15, kind: input, shape index: {}]
  %s16 = inlined_call_operand.vmem [shape: f32[2,1,32], index: 16, kind: input, shape index: {}]
  %s17 = inlined_call_operand.vmem [shape: f32[16,32], index: 17, kind: output, shape index: {}]
  %s18 = sld [smem:[#allocation0]]
  $region82: #{branch_encoder_forward.1} parent=0
    _
  %s20 = ssub.s32 1, %s18
  %s21 = scalar_select 0, %s20, %s18
  $region1: #{branch_encoder_forward.1} parent=0
    #allocation3 [shape = 'u8[32768]{0}', space=vmem, size = 0x8000, scoped, tag = 'input window, operand 11, single buffered']
    #allocation4 [shape = 's32[1]{0}', space=sflag, size = 0x4, scoped, tag = 'scoped memory for branch_encoder_forward.1']
    %22 = vsyncpa [#allocation4], 0
    // Predicated region
    $region2: #{branch_encoder_forward.1} parent=1 // pred_check
      _
    $region3: #{branch_encoder_forward.1} parent=1 // pred_check_branch
      %24 = sbr.rel (0) target = $region5
    $region4: #{branch_encoder_forward.1} parent=1 // pred_region
      _
    $region5: #{branch_encoder_forward.1} parent=1 // pred_fallthru
      _
    // Predicated region
    $region6: #{branch_encoder_forward.1} parent=1 // pred_check
      _
    $region7: #{branch_encoder_forward.1} parent=1 // pred_check_branch
      %26 = sbr.rel (0) target = $region9
    $region8: #{branch_encoder_forward.1} parent=1 // pred_region
      _
    $region9: #{branch_encoder_forward.1} parent=1 // pred_fallthru
      _
    // Predicated region
    $region10: #{branch_encoder_forward.1} parent=1 // pred_check
      _
    $region11: #{branch_encoder_forward.1} parent=1 // pred_check_branch
      %28 = sbr.rel (0) target = $region13
    $region12: #{branch_encoder_forward.1} parent=1 // pred_region
      _
    $region13: #{branch_encoder_forward.1} parent=1 // pred_fallthru
      _
    // Predicated region
    $region14: #{branch_encoder_forward.1} parent=1 // pred_check
      _
    $region15: #{branch_encoder_forward.1} parent=1 // pred_check_branch
      %30 = sbr.rel (0) target = $region17
    $region16: #{branch_encoder_forward.1} parent=1 // pred_region
      _
    $region17: #{branch_encoder_forward.1} parent=1 // pred_fallthru
      _
    // Predicated region
    $region18: #{branch_encoder_forward.1} parent=1 // pred_check
      _
    $region19: #{branch_encoder_forward.1} parent=1 // pred_check_branch
      %32 = sbr.rel (0) target = $region21
    $region20: #{branch_encoder_forward.1} parent=1 // pred_region
      _
    $region21: #{branch_encoder_forward.1} parent=1 // pred_fallthru
      _
    // Predicated region
    $region22: #{branch_encoder_forward.1} parent=1 // pred_check
      _
    $region23: #{branch_encoder_forward.1} parent=1 // pred_check_branch
      %34 = sbr.rel (0) target = $region25
    $region24: #{branch_encoder_forward.1} parent=1 // pred_region
      _
    $region25: #{branch_encoder_forward.1} parent=1 // pred_fallthru
      _
    // Predicated region
    $region26: #{branch_encoder_forward.1} parent=1 // pred_check
      _
    $region27: #{branch_encoder_forward.1} parent=1 // pred_check_branch
      %36 = sbr.rel (0) target = $region29
    $region28: #{branch_encoder_forward.1} parent=1 // pred_region
      _
    $region29: #{branch_encoder_forward.1} parent=1 // pred_fallthru
      _
    // Predicated region
    $region30: #{branch_encoder_forward.1} parent=1 // pred_check
      _
    $region31: #{branch_encoder_forward.1} parent=1 // pred_check_branch
      %38 = sbr.rel (0) target = $region33
    $region32: #{branch_encoder_forward.1} parent=1 // pred_region
      _
    $region33: #{branch_encoder_forward.1} parent=1 // pred_fallthru
      _
    // Predicated region
    $region34: #{branch_encoder_forward.1} parent=1 // pred_check
      _
    $region35: #{branch_encoder_forward.1} parent=1 // pred_check_branch
      %40 = sbr.rel (0) target = $region37
    $region36: #{branch_encoder_forward.1} parent=1 // pred_region
      _
    $region37: #{branch_encoder_forward.1} parent=1 // pred_fallthru
      _
    // Predicated region
    $region38: #{branch_encoder_forward.1} parent=1 // pred_check
      _
    $region39: #{branch_encoder_forward.1} parent=1 // pred_check_branch
      %42 = sbr.rel (0) target = $region41
    $region40: #{branch_encoder_forward.1} parent=1 // pred_region
      _
    $region41: #{branch_encoder_forward.1} parent=1 // pred_fallthru
      _
    // Predicated region
    $region42: #{branch_encoder_forward.1} parent=1 // pred_check
      _
    $region43: #{branch_encoder_forward.1} parent=1 // pred_check_branch
      %44 = sbr.rel (0) target = $region45
    $region44: #{branch_encoder_forward.1} parent=1 // pred_region
      _
    $region45: #{branch_encoder_forward.1} parent=1 // pred_fallthru
      _
    // Predicated region
    $region46: #{branch_encoder_forward.1} parent=1 // pred_check
      _
    $region47: #{branch_encoder_forward.1} parent=1 // pred_check_branch
      %46 = sbr.rel (0) target = $region49
    $region48: #{branch_encoder_forward.1} parent=1 // pred_region
      %s48 = ssub.s32 1024, 1024
      %49 = vsyncadd [#allocation4], %s48
      %s50 = sshll.u32 [#allocation3], 4
      %s51 = int_to_ptr.vmem [resolvable:$true] %s50
      %56 = dma.hbm_to_vmem [thread:$0]  %s11, 1024, %s51, [#allocation4], 128, 128, 8
    $region49: #{branch_encoder_forward.1} parent=1 // pred_fallthru
      _
    // Predicated region
    $region50: #{branch_encoder_forward.1} parent=1 // pred_check
      _
    $region51: #{branch_encoder_forward.1} parent=1 // pred_check_branch
      %58 = sbr.rel (0) target = $region53
    $region52: #{branch_encoder_forward.1} parent=1 // pred_region
      _
    $region53: #{branch_encoder_forward.1} parent=1 // pred_fallthru
      _
    // Predicated region
    $region54: #{branch_encoder_forward.1} parent=1 // pred_check
      _
    $region55: #{branch_encoder_forward.1} parent=1 // pred_check_branch
      %60 = sbr.rel (0) target = $region57
    $region56: #{branch_encoder_forward.1} parent=1 // pred_region
      _
    $region57: #{branch_encoder_forward.1} parent=1 // pred_fallthru
      _
    // Predicated region
    $region58: #{branch_encoder_forward.1} parent=1 // pred_check
      _
    $region59: #{branch_encoder_forward.1} parent=1 // pred_check_branch
      %62 = sbr.rel (0) target = $region61
    $region60: #{branch_encoder_forward.1} parent=1 // pred_region
      _
    $region61: #{branch_encoder_forward.1} parent=1 // pred_fallthru
      _
    // Predicated region
    $region62: #{branch_encoder_forward.1} parent=1 // pred_check
      _
    $region63: #{branch_encoder_forward.1} parent=1 // pred_check_branch
      %64 = sbr.rel (0) target = $region65
    $region64: #{branch_encoder_forward.1} parent=1 // pred_region
      _
    $region65: #{branch_encoder_forward.1} parent=1 // pred_fallthru
      _
    // Predicated region
    $region66: #{branch_encoder_forward.1} parent=1 // pred_check
      _
    $region67: #{branch_encoder_forward.1} parent=1 // pred_check_branch
      %66 = sbr.rel (0) target = $region69
    $region68: #{branch_encoder_forward.1} parent=1 // pred_region
      _
    $region69: #{branch_encoder_forward.1} parent=1 // pred_fallthru
      _
    // Predicated region
    $region70: #{branch_encoder_forward.1} parent=1 // pred_check
      _
    $region71: #{branch_encoder_forward.1} parent=1 // pred_check_branch
      %68 = sbr.rel (0) target = $region73
    $region72: #{branch_encoder_forward.1} parent=1 // pred_region
      %69 = dma.done [#allocation4], 1024
    $region73: #{branch_encoder_forward.1} parent=1 // pred_fallthru
      _
    %v70 = vld [vmem:[%s0] sm:$0xff]
    %v71 = vld [vmem:[%s0 + $0x8] sm:$0xff]
    %v72 = vld [vmem:[%s2] sm:$0xff]
    %v73 = vld [vmem:[%s2 + $0x8] sm:$0xff]
    %v74 = vld [vmem:[%s1] sm:$0x3]
    %v75 = vld [vmem:[%s3] sm:$0xff]
    %v76 = vld [vmem:[%s3 + $0x8] sm:$0xff]
    %v77 = vld [vmem:[%s3 + $0x10] sm:$0xff]
    %v78 = vld [vmem:[%s3 + $0x18] sm:$0xff]
    %v79 = vld [vmem:[%s4] sm:$0x1]
    %v81 = vlaneseq
    %v82 = vshrl.u32 %v81, 7
    %v83 = vsub.s32 0, %v82
    %v84 = vrot.slane %v79, %v83
    %vm86 = vcmask 261120
    %v88 = vsel %vm86, %v70, 0
    %v91 = vsel %vm86, %v71, 0
    %93 = vmatprep.subr.mxu0 0.0
    %94 = vmatpush1.msra.mxu0 %v75
    %95 = vmatprep.subr.mxu0 0.0
    %96 = vmatpush1.msra.mxu0 %v76
    %97 = vmatprep.subr.mxu0 0.0
    %98 = vmatpush1.msra.mxu0 %v77
    %99 = vmatprep.subr.mxu0 0.0
    %100 = vmatpush1.msra.mxu0 %v78
    %101 = vmatprep.subr.mxu0 0.0
    %102 = vmatpush1.msra.mxu0 0.0
    %103 = vmatprep.subr.mxu0 0.0
    %104 = vmatpush1.msra.mxu0 0.0
    %105 = vmatprep.subr.mxu0 0.0
    %106 = vmatpush1.msra.mxu0 0.0
    %107 = vmatprep.subr.mxu0 0.0
    %108 = vmatpush1.msra.mxu0 0.0
    %109 = vmatprep.subr.mxu0 0.0
    %110 = vmatpush1.msra.mxu0 0.0
    %111 = vmatprep.subr.mxu0 0.0
    %112 = vmatpush1.msra.mxu0 0.0
    %113 = vmatprep.subr.mxu0 0.0
    %114 = vmatpush1.msra.mxu0 0.0
    %115 = vmatprep.subr.mxu0 0.0
    %116 = vmatpush1.msra.mxu0 0.0
    %117 = vmatprep.subr.mxu0 0.0
    %118 = vmatpush1.msra.mxu0 0.0
    %119 = vmatprep.subr.mxu0 0.0
    %120 = vmatpush1.msra.mxu0 0.0
    %121 = vmatprep.subr.mxu0 0.0
    %122 = vmatpush1.msra.mxu0 0.0
    %123 = vmatprep.subr.mxu0 0.0
    %124 = vmatpush1.msra.mxu0 0.0
    %125 = vmatprep.subr.mxu0 0.0
    %126 = vmatpush1.msra.mxu0 0.0
    %127 = vmatprep.subr.mxu0 0.0
    %128 = vmatpush1.msra.mxu0 0.0
    %129 = vmatprep.subr.mxu0 0.0
    %130 = vmatpush1.msra.mxu0 0.0
    %131 = vmatprep.subr.mxu0 0.0
    %132 = vmatpush1.msra.mxu0 0.0
    %133 = vmatprep.subr.mxu0 0.0
    %134 = vmatpush1.msra.mxu0 0.0
    %135 = vmatprep.subr.mxu0 0.0
    %136 = vmatpush1.msra.mxu0 0.0
    %137 = vmatprep.subr.mxu0 0.0
    %138 = vmatpush1.msra.mxu0 0.0
    %139 = vmatprep.subr.mxu0 0.0
    %140 = vmatpush1.msra.mxu0 0.0
    %141 = vmatprep.subr.mxu0 0.0
    %142 = vmatpush1.msra.mxu0 0.0
    %143 = vmatprep.subr.mxu0 0.0
    %144 = vmatpush1.msra.mxu0 0.0
    %145 = vmatprep.subr.mxu0 0.0
    %146 = vmatpush1.msra.mxu0 0.0
    %147 = vmatprep.subr.mxu0 0.0
    %148 = vmatpush1.msra.mxu0 0.0
    %149 = vmatprep.subr.mxu0 0.0
    %150 = vmatpush1.msra.mxu0 0.0
    %151 = vmatprep.subr.mxu0 0.0
    %152 = vmatpush1.msra.mxu0 0.0
    %153 = vmatprep.subr.mxu0 0.0
    %154 = vmatpush1.msra.mxu0 0.0
    %155 = vmatprep.subr.mxu0 0.0
    %156 = vmatpush1.msra.mxu0 0.0
    %157 = vmatprep.mubr.f32.mxu0 0.0
    %158 = vmatmul.mubr.f32.gmra.mrb[0].mxu0 %v88
    %v159 = vpop.f32.mrb[0].mxu0
    %v160 = vadd.f32 %v84, %v159
    %v161 = vpop.f32.mrb[0].mxu0
    %162 = vmatprep.mubr.f32.mxu0 0.0
    %163 = vmatmul.mubr.f32.gmra.mrb[0].mxu0 %v91
    %v164 = vpop.f32.mrb[0].mxu0
    %v165 = vadd.f32 %v84, %v164
    %v166 = vpop.f32.mrb[0].mxu0
    %167 = vdwg.mxu0
    %v168 = vmax.f32 %v160, 0.0
    %v169 = vmax.f32 %v165, 0.0
    %s170 = scalar_lea.vmem %s3, 32
    %v171 = vld [vmem:[%s170] sm:$0xff]
    %v172 = vld [vmem:[%s170 + $0x8] sm:$0xff]
    %v173 = vld [vmem:[%s170 + $0x10] sm:$0xff]
    %v174 = vld [vmem:[%s170 + $0x18] sm:$0xff]
    %s175 = scalar_lea.vmem %s4, 1
    %v176 = vld [vmem:[%s175] sm:$0x1]
    %v178 = vlaneseq
    %v179 = vshrl.u32 %v178, 7
    %v180 = vsub.s32 0, %v179
    %v181 = vrot.slane %v176, %v180
    %v184 = vsel %vm86, %v168, 0
    %v187 = vsel %vm86, %v169, 0
    %189 = vmatprep.subr.mxu0 0.0
    %190 = vmatpush1.msra.mxu0 %v171
    %191 = vmatprep.subr.mxu0 0.0
    %192 = vmatpush1.msra.mxu0 %v172
    %193 = vmatprep.subr.mxu0 0.0
    %194 = vmatpush1.msra.mxu0 %v173
    %195 = vmatprep.subr.mxu0 0.0
    %196 = vmatpush1.msra.mxu0 %v174
    %197 = vmatprep.subr.mxu0 0.0
    %198 = vmatpush1.msra.mxu0 0.0
    %199 = vmatprep.subr.mxu0 0.0
    %200 = vmatpush1.msra.mxu0 0.0
    %201 = vmatprep.subr.mxu0 0.0
    %202 = vmatpush1.msra.mxu0 0.0
    %203 = vmatprep.subr.mxu0 0.0
    %204 = vmatpush1.msra.mxu0 0.0
    %205 = vmatprep.subr.mxu0 0.0
    %206 = vmatpush1.msra.mxu0 0.0
    %207 = vmatprep.subr.mxu0 0.0
    %208 = vmatpush1.msra.mxu0 0.0
    %209 = vmatprep.subr.mxu0 0.0
    %210 = vmatpush1.msra.mxu0 0.0
    %211 = vmatprep.subr.mxu0 0.0
    %212 = vmatpush1.msra.mxu0 0.0
    %213 = vmatprep.subr.mxu0 0.0
    %214 = vmatpush1.msra.mxu0 0.0
    %215 = vmatprep.subr.mxu0 0.0
    %216 = vmatpush1.msra.mxu0 0.0
    %217 = vmatprep.subr.mxu0 0.0
    %218 = vmatpush1.msra.mxu0 0.0
    %219 = vmatprep.subr.mxu0 0.0
    %220 = vmatpush1.msra.mxu0 0.0
    %221 = vmatprep.subr.mxu0 0.0
    %222 = vmatpush1.msra.mxu0 0.0
    %223 = vmatprep.subr.mxu0 0.0
    %224 = vmatpush1.msra.mxu0 0.0
    %225 = vmatprep.subr.mxu0 0.0
    %226 = vmatpush1.msra.mxu0 0.0
    %227 = vmatprep.subr.mxu0 0.0
    %228 = vmatpush1.msra.mxu0 0.0
    %229 = vmatprep.subr.mxu0 0.0
    %230 = vmatpush1.msra.mxu0 0.0
    %231 = vmatprep.subr.mxu0 0.0
    %232 = vmatpush1.msra.mxu0 0.0
    %233 = vmatprep.subr.mxu0 0.0
    %234 = vmatpush1.msra.mxu0 0.0
    %235 = vmatprep.subr.mxu0 0.0
    %236 = vmatpush1.msra.mxu0 0.0
    %237 = vmatprep.subr.mxu0 0.0
    %238 = vmatpush1.msra.mxu0 0.0
    %239 = vmatprep.subr.mxu0 0.0
    %240 = vmatpush1.msra.mxu0 0.0
    %241 = vmatprep.subr.mxu0 0.0
    %242 = vmatpush1.msra.mxu0 0.0
    %243 = vmatprep.subr.mxu0 0.0
    %244 = vmatpush1.msra.mxu0 0.0
    %245 = vmatprep.subr.mxu0 0.0
    %246 = vmatpush1.msra.mxu0 0.0
    %247 = vmatprep.subr.mxu0 0.0
    %248 = vmatpush1.msra.mxu0 0.0
    %249 = vmatprep.subr.mxu0 0.0
    %250 = vmatpush1.msra.mxu0 0.0
    %251 = vmatprep.subr.mxu0 0.0
    %252 = vmatpush1.msra.mxu0 0.0
    %253 = vmatprep.mubr.f32.mxu0 0.0
    %254 = vmatmul.mubr.f32.gmra.mrb[0].mxu0 %v184
    %v255 = vpop.f32.mrb[0].mxu0
    %v256 = vadd.f32 %v181, %v255
    %v257 = vpop.f32.mrb[0].mxu0
    %258 = vmatprep.mubr.f32.mxu0 0.0
    %259 = vmatmul.mubr.f32.gmra.mrb[0].mxu0 %v187
    %v260 = vpop.f32.mrb[0].mxu0
    %v261 = vadd.f32 %v181, %v260
    %v262 = vpop.f32.mrb[0].mxu0
    %263 = vdwg.mxu0
    %v264 = vmax.f32 %v256, 0.0
    %v265 = vmax.f32 %v261, 0.0
    %267 = vset.pattern.permute.xlu0 0
    %268 = vperm.xlu0 %267, %v72
    %v269 = vpop.permute.xlu0 %268
    %272 = vset.pattern.permute.xlu0 0
    %273 = vperm.xlu0 %272, %v73
    %v274 = vpop.permute.xlu0 %273
    %v276 = vmul.f32 %v264, %v269
    %v277 = vmul.f32 %v265, %v274
    %v278 = vmul.f32 %v74, -1e+09
    %v279 = vld [vmem:[%s5] sm:$0xff]
    %v280 = vld [vmem:[%s5 + $0x8] sm:$0xff]
    %v281 = vld [vmem:[%s5 + $0x10] sm:$0xff]
    %v282 = vld [vmem:[%s5 + $0x18] sm:$0xff]
    %v283 = vld [vmem:[%s6] sm:$0x1]
    %v285 = vlaneseq
    %v286 = vshrl.u32 %v285, 7
    %v287 = vsub.s32 0, %v286
    %v288 = vrot.slane %v283, %v287
    %v291 = vsel %vm86, %v276, 0
    %v294 = vsel %vm86, %v277, 0
    %296 = vmatprep.subr.mxu0 0.0
    %297 = vmatpush1.msra.mxu0 %v279
    %298 = vmatprep.subr.mxu0 0.0
    %299 = vmatpush1.msra.mxu0 %v280
    %300 = vmatprep.subr.mxu0 0.0
    %301 = vmatpush1.msra.mxu0 %v281
    %302 = vmatprep.subr.mxu0 0.0
    %303 = vmatpush1.msra.mxu0 %v282
    %304 = vmatprep.subr.mxu0 0.0
    %305 = vmatpush1.msra.mxu0 0.0
    %306 = vmatprep.subr.mxu0 0.0
    %307 = vmatpush1.msra.mxu0 0.0
    %308 = vmatprep.subr.mxu0 0.0
    %309 = vmatpush1.msra.mxu0 0.0
    %310 = vmatprep.subr.mxu0 0.0
    %311 = vmatpush1.msra.mxu0 0.0
    %312 = vmatprep.subr.mxu0 0.0
    %313 = vmatpush1.msra.mxu0 0.0
    %314 = vmatprep.subr.mxu0 0.0
    %315 = vmatpush1.msra.mxu0 0.0
    %316 = vmatprep.subr.mxu0 0.0
    %317 = vmatpush1.msra.mxu0 0.0
    %318 = vmatprep.subr.mxu0 0.0
    %319 = vmatpush1.msra.mxu0 0.0
    %320 = vmatprep.subr.mxu0 0.0
    %321 = vmatpush1.msra.mxu0 0.0
    %322 = vmatprep.subr.mxu0 0.0
    %323 = vmatpush1.msra.mxu0 0.0
    %324 = vmatprep.subr.mxu0 0.0
    %325 = vmatpush1.msra.mxu0 0.0
    %326 = vmatprep.subr.mxu0 0.0
    %327 = vmatpush1.msra.mxu0 0.0
    %328 = vmatprep.subr.mxu0 0.0
    %329 = vmatpush1.msra.mxu0 0.0
    %330 = vmatprep.subr.mxu0 0.0
    %331 = vmatpush1.msra.mxu0 0.0
    %332 = vmatprep.subr.mxu0 0.0
    %333 = vmatpush1.msra.mxu0 0.0
    %334 = vmatprep.subr.mxu0 0.0
    %335 = vmatpush1.msra.mxu0 0.0
    %336 = vmatprep.subr.mxu0 0.0
    %337 = vmatpush1.msra.mxu0 0.0
    %338 = vmatprep.subr.mxu0 0.0
    %339 = vmatpush1.msra.mxu0 0.0
    %340 = vmatprep.subr.mxu0 0.0
    %341 = vmatpush1.msra.mxu0 0.0
    %342 = vmatprep.subr.mxu0 0.0
    %343 = vmatpush1.msra.mxu0 0.0
    %344 = vmatprep.subr.mxu0 0.0
    %345 = vmatpush1.msra.mxu0 0.0
    %346 = vmatprep.subr.mxu0 0.0
    %347 = vmatpush1.msra.mxu0 0.0
    %348 = vmatprep.subr.mxu0 0.0
    %349 = vmatpush1.msra.mxu0 0.0
    %350 = vmatprep.subr.mxu0 0.0
    %351 = vmatpush1.msra.mxu0 0.0
    %352 = vmatprep.subr.mxu0 0.0
    %353 = vmatpush1.msra.mxu0 0.0
    %354 = vmatprep.subr.mxu0 0.0
    %355 = vmatpush1.msra.mxu0 0.0
    %356 = vmatprep.subr.mxu0 0.0
    %357 = vmatpush1.msra.mxu0 0.0
    %358 = vmatprep.subr.mxu0 0.0
    %359 = vmatpush1.msra.mxu0 0.0
    %360 = vmatprep.mubr.f32.mxu0 0.0
    %361 = vmatmul.mubr.f32.gmra.mrb[0].mxu0 %v291
    %v362 = vpop.f32.mrb[0].mxu0
    %v363 = vadd.f32 %v288, %v362
    %v364 = vpop.f32.mrb[0].mxu0
    %365 = vmatprep.mubr.f32.mxu0 0.0
    %366 = vmatmul.mubr.f32.gmra.mrb[0].mxu0 %v294
    %v367 = vpop.f32.mrb[0].mxu0
    %v368 = vadd.f32 %v288, %v367
    %v369 = vpop.f32.mrb[0].mxu0
    %370 = vdwg.mxu0
    %372 = vrot.lane.b32.xlu0 %v363, 96
    %v373 = vpop.permute.xlu0 %372
    %vm374 = vcmask 64512
    %v375 = vsel %vm374, %v363, 0
    %v377 = vsel %vm374, %v373, 0
    %379 = vmatprep.subr.mxu0 0.0
    %380 = vmatpush1.xpose.msra.mxu0 %v377
    %381 = vmatprep.subr.mxu0 0.0
    %382 = vmatpush1.xpose.msra.mxu0 0.0
    %383 = vmatprep.subr.mxu0 0.0
    %384 = vmatpush1.xpose.msra.mxu0 0.0
    %385 = vmatprep.subr.mxu0 0.0
    %386 = vmatpush1.xpose.msra.mxu0 0.0
    %387 = vmatprep.subr.mxu0 0.0
    %388 = vmatpush1.xpose.msra.mxu0 0.0
    %389 = vmatprep.subr.mxu0 0.0
    %390 = vmatpush1.xpose.msra.mxu0 0.0
    %391 = vmatprep.subr.mxu0 0.0
    %392 = vmatpush1.xpose.msra.mxu0 0.0
    %393 = vmatprep.subr.mxu0 0.0
    %394 = vmatpush1.xpose.msra.mxu0 0.0
    %395 = vmatprep.subr.mxu0 0.0
    %396 = vmatpush1.xpose.msra.mxu0 0.0
    %397 = vmatprep.subr.mxu0 0.0
    %398 = vmatpush1.xpose.msra.mxu0 0.0
    %399 = vmatprep.subr.mxu0 0.0
    %400 = vmatpush1.xpose.msra.mxu0 0.0
    %401 = vmatprep.subr.mxu0 0.0
    %402 = vmatpush1.xpose.msra.mxu0 0.0
    %403 = vmatprep.subr.mxu0 0.0
    %404 = vmatpush1.xpose.msra.mxu0 0.0
    %405 = vmatprep.subr.mxu0 0.0
    %406 = vmatpush1.xpose.msra.mxu0 0.0
    %407 = vmatprep.subr.mxu0 0.0
    %408 = vmatpush1.xpose.msra.mxu0 0.0
    %409 = vmatprep.subr.mxu0 0.0
    %410 = vmatpush1.xpose.msra.mxu0 0.0
    %411 = vmatprep.subr.mxu0 0.0
    %412 = vmatpush1.xpose.msra.mxu0 0.0
    %413 = vmatprep.subr.mxu0 0.0
    %414 = vmatpush1.xpose.msra.mxu0 0.0
    %415 = vmatprep.subr.mxu0 0.0
    %416 = vmatpush1.xpose.msra.mxu0 0.0
    %417 = vmatprep.subr.mxu0 0.0
    %418 = vmatpush1.xpose.msra.mxu0 0.0
    %419 = vmatprep.subr.mxu0 0.0
    %420 = vmatpush1.xpose.msra.mxu0 0.0
    %421 = vmatprep.subr.mxu0 0.0
    %422 = vmatpush1.xpose.msra.mxu0 0.0
    %423 = vmatprep.subr.mxu0 0.0
    %424 = vmatpush1.xpose.msra.mxu0 0.0
    %425 = vmatprep.subr.mxu0 0.0
    %426 = vmatpush1.xpose.msra.mxu0 0.0
    %427 = vmatprep.subr.mxu0 0.0
    %428 = vmatpush1.xpose.msra.mxu0 0.0
    %429 = vmatprep.subr.mxu0 0.0
    %430 = vmatpush1.xpose.msra.mxu0 0.0
    %431 = vmatprep.subr.mxu0 0.0
    %432 = vmatpush1.xpose.msra.mxu0 0.0
    %433 = vmatprep.subr.mxu0 0.0
    %434 = vmatpush1.xpose.msra.mxu0 0.0
    %435 = vmatprep.subr.mxu0 0.0
    %436 = vmatpush1.xpose.msra.mxu0 0.0
    %437 = vmatprep.subr.mxu0 0.0
    %438 = vmatpush1.xpose.msra.mxu0 0.0
    %439 = vmatprep.subr.mxu0 0.0
    %440 = vmatpush1.xpose.msra.mxu0 0.0
    %441 = vmatprep.subr.mxu0 0.0
    %442 = vmatpush1.xpose.msra.mxu0 0.0
    %443 = vmatprep.mubr.f32.mxu0 0.0
    %444 = vmatmul.mubr.f32.gmra.mrb[0].mxu0 %v375
    %v445 = vpop.f32.mrb[0].mxu0
    %v446 = vadd.f32 0.0, %v445
    %v447 = vpop.f32.mrb[0].mxu0
    %448 = vdwg.mxu0
    %v449 = vmul.f32 %v446, 0.35355338
    %v450 = vlaneseq
    %v451 = vshrl.u32 %v450, 7
    %v452 = vsub.s32 0, %v451
    %v453 = vrot.slane %v278, %v452
    %v454 = vadd.f32 %v449, %v453
    %v455 = vsel %vm374, %v454, -inf
    %456 = vmax.xlane.f32.xlu0 %v455
    %v457 = vpop.xlane.xlu0 %456
    %v458 = vsub.f32 %v454, %v457
    %v459 = vmul.f32 %v458, 1.442695
    %v460 = vpow.pop %v459
    %v461 = vsel %vm374, %v460, 0.0
    %462 = vadd.xlane.f32.xlu0 %v461
    %v463 = vpop.xlane.xlu0 %462
    %v464 = vmax.f32 %v463, 1e-30
    %v465 = vrcp.pop %v464
    %v466 = vmul.f32 %v460, %v465
    %467 = vrot.lane.b32.xlu0 %v363, 64
    %v468 = vpop.permute.xlu0 %467
    %v471 = vsel %vm374, %v466, 0
    %473 = vmatprep.subr.mxu0 0.0
    %474 = vmatpush1.msra.mxu0 %v468
    %475 = vmatprep.subr.mxu0 0.0
    %476 = vmatpush1.msra.mxu0 0.0
    %477 = vmatprep.subr.mxu0 0.0
    %478 = vmatpush1.msra.mxu0 0.0
    %479 = vmatprep.subr.mxu0 0.0
    %480 = vmatpush1.msra.mxu0 0.0
    %481 = vmatprep.subr.mxu0 0.0
    %482 = vmatpush1.msra.mxu0 0.0
    %483 = vmatprep.subr.mxu0 0.0
    %484 = vmatpush1.msra.mxu0 0.0
    %485 = vmatprep.subr.mxu0 0.0
    %486 = vmatpush1.msra.mxu0 0.0
    %487 = vmatprep.subr.mxu0 0.0
    %488 = vmatpush1.msra.mxu0 0.0
    %489 = vmatprep.subr.mxu0 0.0
    %490 = vmatpush1.msra.mxu0 0.0
    %491 = vmatprep.subr.mxu0 0.0
    %492 = vmatpush1.msra.mxu0 0.0
    %493 = vmatprep.subr.mxu0 0.0
    %494 = vmatpush1.msra.mxu0 0.0
    %495 = vmatprep.subr.mxu0 0.0
    %496 = vmatpush1.msra.mxu0 0.0
    %497 = vmatprep.subr.mxu0 0.0
    %498 = vmatpush1.msra.mxu0 0.0
    %499 = vmatprep.subr.mxu0 0.0
    %500 = vmatpush1.msra.mxu0 0.0
    %501 = vmatprep.subr.mxu0 0.0
    %502 = vmatpush1.msra.mxu0 0.0
    %503 = vmatprep.subr.mxu0 0.0
    %504 = vmatpush1.msra.mxu0 0.0
    %505 = vmatprep.subr.mxu0 0.0
    %506 = vmatpush1.msra.mxu0 0.0
    %507 = vmatprep.subr.mxu0 0.0
    %508 = vmatpush1.msra.mxu0 0.0
    %509 = vmatprep.subr.mxu0 0.0
    %510 = vmatpush1.msra.mxu0 0.0
    %511 = vmatprep.subr.mxu0 0.0
    %512 = vmatpush1.msra.mxu0 0.0
    %513 = vmatprep.subr.mxu0 0.0
    %514 = vmatpush1.msra.mxu0 0.0
    %515 = vmatprep.subr.mxu0 0.0
    %516 = vmatpush1.msra.mxu0 0.0
    %517 = vmatprep.subr.mxu0 0.0
    %518 = vmatpush1.msra.mxu0 0.0
    %519 = vmatprep.subr.mxu0 0.0
    %520 = vmatpush1.msra.mxu0 0.0
    %521 = vmatprep.subr.mxu0 0.0
    %522 = vmatpush1.msra.mxu0 0.0
    %523 = vmatprep.subr.mxu0 0.0
    %524 = vmatpush1.msra.mxu0 0.0
    %525 = vmatprep.subr.mxu0 0.0
    %526 = vmatpush1.msra.mxu0 0.0
    %527 = vmatprep.subr.mxu0 0.0
    %528 = vmatpush1.msra.mxu0 0.0
    %529 = vmatprep.subr.mxu0 0.0
    %530 = vmatpush1.msra.mxu0 0.0
    %531 = vmatprep.subr.mxu0 0.0
    %532 = vmatpush1.msra.mxu0 0.0
    %533 = vmatprep.subr.mxu0 0.0
    %534 = vmatpush1.msra.mxu0 0.0
    %535 = vmatprep.subr.mxu0 0.0
    %536 = vmatpush1.msra.mxu0 0.0
    %537 = vmatprep.mubr.f32.mxu0 0.0
    %538 = vmatmul.mubr.f32.gmra.mrb[0].mxu0 %v471
    %v539 = vpop.f32.mrb[0].mxu0
    %v540 = vadd.f32 0.0, %v539
    %v541 = vpop.f32.mrb[0].mxu0
    %542 = vdwg.mxu0
    %543 = vst.msk [vmem:[#allocation2] sm:$0xff] %vm374, %v540
    %544 = vrot.lane.b32.xlu0 %v363, 120
    %v545 = vpop.permute.xlu0 %544
    %546 = vrot.lane.b32.xlu0 %v363, 88
    %v547 = vpop.permute.xlu0 %546
    %v548 = vsel %vm374, %v545, 0
    %v550 = vsel %vm374, %v547, 0
    %552 = vmatprep.subr.mxu0 0.0
    %553 = vmatpush1.xpose.msra.mxu0 %v550
    %554 = vmatprep.subr.mxu0 0.0
    %555 = vmatpush1.xpose.msra.mxu0 0.0
    %556 = vmatprep.subr.mxu0 0.0
    %557 = vmatpush1.xpose.msra.mxu0 0.0
    %558 = vmatprep.subr.mxu0 0.0
    %559 = vmatpush1.xpose.msra.mxu0 0.0
    %560 = vmatprep.subr.mxu0 0.0
    %561 = vmatpush1.xpose.msra.mxu0 0.0
    %562 = vmatprep.subr.mxu0 0.0
    %563 = vmatpush1.xpose.msra.mxu0 0.0
    %564 = vmatprep.subr.mxu0 0.0
    %565 = vmatpush1.xpose.msra.mxu0 0.0
    %566 = vmatprep.subr.mxu0 0.0
    %567 = vmatpush1.xpose.msra.mxu0 0.0
    %568 = vmatprep.subr.mxu0 0.0
    %569 = vmatpush1.xpose.msra.mxu0 0.0
    %570 = vmatprep.subr.mxu0 0.0
    %571 = vmatpush1.xpose.msra.mxu0 0.0
    %572 = vmatprep.subr.mxu0 0.0
    %573 = vmatpush1.xpose.msra.mxu0 0.0
    %574 = vmatprep.subr.mxu0 0.0
    %575 = vmatpush1.xpose.msra.mxu0 0.0
    %576 = vmatprep.subr.mxu0 0.0
    %577 = vmatpush1.xpose.msra.mxu0 0.0
    %578 = vmatprep.subr.mxu0 0.0
    %579 = vmatpush1.xpose.msra.mxu0 0.0
    %580 = vmatprep.subr.mxu0 0.0
    %581 = vmatpush1.xpose.msra.mxu0 0.0
    %582 = vmatprep.subr.mxu0 0.0
    %583 = vmatpush1.xpose.msra.mxu0 0.0
    %584 = vmatprep.subr.mxu0 0.0
    %585 = vmatpush1.xpose.msra.mxu0 0.0
    %586 = vmatprep.subr.mxu0 0.0
    %587 = vmatpush1.xpose.msra.mxu0 0.0
    %588 = vmatprep.subr.mxu0 0.0
    %589 = vmatpush1.xpose.msra.mxu0 0.0
    %590 = vmatprep.subr.mxu0 0.0
    %591 = vmatpush1.xpose.msra.mxu0 0.0
    %592 = vmatprep.subr.mxu0 0.0
    %593 = vmatpush1.xpose.msra.mxu0 0.0
    %594 = vmatprep.subr.mxu0 0.0
    %595 = vmatpush1.xpose.msra.mxu0 0.0
    %596 = vmatprep.subr.mxu0 0.0
    %597 = vmatpush1.xpose.msra.mxu0 0.0
    %598 = vmatprep.subr.mxu0 0.0
    %599 = vmatpush1.xpose.msra.mxu0 0.0
    %600 = vmatprep.subr.mxu0 0.0
    %601 = vmatpush1.xpose.msra.mxu0 0.0
    %602 = vmatprep.subr.mxu0 0.0
    %603 = vmatpush1.xpose.msra.mxu0 0.0
    %604 = vmatprep.subr.mxu0 0.0
    %605 = vmatpush1.xpose.msra.mxu0 0.0
    %606 = vmatprep.subr.mxu0 0.0
    %607 = vmatpush1.xpose.msra.mxu0 0.0
    %608 = vmatprep.subr.mxu0 0.0
    %609 = vmatpush1.xpose.msra.mxu0 0.0
    %610 = vmatprep.subr.mxu0 0.0
    %611 = vmatpush1.xpose.msra.mxu0 0.0
    %612 = vmatprep.subr.mxu0 0.0
    %613 = vmatpush1.xpose.msra.mxu0 0.0
    %614 = vmatprep.subr.mxu0 0.0
    %615 = vmatpush1.xpose.msra.mxu0 0.0
    %616 = vmatprep.mubr.f32.mxu0 0.0
    %617 = vmatmul.mubr.f32.gmra.mrb[0].mxu0 %v548
    %v618 = vpop.f32.mrb[0].mxu0
    %v619 = vadd.f32 0.0, %v618
    %v620 = vpop.f32.mrb[0].mxu0
    %621 = vdwg.mxu0
    %v622 = vmul.f32 %v619, 0.35355338
    %v623 = vadd.f32 %v622, %v453
    %v624 = vsel %vm374, %v623, -inf
    %625 = vmax.xlane.f32.xlu0 %v624
    %v626 = vpop.xlane.xlu0 %625
    %v627 = vsub.f32 %v623, %v626
    %v628 = vmul.f32 %v627, 1.442695
    %v629 = vpow.pop %v628
    %v630 = vsel %vm374, %v629, 0.0
    %631 = vadd.xlane.f32.xlu0 %v630
    %v632 = vpop.xlane.xlu0 %631
    %v633 = vmax.f32 %v632, 1e-30
    %v634 = vrcp.pop %v633
    %v635 = vmul.f32 %v629, %v634
    %636 = vrot.lane.b32.xlu0 %v363, 56
    %v637 = vpop.permute.xlu0 %636
    %v640 = vsel %vm374, %v635, 0
    %642 = vmatprep.subr.mxu0 0.0
    %643 = vmatpush1.msra.mxu0 %v637
    %644 = vmatprep.subr.mxu0 0.0
    %645 = vmatpush1.msra.mxu0 0.0
    %646 = vmatprep.subr.mxu0 0.0
    %647 = vmatpush1.msra.mxu0 0.0
    %648 = vmatprep.subr.mxu0 0.0
    %649 = vmatpush1.msra.mxu0 0.0
    %650 = vmatprep.subr.mxu0 0.0
    %651 = vmatpush1.msra.mxu0 0.0
    %652 = vmatprep.subr.mxu0 0.0
    %653 = vmatpush1.msra.mxu0 0.0
    %654 = vmatprep.subr.mxu0 0.0
    %655 = vmatpush1.msra.mxu0 0.0
    %656 = vmatprep.subr.mxu0 0.0
    %657 = vmatpush1.msra.mxu0 0.0
    %658 = vmatprep.subr.mxu0 0.0
    %659 = vmatpush1.msra.mxu0 0.0
    %660 = vmatprep.subr.mxu0 0.0
    %661 = vmatpush1.msra.mxu0 0.0
    %662 = vmatprep.subr.mxu0 0.0
    %663 = vmatpush1.msra.mxu0 0.0
    %664 = vmatprep.subr.mxu0 0.0
    %665 = vmatpush1.msra.mxu0 0.0
    %666 = vmatprep.subr.mxu0 0.0
    %667 = vmatpush1.msra.mxu0 0.0
    %668 = vmatprep.subr.mxu0 0.0
    %669 = vmatpush1.msra.mxu0 0.0
    %670 = vmatprep.subr.mxu0 0.0
    %671 = vmatpush1.msra.mxu0 0.0
    %672 = vmatprep.subr.mxu0 0.0
    %673 = vmatpush1.msra.mxu0 0.0
    %674 = vmatprep.subr.mxu0 0.0
    %675 = vmatpush1.msra.mxu0 0.0
    %676 = vmatprep.subr.mxu0 0.0
    %677 = vmatpush1.msra.mxu0 0.0
    %678 = vmatprep.subr.mxu0 0.0
    %679 = vmatpush1.msra.mxu0 0.0
    %680 = vmatprep.subr.mxu0 0.0
    %681 = vmatpush1.msra.mxu0 0.0
    %682 = vmatprep.subr.mxu0 0.0
    %683 = vmatpush1.msra.mxu0 0.0
    %684 = vmatprep.subr.mxu0 0.0
    %685 = vmatpush1.msra.mxu0 0.0
    %686 = vmatprep.subr.mxu0 0.0
    %687 = vmatpush1.msra.mxu0 0.0
    %688 = vmatprep.subr.mxu0 0.0
    %689 = vmatpush1.msra.mxu0 0.0
    %690 = vmatprep.subr.mxu0 0.0
    %691 = vmatpush1.msra.mxu0 0.0
    %692 = vmatprep.subr.mxu0 0.0
    %693 = vmatpush1.msra.mxu0 0.0
    %694 = vmatprep.subr.mxu0 0.0
    %695 = vmatpush1.msra.mxu0 0.0
    %696 = vmatprep.subr.mxu0 0.0
    %697 = vmatpush1.msra.mxu0 0.0
    %698 = vmatprep.subr.mxu0 0.0
    %699 = vmatpush1.msra.mxu0 0.0
    %700 = vmatprep.subr.mxu0 0.0
    %701 = vmatpush1.msra.mxu0 0.0
    %702 = vmatprep.subr.mxu0 0.0
    %703 = vmatpush1.msra.mxu0 0.0
    %704 = vmatprep.subr.mxu0 0.0
    %705 = vmatpush1.msra.mxu0 0.0
    %706 = vmatprep.mubr.f32.mxu0 0.0
    %707 = vmatmul.mubr.f32.gmra.mrb[0].mxu0 %v640
    %v708 = vpop.f32.mrb[0].mxu0
    %v709 = vadd.f32 0.0, %v708
    %v710 = vpop.f32.mrb[0].mxu0
    %711 = vdwg.mxu0
    %713 = vrot.lane.b32.xlu0 %v709, 8
    %v714 = vpop.permute.xlu0 %713
    %vm716 = vcmask 130112
    %717 = vst.msk [vmem:[#allocation2] sm:$0xff] %vm716, %v714
    %718 = vrot.lane.b32.xlu0 %v363, 112
    %v719 = vpop.permute.xlu0 %718
    %720 = vrot.lane.b32.xlu0 %v363, 80
    %v721 = vpop.permute.xlu0 %720
    %v722 = vsel %vm374, %v719, 0
    %v724 = vsel %vm374, %v721, 0
    %726 = vmatprep.subr.mxu0 0.0
    %727 = vmatpush1.xpose.msra.mxu0 %v724
    %728 = vmatprep.subr.mxu0 0.0
    %729 = vmatpush1.xpose.msra.mxu0 0.0
    %730 = vmatprep.subr.mxu0 0.0
    %731 = vmatpush1.xpose.msra.mxu0 0.0
    %732 = vmatprep.subr.mxu0 0.0
    %733 = vmatpush1.xpose.msra.mxu0 0.0
    %734 = vmatprep.subr.mxu0 0.0
    %735 = vmatpush1.xpose.msra.mxu0 0.0
    %736 = vmatprep.subr.mxu0 0.0
    %737 = vmatpush1.xpose.msra.mxu0 0.0
    %738 = vmatprep.subr.mxu0 0.0
    %739 = vmatpush1.xpose.msra.mxu0 0.0
    %740 = vmatprep.subr.mxu0 0.0
    %741 = vmatpush1.xpose.msra.mxu0 0.0
    %742 = vmatprep.subr.mxu0 0.0
    %743 = vmatpush1.xpose.msra.mxu0 0.0
    %744 = vmatprep.subr.mxu0 0.0
    %745 = vmatpush1.xpose.msra.mxu0 0.0
    %746 = vmatprep.subr.mxu0 0.0
    %747 = vmatpush1.xpose.msra.mxu0 0.0
    %748 = vmatprep.subr.mxu0 0.0
    %749 = vmatpush1.xpose.msra.mxu0 0.0
    %750 = vmatprep.subr.mxu0 0.0
    %751 = vmatpush1.xpose.msra.mxu0 0.0
    %752 = vmatprep.subr.mxu0 0.0
    %753 = vmatpush1.xpose.msra.mxu0 0.0
    %754 = vmatprep.subr.mxu0 0.0
    %755 = vmatpush1.xpose.msra.mxu0 0.0
    %756 = vmatprep.subr.mxu0 0.0
    %757 = vmatpush1.xpose.msra.mxu0 0.0
    %758 = vmatprep.subr.mxu0 0.0
    %759 = vmatpush1.xpose.msra.mxu0 0.0
    %760 = vmatprep.subr.mxu0 0.0
    %761 = vmatpush1.xpose.msra.mxu0 0.0
    %762 = vmatprep.subr.mxu0 0.0
    %763 = vmatpush1.xpose.msra.mxu0 0.0
    %764 = vmatprep.subr.mxu0 0.0
    %765 = vmatpush1.xpose.msra.mxu0 0.0
    %766 = vmatprep.subr.mxu0 0.0
    %767 = vmatpush1.xpose.msra.mxu0 0.0
    %768 = vmatprep.subr.mxu0 0.0
    %769 = vmatpush1.xpose.msra.mxu0 0.0
    %770 = vmatprep.subr.mxu0 0.0
    %771 = vmatpush1.xpose.msra.mxu0 0.0
    %772 = vmatprep.subr.mxu0 0.0
    %773 = vmatpush1.xpose.msra.mxu0 0.0
    %774 = vmatprep.subr.mxu0 0.0
    %775 = vmatpush1.xpose.msra.mxu0 0.0
    %776 = vmatprep.subr.mxu0 0.0
    %777 = vmatpush1.xpose.msra.mxu0 0.0
    %778 = vmatprep.subr.mxu0 0.0
    %779 = vmatpush1.xpose.msra.mxu0 0.0
    %780 = vmatprep.subr.mxu0 0.0
    %781 = vmatpush1.xpose.msra.mxu0 0.0
    %782 = vmatprep.subr.mxu0 0.0
    %783 = vmatpush1.xpose.msra.mxu0 0.0
    %784 = vmatprep.subr.mxu0 0.0
    %785 = vmatpush1.xpose.msra.mxu0 0.0
    %786 = vmatprep.subr.mxu0 0.0
    %787 = vmatpush1.xpose.msra.mxu0 0.0
    %788 = vmatprep.subr.mxu0 0.0
    %789 = vmatpush1.xpose.msra.mxu0 0.0
    %790 = vmatprep.mubr.f32.mxu0 0.0
    %791 = vmatmul.mubr.f32.gmra.mrb[0].mxu0 %v722
    %v792 = vpop.f32.mrb[0].mxu0
    %v793 = vadd.f32 0.0, %v792
    %v794 = vpop.f32.mrb[0].mxu0
    %795 = vdwg.mxu0
    %v796 = vmul.f32 %v793, 0.35355338
    %v797 = vadd.f32 %v796, %v453
    %v798 = vsel %vm374, %v797, -inf
    %799 = vmax.xlane.f32.xlu0 %v798
    %v800 = vpop.xlane.xlu0 %799
    %v801 = vsub.f32 %v797, %v800
    %v802 = vmul.f32 %v801, 1.442695
    %v803 = vpow.pop %v802
    %v804 = vsel %vm374, %v803, 0.0
    %805 = vadd.xlane.f32.xlu0 %v804
    %v806 = vpop.xlane.xlu0 %805
    %v807 = vmax.f32 %v806, 1e-30
    %v808 = vrcp.pop %v807
    %v809 = vmul.f32 %v803, %v808
    %810 = vrot.lane.b32.xlu0 %v363, 48
    %v811 = vpop.permute.xlu0 %810
    %v814 = vsel %vm374, %v809, 0
    %816 = vmatprep.subr.mxu0 0.0
    %817 = vmatpush1.msra.mxu0 %v811
    %818 = vmatprep.subr.mxu0 0.0
    %819 = vmatpush1.msra.mxu0 0.0
    %820 = vmatprep.subr.mxu0 0.0
    %821 = vmatpush1.msra.mxu0 0.0
    %822 = vmatprep.subr.mxu0 0.0
    %823 = vmatpush1.msra.mxu0 0.0
    %824 = vmatprep.subr.mxu0 0.0
    %825 = vmatpush1.msra.mxu0 0.0
    %826 = vmatprep.subr.mxu0 0.0
    %827 = vmatpush1.msra.mxu0 0.0
    %828 = vmatprep.subr.mxu0 0.0
    %829 = vmatpush1.msra.mxu0 0.0
    %830 = vmatprep.subr.mxu0 0.0
    %831 = vmatpush1.msra.mxu0 0.0
    %832 = vmatprep.subr.mxu0 0.0
    %833 = vmatpush1.msra.mxu0 0.0
    %834 = vmatprep.subr.mxu0 0.0
    %835 = vmatpush1.msra.mxu0 0.0
    %836 = vmatprep.subr.mxu0 0.0
    %837 = vmatpush1.msra.mxu0 0.0
    %838 = vmatprep.subr.mxu0 0.0
    %839 = vmatpush1.msra.mxu0 0.0
    %840 = vmatprep.subr.mxu0 0.0
    %841 = vmatpush1.msra.mxu0 0.0
    %842 = vmatprep.subr.mxu0 0.0
    %843 = vmatpush1.msra.mxu0 0.0
    %844 = vmatprep.subr.mxu0 0.0
    %845 = vmatpush1.msra.mxu0 0.0
    %846 = vmatprep.subr.mxu0 0.0
    %847 = vmatpush1.msra.mxu0 0.0
    %848 = vmatprep.subr.mxu0 0.0
    %849 = vmatpush1.msra.mxu0 0.0
    %850 = vmatprep.subr.mxu0 0.0
    %851 = vmatpush1.msra.mxu0 0.0
    %852 = vmatprep.subr.mxu0 0.0
    %853 = vmatpush1.msra.mxu0 0.0
    %854 = vmatprep.subr.mxu0 0.0
    %855 = vmatpush1.msra.mxu0 0.0
    %856 = vmatprep.subr.mxu0 0.0
    %857 = vmatpush1.msra.mxu0 0.0
    %858 = vmatprep.subr.mxu0 0.0
    %859 = vmatpush1.msra.mxu0 0.0
    %860 = vmatprep.subr.mxu0 0.0
    %861 = vmatpush1.msra.mxu0 0.0
    %862 = vmatprep.subr.mxu0 0.0
    %863 = vmatpush1.msra.mxu0 0.0
    %864 = vmatprep.subr.mxu0 0.0
    %865 = vmatpush1.msra.mxu0 0.0
    %866 = vmatprep.subr.mxu0 0.0
    %867 = vmatpush1.msra.mxu0 0.0
    %868 = vmatprep.subr.mxu0 0.0
    %869 = vmatpush1.msra.mxu0 0.0
    %870 = vmatprep.subr.mxu0 0.0
    %871 = vmatpush1.msra.mxu0 0.0
    %872 = vmatprep.subr.mxu0 0.0
    %873 = vmatpush1.msra.mxu0 0.0
    %874 = vmatprep.subr.mxu0 0.0
    %875 = vmatpush1.msra.mxu0 0.0
    %876 = vmatprep.subr.mxu0 0.0
    %877 = vmatpush1.msra.mxu0 0.0
    %878 = vmatprep.subr.mxu0 0.0
    %879 = vmatpush1.msra.mxu0 0.0
    %880 = vmatprep.mubr.f32.mxu0 0.0
    %881 = vmatmul.mubr.f32.gmra.mrb[0].mxu0 %v814
    %v882 = vpop.f32.mrb[0].mxu0
    %v883 = vadd.f32 0.0, %v882
    %v884 = vpop.f32.mrb[0].mxu0
    %885 = vdwg.mxu0
    %887 = vrot.lane.b32.xlu0 %v883, 16
    %v888 = vpop.permute.xlu0 %887
    %vm890 = vcmask 195712
    %891 = vst.msk [vmem:[#allocation2] sm:$0xff] %vm890, %v888
    %892 = vrot.lane.b32.xlu0 %v363, 104
    %v893 = vpop.permute.xlu0 %892
    %894 = vrot.lane.b32.xlu0 %v363, 72
    %v895 = vpop.permute.xlu0 %894
    %v896 = vsel %vm374, %v893, 0
    %v898 = vsel %vm374, %v895, 0
    %900 = vmatprep.subr.mxu0 0.0
    %901 = vmatpush1.xpose.msra.mxu0 %v898
    %902 = vmatprep.subr.mxu0 0.0
    %903 = vmatpush1.xpose.msra.mxu0 0.0
    %904 = vmatprep.subr.mxu0 0.0
    %905 = vmatpush1.xpose.msra.mxu0 0.0
    %906 = vmatprep.subr.mxu0 0.0
    %907 = vmatpush1.xpose.msra.mxu0 0.0
    %908 = vmatprep.subr.mxu0 0.0
    %909 = vmatpush1.xpose.msra.mxu0 0.0
    %910 = vmatprep.subr.mxu0 0.0
    %911 = vmatpush1.xpose.msra.mxu0 0.0
    %912 = vmatprep.subr.mxu0 0.0
    %913 = vmatpush1.xpose.msra.mxu0 0.0
    %914 = vmatprep.subr.mxu0 0.0
    %915 = vmatpush1.xpose.msra.mxu0 0.0
    %916 = vmatprep.subr.mxu0 0.0
    %917 = vmatpush1.xpose.msra.mxu0 0.0
    %918 = vmatprep.subr.mxu0 0.0
    %919 = vmatpush1.xpose.msra.mxu0 0.0
    %920 = vmatprep.subr.mxu0 0.0
    %921 = vmatpush1.xpose.msra.mxu0 0.0
    %922 = vmatprep.subr.mxu0 0.0
    %923 = vmatpush1.xpose.msra.mxu0 0.0
    %924 = vmatprep.subr.mxu0 0.0
    %925 = vmatpush1.xpose.msra.mxu0 0.0
    %926 = vmatprep.subr.mxu0 0.0
    %927 = vmatpush1.xpose.msra.mxu0 0.0
    %928 = vmatprep.subr.mxu0 0.0
    %929 = vmatpush1.xpose.msra.mxu0 0.0
    %930 = vmatprep.subr.mxu0 0.0
    %931 = vmatpush1.xpose.msra.mxu0 0.0
    %932 = vmatprep.subr.mxu0 0.0
    %933 = vmatpush1.xpose.msra.mxu0 0.0
    %934 = vmatprep.subr.mxu0 0.0
    %935 = vmatpush1.xpose.msra.mxu0 0.0
    %936 = vmatprep.subr.mxu0 0.0
    %937 = vmatpush1.xpose.msra.mxu0 0.0
    %938 = vmatprep.subr.mxu0 0.0
    %939 = vmatpush1.xpose.msra.mxu0 0.0
    %940 = vmatprep.subr.mxu0 0.0
    %941 = vmatpush1.xpose.msra.mxu0 0.0
    %942 = vmatprep.subr.mxu0 0.0
    %943 = vmatpush1.xpose.msra.mxu0 0.0
    %944 = vmatprep.subr.mxu0 0.0
    %945 = vmatpush1.xpose.msra.mxu0 0.0
    %946 = vmatprep.subr.mxu0 0.0
    %947 = vmatpush1.xpose.msra.mxu0 0.0
    %948 = vmatprep.subr.mxu0 0.0
    %949 = vmatpush1.xpose.msra.mxu0 0.0
    %950 = vmatprep.subr.mxu0 0.0
    %951 = vmatpush1.xpose.msra.mxu0 0.0
    %952 = vmatprep.subr.mxu0 0.0
    %953 = vmatpush1.xpose.msra.mxu0 0.0
    %954 = vmatprep.subr.mxu0 0.0
    %955 = vmatpush1.xpose.msra.mxu0 0.0
    %956 = vmatprep.subr.mxu0 0.0
    %957 = vmatpush1.xpose.msra.mxu0 0.0
    %958 = vmatprep.subr.mxu0 0.0
    %959 = vmatpush1.xpose.msra.mxu0 0.0
    %960 = vmatprep.subr.mxu0 0.0
    %961 = vmatpush1.xpose.msra.mxu0 0.0
    %962 = vmatprep.subr.mxu0 0.0
    %963 = vmatpush1.xpose.msra.mxu0 0.0
    %964 = vmatprep.mubr.f32.mxu0 0.0
    %965 = vmatmul.mubr.f32.gmra.mrb[0].mxu0 %v896
    %v966 = vpop.f32.mrb[0].mxu0
    %v967 = vadd.f32 0.0, %v966
    %v968 = vpop.f32.mrb[0].mxu0
    %969 = vdwg.mxu0
    %v970 = vmul.f32 %v967, 0.35355338
    %v971 = vadd.f32 %v970, %v453
    %v972 = vsel %vm374, %v971, -inf
    %973 = vmax.xlane.f32.xlu0 %v972
    %v974 = vpop.xlane.xlu0 %973
    %v975 = vsub.f32 %v971, %v974
    %v976 = vmul.f32 %v975, 1.442695
    %v977 = vpow.pop %v976
    %v978 = vsel %vm374, %v977, 0.0
    %979 = vadd.xlane.f32.xlu0 %v978
    %v980 = vpop.xlane.xlu0 %979
    %v981 = vmax.f32 %v980, 1e-30
    %v982 = vrcp.pop %v981
    %v983 = vmul.f32 %v977, %v982
    %984 = vrot.lane.b32.xlu0 %v363, 40
    %v985 = vpop.permute.xlu0 %984
    %v988 = vsel %vm374, %v983, 0
    %990 = vmatprep.subr.mxu0 0.0
    %991 = vmatpush1.msra.mxu0 %v985
    %992 = vmatprep.subr.mxu0 0.0
    %993 = vmatpush1.msra.mxu0 0.0
    %994 = vmatprep.subr.mxu0 0.0
    %995 = vmatpush1.msra.mxu0 0.0
    %996 = vmatprep.subr.mxu0 0.0
    %997 = vmatpush1.msra.mxu0 0.0
    %998 = vmatprep.subr.mxu0 0.0
    %999 = vmatpush1.msra.mxu0 0.0
    %1000 = vmatprep.subr.mxu0 0.0
    %1001 = vmatpush1.msra.mxu0 0.0
    %1002 = vmatprep.subr.mxu0 0.0
    %1003 = vmatpush1.msra.mxu0 0.0
    %1004 = vmatprep.subr.mxu0 0.0
    %1005 = vmatpush1.msra.mxu0 0.0
    %1006 = vmatprep.subr.mxu0 0.0
    %1007 = vmatpush1.msra.mxu0 0.0
    %1008 = vmatprep.subr.mxu0 0.0
    %1009 = vmatpush1.msra.mxu0 0.0
    %1010 = vmatprep.subr.mxu0 0.0
    %1011 = vmatpush1.msra.mxu0 0.0
    %1012 = vmatprep.subr.mxu0 0.0
    %1013 = vmatpush1.msra.mxu0 0.0
    %1014 = vmatprep.subr.mxu0 0.0
    %1015 = vmatpush1.msra.mxu0 0.0
    %1016 = vmatprep.subr.mxu0 0.0
    %1017 = vmatpush1.msra.mxu0 0.0
    %1018 = vmatprep.subr.mxu0 0.0
    %1019 = vmatpush1.msra.mxu0 0.0
    %1020 = vmatprep.subr.mxu0 0.0
    %1021 = vmatpush1.msra.mxu0 0.0
    %1022 = vmatprep.subr.mxu0 0.0
    %1023 = vmatpush1.msra.mxu0 0.0
    %1024 = vmatprep.subr.mxu0 0.0
    %1025 = vmatpush1.msra.mxu0 0.0
    %1026 = vmatprep.subr.mxu0 0.0
    %1027 = vmatpush1.msra.mxu0 0.0
    %1028 = vmatprep.subr.mxu0 0.0
    %1029 = vmatpush1.msra.mxu0 0.0
    %1030 = vmatprep.subr.mxu0 0.0
    %1031 = vmatpush1.msra.mxu0 0.0
    %1032 = vmatprep.subr.mxu0 0.0
    %1033 = vmatpush1.msra.mxu0 0.0
    %1034 = vmatprep.subr.mxu0 0.0
    %1035 = vmatpush1.msra.mxu0 0.0
    %1036 = vmatprep.subr.mxu0 0.0
    %1037 = vmatpush1.msra.mxu0 0.0
    %1038 = vmatprep.subr.mxu0 0.0
    %1039 = vmatpush1.msra.mxu0 0.0
    %1040 = vmatprep.subr.mxu0 0.0
    %1041 = vmatpush1.msra.mxu0 0.0
    %1042 = vmatprep.subr.mxu0 0.0
    %1043 = vmatpush1.msra.mxu0 0.0
    %1044 = vmatprep.subr.mxu0 0.0
    %1045 = vmatpush1.msra.mxu0 0.0
    %1046 = vmatprep.subr.mxu0 0.0
    %1047 = vmatpush1.msra.mxu0 0.0
    %1048 = vmatprep.subr.mxu0 0.0
    %1049 = vmatpush1.msra.mxu0 0.0
    %1050 = vmatprep.subr.mxu0 0.0
    %1051 = vmatpush1.msra.mxu0 0.0
    %1052 = vmatprep.subr.mxu0 0.0
    %1053 = vmatpush1.msra.mxu0 0.0
    %1054 = vmatprep.mubr.f32.mxu0 0.0
    %1055 = vmatmul.mubr.f32.gmra.mrb[0].mxu0 %v988
    %v1056 = vpop.f32.mrb[0].mxu0
    %v1057 = vadd.f32 0.0, %v1056
    %v1058 = vpop.f32.mrb[0].mxu0
    %1059 = vdwg.mxu0
    %1061 = vrot.lane.b32.xlu0 %v1057, 24
    %v1062 = vpop.permute.xlu0 %1061
    %vm1064 = vcmask 261312
    %1065 = vst.msk [vmem:[#allocation2] sm:$0xff] %vm1064, %v1062
    %1067 = vrot.lane.b32.xlu0 %v368, 96
    %v1068 = vpop.permute.xlu0 %1067
    %v1069 = vsel %vm374, %v368, 0
    %v1071 = vsel %vm374, %v1068, 0
    %1073 = vmatprep.subr.mxu0 0.0
    %1074 = vmatpush1.xpose.msra.mxu0 %v1071
    %1075 = vmatprep.subr.mxu0 0.0
    %1076 = vmatpush1.xpose.msra.mxu0 0.0
    %1077 = vmatprep.subr.mxu0 0.0
    %1078 = vmatpush1.xpose.msra.mxu0 0.0
    %1079 = vmatprep.subr.mxu0 0.0
    %1080 = vmatpush1.xpose.msra.mxu0 0.0
    %1081 = vmatprep.subr.mxu0 0.0
    %1082 = vmatpush1.xpose.msra.mxu0 0.0
    %1083 = vmatprep.subr.mxu0 0.0
    %1084 = vmatpush1.xpose.msra.mxu0 0.0
    %1085 = vmatprep.subr.mxu0 0.0
    %1086 = vmatpush1.xpose.msra.mxu0 0.0
    %1087 = vmatprep.subr.mxu0 0.0
    %1088 = vmatpush1.xpose.msra.mxu0 0.0
    %1089 = vmatprep.subr.mxu0 0.0
    %1090 = vmatpush1.xpose.msra.mxu0 0.0
    %1091 = vmatprep.subr.mxu0 0.0
    %1092 = vmatpush1.xpose.msra.mxu0 0.0
    %1093 = vmatprep.subr.mxu0 0.0
    %1094 = vmatpush1.xpose.msra.mxu0 0.0
    %1095 = vmatprep.subr.mxu0 0.0
    %1096 = vmatpush1.xpose.msra.mxu0 0.0
    %1097 = vmatprep.subr.mxu0 0.0
    %1098 = vmatpush1.xpose.msra.mxu0 0.0
    %1099 = vmatprep.subr.mxu0 0.0
    %1100 = vmatpush1.xpose.msra.mxu0 0.0
    %1101 = vmatprep.subr.mxu0 0.0
    %1102 = vmatpush1.xpose.msra.mxu0 0.0
    %1103 = vmatprep.subr.mxu0 0.0
    %1104 = vmatpush1.xpose.msra.mxu0 0.0
    %1105 = vmatprep.subr.mxu0 0.0
    %1106 = vmatpush1.xpose.msra.mxu0 0.0
    %1107 = vmatprep.subr.mxu0 0.0
    %1108 = vmatpush1.xpose.msra.mxu0 0.0
    %1109 = vmatprep.subr.mxu0 0.0
    %1110 = vmatpush1.xpose.msra.mxu0 0.0
    %1111 = vmatprep.subr.mxu0 0.0
    %1112 = vmatpush1.xpose.msra.mxu0 0.0
    %1113 = vmatprep.subr.mxu0 0.0
    %1114 = vmatpush1.xpose.msra.mxu0 0.0
    %1115 = vmatprep.subr.mxu0 0.0
    %1116 = vmatpush1.xpose.msra.mxu0 0.0
    %1117 = vmatprep.subr.mxu0 0.0
    %1118 = vmatpush1.xpose.msra.mxu0 0.0
    %1119 = vmatprep.subr.mxu0 0.0
    %1120 = vmatpush1.xpose.msra.mxu0 0.0
    %1121 = vmatprep.subr.mxu0 0.0
    %1122 = vmatpush1.xpose.msra.mxu0 0.0
    %1123 = vmatprep.subr.mxu0 0.0
    %1124 = vmatpush1.xpose.msra.mxu0 0.0
    %1125 = vmatprep.subr.mxu0 0.0
    %1126 = vmatpush1.xpose.msra.mxu0 0.0
    %1127 = vmatprep.subr.mxu0 0.0
    %1128 = vmatpush1.xpose.msra.mxu0 0.0
    %1129 = vmatprep.subr.mxu0 0.0
    %1130 = vmatpush1.xpose.msra.mxu0 0.0
    %1131 = vmatprep.subr.mxu0 0.0
    %1132 = vmatpush1.xpose.msra.mxu0 0.0
    %1133 = vmatprep.subr.mxu0 0.0
    %1134 = vmatpush1.xpose.msra.mxu0 0.0
    %1135 = vmatprep.subr.mxu0 0.0
    %1136 = vmatpush1.xpose.msra.mxu0 0.0
    %1137 = vmatprep.mubr.f32.mxu0 0.0
    %1138 = vmatmul.mubr.f32.gmra.mrb[0].mxu0 %v1069
    %v1139 = vpop.f32.mrb[0].mxu0
    %v1140 = vadd.f32 0.0, %v1139
    %v1141 = vpop.f32.mrb[0].mxu0
    %1142 = vdwg.mxu0
    %v1143 = vmul.f32 %v1140, 0.35355338
    %v1144 = vlaneseq
    %v1145 = vshrl.u32 %v1144, 7
    %v1146 = vsub.s32 1, %v1145
    %v1147 = vrot.slane %v278, %v1146
    %v1148 = vadd.f32 %v1143, %v1147
    %v1149 = vsel %vm374, %v1148, -inf
    %1150 = vmax.xlane.f32.xlu0 %v1149
    %v1151 = vpop.xlane.xlu0 %1150
    %v1152 = vsub.f32 %v1148, %v1151
    %v1153 = vmul.f32 %v1152, 1.442695
    %v1154 = vpow.pop %v1153
    %v1155 = vsel %vm374, %v1154, 0.0
    %1156 = vadd.xlane.f32.xlu0 %v1155
    %v1157 = vpop.xlane.xlu0 %1156
    %v1158 = vmax.f32 %v1157, 1e-30
    %v1159 = vrcp.pop %v1158
    %v1160 = vmul.f32 %v1154, %v1159
    %1161 = vrot.lane.b32.xlu0 %v368, 64
    %v1162 = vpop.permute.xlu0 %1161
    %v1165 = vsel %vm374, %v1160, 0
    %1167 = vmatprep.subr.mxu0 0.0
    %1168 = vmatpush1.msra.mxu0 %v1162
    %1169 = vmatprep.subr.mxu0 0.0
    %1170 = vmatpush1.msra.mxu0 0.0
    %1171 = vmatprep.subr.mxu0 0.0
    %1172 = vmatpush1.msra.mxu0 0.0
    %1173 = vmatprep.subr.mxu0 0.0
    %1174 = vmatpush1.msra.mxu0 0.0
    %1175 = vmatprep.subr.mxu0 0.0
    %1176 = vmatpush1.msra.mxu0 0.0
    %1177 = vmatprep.subr.mxu0 0.0
    %1178 = vmatpush1.msra.mxu0 0.0
    %1179 = vmatprep.subr.mxu0 0.0
    %1180 = vmatpush1.msra.mxu0 0.0
    %1181 = vmatprep.subr.mxu0 0.0
    %1182 = vmatpush1.msra.mxu0 0.0
    %1183 = vmatprep.subr.mxu0 0.0
    %1184 = vmatpush1.msra.mxu0 0.0
    %1185 = vmatprep.subr.mxu0 0.0
    %1186 = vmatpush1.msra.mxu0 0.0
    %1187 = vmatprep.subr.mxu0 0.0
    %1188 = vmatpush1.msra.mxu0 0.0
    %1189 = vmatprep.subr.mxu0 0.0
    %1190 = vmatpush1.msra.mxu0 0.0
    %1191 = vmatprep.subr.mxu0 0.0
    %1192 = vmatpush1.msra.mxu0 0.0
    %1193 = vmatprep.subr.mxu0 0.0
    %1194 = vmatpush1.msra.mxu0 0.0
    %1195 = vmatprep.subr.mxu0 0.0
    %1196 = vmatpush1.msra.mxu0 0.0
    %1197 = vmatprep.subr.mxu0 0.0
    %1198 = vmatpush1.msra.mxu0 0.0
    %1199 = vmatprep.subr.mxu0 0.0
    %1200 = vmatpush1.msra.mxu0 0.0
    %1201 = vmatprep.subr.mxu0 0.0
    %1202 = vmatpush1.msra.mxu0 0.0
    %1203 = vmatprep.subr.mxu0 0.0
    %1204 = vmatpush1.msra.mxu0 0.0
    %1205 = vmatprep.subr.mxu0 0.0
    %1206 = vmatpush1.msra.mxu0 0.0
    %1207 = vmatprep.subr.mxu0 0.0
    %1208 = vmatpush1.msra.mxu0 0.0
    %1209 = vmatprep.subr.mxu0 0.0
    %1210 = vmatpush1.msra.mxu0 0.0
    %1211 = vmatprep.subr.mxu0 0.0
    %1212 = vmatpush1.msra.mxu0 0.0
    %1213 = vmatprep.subr.mxu0 0.0
    %1214 = vmatpush1.msra.mxu0 0.0
    %1215 = vmatprep.subr.mxu0 0.0
    %1216 = vmatpush1.msra.mxu0 0.0
    %1217 = vmatprep.subr.mxu0 0.0
    %1218 = vmatpush1.msra.mxu0 0.0
    %1219 = vmatprep.subr.mxu0 0.0
    %1220 = vmatpush1.msra.mxu0 0.0
    %1221 = vmatprep.subr.mxu0 0.0
    %1222 = vmatpush1.msra.mxu0 0.0
    %1223 = vmatprep.subr.mxu0 0.0
    %1224 = vmatpush1.msra.mxu0 0.0
    %1225 = vmatprep.subr.mxu0 0.0
    %1226 = vmatpush1.msra.mxu0 0.0
    %1227 = vmatprep.subr.mxu0 0.0
    %1228 = vmatpush1.msra.mxu0 0.0
    %1229 = vmatprep.subr.mxu0 0.0
    %1230 = vmatpush1.msra.mxu0 0.0
    %1231 = vmatprep.mubr.f32.mxu0 0.0
    %1232 = vmatmul.mubr.f32.gmra.mrb[0].mxu0 %v1165
    %v1233 = vpop.f32.mrb[0].mxu0
    %v1234 = vadd.f32 0.0, %v1233
    %v1235 = vpop.f32.mrb[0].mxu0
    %1236 = vdwg.mxu0
    %1237 = vst.msk [vmem:[#allocation2 + $0x8] sm:$0xff] %vm374, %v1234
    %1238 = vrot.lane.b32.xlu0 %v368, 120
    %v1239 = vpop.permute.xlu0 %1238
    %1240 = vrot.lane.b32.xlu0 %v368, 88
    %v1241 = vpop.permute.xlu0 %1240
    %v1242 = vsel %vm374, %v1239, 0
    %v1244 = vsel %vm374, %v1241, 0
    %1246 = vmatprep.subr.mxu0 0.0
    %1247 = vmatpush1.xpose.msra.mxu0 %v1244
    %1248 = vmatprep.subr.mxu0 0.0
    %1249 = vmatpush1.xpose.msra.mxu0 0.0
    %1250 = vmatprep.subr.mxu0 0.0
    %1251 = vmatpush1.xpose.msra.mxu0 0.0
    %1252 = vmatprep.subr.mxu0 0.0
    %1253 = vmatpush1.xpose.msra.mxu0 0.0
    %1254 = vmatprep.subr.mxu0 0.0
    %1255 = vmatpush1.xpose.msra.mxu0 0.0
    %1256 = vmatprep.subr.mxu0 0.0
    %1257 = vmatpush1.xpose.msra.mxu0 0.0
    %1258 = vmatprep.subr.mxu0 0.0
    %1259 = vmatpush1.xpose.msra.mxu0 0.0
    %1260 = vmatprep.subr.mxu0 0.0
    %1261 = vmatpush1.xpose.msra.mxu0 0.0
    %1262 = vmatprep.subr.mxu0 0.0
    %1263 = vmatpush1.xpose.msra.mxu0 0.0
    %1264 = vmatprep.subr.mxu0 0.0
    %1265 = vmatpush1.xpose.msra.mxu0 0.0
    %1266 = vmatprep.subr.mxu0 0.0
    %1267 = vmatpush1.xpose.msra.mxu0 0.0
    %1268 = vmatprep.subr.mxu0 0.0
    %1269 = vmatpush1.xpose.msra.mxu0 0.0
    %1270 = vmatprep.subr.mxu0 0.0
    %1271 = vmatpush1.xpose.msra.mxu0 0.0
    %1272 = vmatprep.subr.mxu0 0.0
    %1273 = vmatpush1.xpose.msra.mxu0 0.0
    %1274 = vmatprep.subr.mxu0 0.0
    %1275 = vmatpush1.xpose.msra.mxu0 0.0
    %1276 = vmatprep.subr.mxu0 0.0
    %1277 = vmatpush1.xpose.msra.mxu0 0.0
    %1278 = vmatprep.subr.mxu0 0.0
    %1279 = vmatpush1.xpose.msra.mxu0 0.0
    %1280 = vmatprep.subr.mxu0 0.0
    %1281 = vmatpush1.xpose.msra.mxu0 0.0
    %1282 = vmatprep.subr.mxu0 0.0
    %1283 = vmatpush1.xpose.msra.mxu0 0.0
    %1284 = vmatprep.subr.mxu0 0.0
    %1285 = vmatpush1.xpose.msra.mxu0 0.0
    %1286 = vmatprep.subr.mxu0 0.0
    %1287 = vmatpush1.xpose.msra.mxu0 0.0
    %1288 = vmatprep.subr.mxu0 0.0
    %1289 = vmatpush1.xpose.msra.mxu0 0.0
    %1290 = vmatprep.subr.mxu0 0.0
    %1291 = vmatpush1.xpose.msra.mxu0 0.0
    %1292 = vmatprep.subr.mxu0 0.0
    %1293 = vmatpush1.xpose.msra.mxu0 0.0
    %1294 = vmatprep.subr.mxu0 0.0
    %1295 = vmatpush1.xpose.msra.mxu0 0.0
    %1296 = vmatprep.subr.mxu0 0.0
    %1297 = vmatpush1.xpose.msra.mxu0 0.0
    %1298 = vmatprep.subr.mxu0 0.0
    %1299 = vmatpush1.xpose.msra.mxu0 0.0
    %1300 = vmatprep.subr.mxu0 0.0
    %1301 = vmatpush1.xpose.msra.mxu0 0.0
    %1302 = vmatprep.subr.mxu0 0.0
    %1303 = vmatpush1.xpose.msra.mxu0 0.0
    %1304 = vmatprep.subr.mxu0 0.0
    %1305 = vmatpush1.xpose.msra.mxu0 0.0
    %1306 = vmatprep.subr.mxu0 0.0
    %1307 = vmatpush1.xpose.msra.mxu0 0.0
    %1308 = vmatprep.subr.mxu0 0.0
    %1309 = vmatpush1.xpose.msra.mxu0 0.0
    %1310 = vmatprep.mubr.f32.mxu0 0.0
    %1311 = vmatmul.mubr.f32.gmra.mrb[0].mxu0 %v1242
    %v1312 = vpop.f32.mrb[0].mxu0
    %v1313 = vadd.f32 0.0, %v1312
    %v1314 = vpop.f32.mrb[0].mxu0
    %1315 = vdwg.mxu0
    %v1316 = vmul.f32 %v1313, 0.35355338
    %v1317 = vadd.f32 %v1316, %v1147
    %v1318 = vsel %vm374, %v1317, -inf
    %1319 = vmax.xlane.f32.xlu0 %v1318
    %v1320 = vpop.xlane.xlu0 %1319
    %v1321 = vsub.f32 %v1317, %v1320
    %v1322 = vmul.f32 %v1321, 1.442695
    %v1323 = vpow.pop %v1322
    %v1324 = vsel %vm374, %v1323, 0.0
    %1325 = vadd.xlane.f32.xlu0 %v1324
    %v1326 = vpop.xlane.xlu0 %1325
    %v1327 = vmax.f32 %v1326, 1e-30
    %v1328 = vrcp.pop %v1327
    %v1329 = vmul.f32 %v1323, %v1328
    %1330 = vrot.lane.b32.xlu0 %v368, 56
    %v1331 = vpop.permute.xlu0 %1330
    %v1334 = vsel %vm374, %v1329, 0
    %1336 = vmatprep.subr.mxu0 0.0
    %1337 = vmatpush1.msra.mxu0 %v1331
    %1338 = vmatprep.subr.mxu0 0.0
    %1339 = vmatpush1.msra.mxu0 0.0
    %1340 = vmatprep.subr.mxu0 0.0
    %1341 = vmatpush1.msra.mxu0 0.0
    %1342 = vmatprep.subr.mxu0 0.0
    %1343 = vmatpush1.msra.mxu0 0.0
    %1344 = vmatprep.subr.mxu0 0.0
    %1345 = vmatpush1.msra.mxu0 0.0
    %1346 = vmatprep.subr.mxu0 0.0
    %1347 = vmatpush1.msra.mxu0 0.0
    %1348 = vmatprep.subr.mxu0 0.0
    %1349 = vmatpush1.msra.mxu0 0.0
    %1350 = vmatprep.subr.mxu0 0.0
    %1351 = vmatpush1.msra.mxu0 0.0
    %1352 = vmatprep.subr.mxu0 0.0
    %1353 = vmatpush1.msra.mxu0 0.0
    %1354 = vmatprep.subr.mxu0 0.0
    %1355 = vmatpush1.msra.mxu0 0.0
    %1356 = vmatprep.subr.mxu0 0.0
    %1357 = vmatpush1.msra.mxu0 0.0
    %1358 = vmatprep.subr.mxu0 0.0
    %1359 = vmatpush1.msra.mxu0 0.0
    %1360 = vmatprep.subr.mxu0 0.0
    %1361 = vmatpush1.msra.mxu0 0.0
    %1362 = vmatprep.subr.mxu0 0.0
    %1363 = vmatpush1.msra.mxu0 0.0
    %1364 = vmatprep.subr.mxu0 0.0
    %1365 = vmatpush1.msra.mxu0 0.0
    %1366 = vmatprep.subr.mxu0 0.0
    %1367 = vmatpush1.msra.mxu0 0.0
    %1368 = vmatprep.subr.mxu0 0.0
    %1369 = vmatpush1.msra.mxu0 0.0
    %1370 = vmatprep.subr.mxu0 0.0
    %1371 = vmatpush1.msra.mxu0 0.0
    %1372 = vmatprep.subr.mxu0 0.0
    %1373 = vmatpush1.msra.mxu0 0.0
    %1374 = vmatprep.subr.mxu0 0.0
    %1375 = vmatpush1.msra.mxu0 0.0
    %1376 = vmatprep.subr.mxu0 0.0
    %1377 = vmatpush1.msra.mxu0 0.0
    %1378 = vmatprep.subr.mxu0 0.0
    %1379 = vmatpush1.msra.mxu0 0.0
    %1380 = vmatprep.subr.mxu0 0.0
    %1381 = vmatpush1.msra.mxu0 0.0
    %1382 = vmatprep.subr.mxu0 0.0
    %1383 = vmatpush1.msra.mxu0 0.0
    %1384 = vmatprep.subr.mxu0 0.0
    %1385 = vmatpush1.msra.mxu0 0.0
    %1386 = vmatprep.subr.mxu0 0.0
    %1387 = vmatpush1.msra.mxu0 0.0
    %1388 = vmatprep.subr.mxu0 0.0
    %1389 = vmatpush1.msra.mxu0 0.0
    %1390 = vmatprep.subr.mxu0 0.0
    %1391 = vmatpush1.msra.mxu0 0.0
    %1392 = vmatprep.subr.mxu0 0.0
    %1393 = vmatpush1.msra.mxu0 0.0
    %1394 = vmatprep.subr.mxu0 0.0
    %1395 = vmatpush1.msra.mxu0 0.0
    %1396 = vmatprep.subr.mxu0 0.0
    %1397 = vmatpush1.msra.mxu0 0.0
    %1398 = vmatprep.subr.mxu0 0.0
    %1399 = vmatpush1.msra.mxu0 0.0
    %1400 = vmatprep.mubr.f32.mxu0 0.0
    %1401 = vmatmul.mubr.f32.gmra.mrb[0].mxu0 %v1334
    %v1402 = vpop.f32.mrb[0].mxu0
    %v1403 = vadd.f32 0.0, %v1402
    %v1404 = vpop.f32.mrb[0].mxu0
    %1405 = vdwg.mxu0
    %1407 = vrot.lane.b32.xlu0 %v1403, 8
    %v1408 = vpop.permute.xlu0 %1407
    %1410 = vst.msk [vmem:[#allocation2 + $0x8] sm:$0xff] %vm716, %v1408
    %1411 = vrot.lane.b32.xlu0 %v368, 112
    %v1412 = vpop.permute.xlu0 %1411
    %1413 = vrot.lane.b32.xlu0 %v368, 80
    %v1414 = vpop.permute.xlu0 %1413
    %v1415 = vsel %vm374, %v1412, 0
    %v1417 = vsel %vm374, %v1414, 0
    %1419 = vmatprep.subr.mxu0 0.0
    %1420 = vmatpush1.xpose.msra.mxu0 %v1417
    %1421 = vmatprep.subr.mxu0 0.0
    %1422 = vmatpush1.xpose.msra.mxu0 0.0
    %1423 = vmatprep.subr.mxu0 0.0
    %1424 = vmatpush1.xpose.msra.mxu0 0.0
    %1425 = vmatprep.subr.mxu0 0.0
    %1426 = vmatpush1.xpose.msra.mxu0 0.0
    %1427 = vmatprep.subr.mxu0 0.0
    %1428 = vmatpush1.xpose.msra.mxu0 0.0
    %1429 = vmatprep.subr.mxu0 0.0
    %1430 = vmatpush1.xpose.msra.mxu0 0.0
    %1431 = vmatprep.subr.mxu0 0.0
    %1432 = vmatpush1.xpose.msra.mxu0 0.0
    %1433 = vmatprep.subr.mxu0 0.0
    %1434 = vmatpush1.xpose.msra.mxu0 0.0
    %1435 = vmatprep.subr.mxu0 0.0
    %1436 = vmatpush1.xpose.msra.mxu0 0.0
    %1437 = vmatprep.subr.mxu0 0.0
    %1438 = vmatpush1.xpose.msra.mxu0 0.0
    %1439 = vmatprep.subr.mxu0 0.0
    %1440 = vmatpush1.xpose.msra.mxu0 0.0
    %1441 = vmatprep.subr.mxu0 0.0
    %1442 = vmatpush1.xpose.msra.mxu0 0.0
    %1443 = vmatprep.subr.mxu0 0.0
    %1444 = vmatpush1.xpose.msra.mxu0 0.0
    %1445 = vmatprep.subr.mxu0 0.0
    %1446 = vmatpush1.xpose.msra.mxu0 0.0
    %1447 = vmatprep.subr.mxu0 0.0
    %1448 = vmatpush1.xpose.msra.mxu0 0.0
    %1449 = vmatprep.subr.mxu0 0.0
    %1450 = vmatpush1.xpose.msra.mxu0 0.0
    %1451 = vmatprep.subr.mxu0 0.0
    %1452 = vmatpush1.xpose.msra.mxu0 0.0
    %1453 = vmatprep.subr.mxu0 0.0
    %1454 = vmatpush1.xpose.msra.mxu0 0.0
    %1455 = vmatprep.subr.mxu0 0.0
    %1456 = vmatpush1.xpose.msra.mxu0 0.0
    %1457 = vmatprep.subr.mxu0 0.0
    %1458 = vmatpush1.xpose.msra.mxu0 0.0
    %1459 = vmatprep.subr.mxu0 0.0
    %1460 = vmatpush1.xpose.msra.mxu0 0.0
    %1461 = vmatprep.subr.mxu0 0.0
    %1462 = vmatpush1.xpose.msra.mxu0 0.0
    %1463 = vmatprep.subr.mxu0 0.0
    %1464 = vmatpush1.xpose.msra.mxu0 0.0
    %1465 = vmatprep.subr.mxu0 0.0
    %1466 = vmatpush1.xpose.msra.mxu0 0.0
    %1467 = vmatprep.subr.mxu0 0.0
    %1468 = vmatpush1.xpose.msra.mxu0 0.0
    %1469 = vmatprep.subr.mxu0 0.0
    %1470 = vmatpush1.xpose.msra.mxu0 0.0
    %1471 = vmatprep.subr.mxu0 0.0
    %1472 = vmatpush1.xpose.msra.mxu0 0.0
    %1473 = vmatprep.subr.mxu0 0.0
    %1474 = vmatpush1.xpose.msra.mxu0 0.0
    %1475 = vmatprep.subr.mxu0 0.0
    %1476 = vmatpush1.xpose.msra.mxu0 0.0
    %1477 = vmatprep.subr.mxu0 0.0
    %1478 = vmatpush1.xpose.msra.mxu0 0.0
    %1479 = vmatprep.subr.mxu0 0.0
    %1480 = vmatpush1.xpose.msra.mxu0 0.0
    %1481 = vmatprep.subr.mxu0 0.0
    %1482 = vmatpush1.xpose.msra.mxu0 0.0
    %1483 = vmatprep.mubr.f32.mxu0 0.0
    %1484 = vmatmul.mubr.f32.gmra.mrb[0].mxu0 %v1415
    %v1485 = vpop.f32.mrb[0].mxu0
    %v1486 = vadd.f32 0.0, %v1485
    %v1487 = vpop.f32.mrb[0].mxu0
    %1488 = vdwg.mxu0
    %v1489 = vmul.f32 %v1486, 0.35355338
    %v1490 = vadd.f32 %v1489, %v1147
    %v1491 = vsel %vm374, %v1490, -inf
    %1492 = vmax.xlane.f32.xlu0 %v1491
    %v1493 = vpop.xlane.xlu0 %1492
    %v1494 = vsub.f32 %v1490, %v1493
    %v1495 = vmul.f32 %v1494, 1.442695
    %v1496 = vpow.pop %v1495
    %v1497 = vsel %vm374, %v1496, 0.0
    %1498 = vadd.xlane.f32.xlu0 %v1497
    %v1499 = vpop.xlane.xlu0 %1498
    %v1500 = vmax.f32 %v1499, 1e-30
    %v1501 = vrcp.pop %v1500
    %v1502 = vmul.f32 %v1496, %v1501
    %1503 = vrot.lane.b32.xlu0 %v368, 48
    %v1504 = vpop.permute.xlu0 %1503
    %v1507 = vsel %vm374, %v1502, 0
    %1509 = vmatprep.subr.mxu0 0.0
    %1510 = vmatpush1.msra.mxu0 %v1504
    %1511 = vmatprep.subr.mxu0 0.0
    %1512 = vmatpush1.msra.mxu0 0.0
    %1513 = vmatprep.subr.mxu0 0.0
    %1514 = vmatpush1.msra.mxu0 0.0
    %1515 = vmatprep.subr.mxu0 0.0
    %1516 = vmatpush1.msra.mxu0 0.0
    %1517 = vmatprep.subr.mxu0 0.0
    %1518 = vmatpush1.msra.mxu0 0.0
    %1519 = vmatprep.subr.mxu0 0.0
    %1520 = vmatpush1.msra.mxu0 0.0
    %1521 = vmatprep.subr.mxu0 0.0
    %1522 = vmatpush1.msra.mxu0 0.0
    %1523 = vmatprep.subr.mxu0 0.0
    %1524 = vmatpush1.msra.mxu0 0.0
    %1525 = vmatprep.subr.mxu0 0.0
    %1526 = vmatpush1.msra.mxu0 0.0
    %1527 = vmatprep.subr.mxu0 0.0
    %1528 = vmatpush1.msra.mxu0 0.0
    %1529 = vmatprep.subr.mxu0 0.0
    %1530 = vmatpush1.msra.mxu0 0.0
    %1531 = vmatprep.subr.mxu0 0.0
    %1532 = vmatpush1.msra.mxu0 0.0
    %1533 = vmatprep.subr.mxu0 0.0
    %1534 = vmatpush1.msra.mxu0 0.0
    %1535 = vmatprep.subr.mxu0 0.0
    %1536 = vmatpush1.msra.mxu0 0.0
    %1537 = vmatprep.subr.mxu0 0.0
    %1538 = vmatpush1.msra.mxu0 0.0
    %1539 = vmatprep.subr.mxu0 0.0
    %1540 = vmatpush1.msra.mxu0 0.0
    %1541 = vmatprep.subr.mxu0 0.0
    %1542 = vmatpush1.msra.mxu0 0.0
    %1543 = vmatprep.subr.mxu0 0.0
    %1544 = vmatpush1.msra.mxu0 0.0
    %1545 = vmatprep.subr.mxu0 0.0
    %1546 = vmatpush1.msra.mxu0 0.0
    %1547 = vmatprep.subr.mxu0 0.0
    %1548 = vmatpush1.msra.mxu0 0.0
    %1549 = vmatprep.subr.mxu0 0.0
    %1550 = vmatpush1.msra.mxu0 0.0
    %1551 = vmatprep.subr.mxu0 0.0
    %1552 = vmatpush1.msra.mxu0 0.0
    %1553 = vmatprep.subr.mxu0 0.0
    %1554 = vmatpush1.msra.mxu0 0.0
    %1555 = vmatprep.subr.mxu0 0.0
    %1556 = vmatpush1.msra.mxu0 0.0
    %1557 = vmatprep.subr.mxu0 0.0
    %1558 = vmatpush1.msra.mxu0 0.0
    %1559 = vmatprep.subr.mxu0 0.0
    %1560 = vmatpush1.msra.mxu0 0.0
    %1561 = vmatprep.subr.mxu0 0.0
    %1562 = vmatpush1.msra.mxu0 0.0
    %1563 = vmatprep.subr.mxu0 0.0
    %1564 = vmatpush1.msra.mxu0 0.0
    %1565 = vmatprep.subr.mxu0 0.0
    %1566 = vmatpush1.msra.mxu0 0.0
    %1567 = vmatprep.subr.mxu0 0.0
    %1568 = vmatpush1.msra.mxu0 0.0
    %1569 = vmatprep.subr.mxu0 0.0
    %1570 = vmatpush1.msra.mxu0 0.0
    %1571 = vmatprep.subr.mxu0 0.0
    %1572 = vmatpush1.msra.mxu0 0.0
    %1573 = vmatprep.mubr.f32.mxu0 0.0
    %1574 = vmatmul.mubr.f32.gmra.mrb[0].mxu0 %v1507
    %v1575 = vpop.f32.mrb[0].mxu0
    %v1576 = vadd.f32 0.0, %v1575
    %v1577 = vpop.f32.mrb[0].mxu0
    %1578 = vdwg.mxu0
    %1580 = vrot.lane.b32.xlu0 %v1576, 16
    %v1581 = vpop.permute.xlu0 %1580
    %1583 = vst.msk [vmem:[#allocation2 + $0x8] sm:$0xff] %vm890, %v1581
    %1584 = vrot.lane.b32.xlu0 %v368, 104
    %v1585 = vpop.permute.xlu0 %1584
    %1586 = vrot.lane.b32.xlu0 %v368, 72
    %v1587 = vpop.permute.xlu0 %1586
    %v1588 = vsel %vm374, %v1585, 0
    %v1590 = vsel %vm374, %v1587, 0
    %1592 = vmatprep.subr.mxu0 0.0
    %1593 = vmatpush1.xpose.msra.mxu0 %v1590
    %1594 = vmatprep.subr.mxu0 0.0
    %1595 = vmatpush1.xpose.msra.mxu0 0.0
    %1596 = vmatprep.subr.mxu0 0.0
    %1597 = vmatpush1.xpose.msra.mxu0 0.0
    %1598 = vmatprep.subr.mxu0 0.0
    %1599 = vmatpush1.xpose.msra.mxu0 0.0
    %1600 = vmatprep.subr.mxu0 0.0
    %1601 = vmatpush1.xpose.msra.mxu0 0.0
    %1602 = vmatprep.subr.mxu0 0.0
    %1603 = vmatpush1.xpose.msra.mxu0 0.0
    %1604 = vmatprep.subr.mxu0 0.0
    %1605 = vmatpush1.xpose.msra.mxu0 0.0
    %1606 = vmatprep.subr.mxu0 0.0
    %1607 = vmatpush1.xpose.msra.mxu0 0.0
    %1608 = vmatprep.subr.mxu0 0.0
    %1609 = vmatpush1.xpose.msra.mxu0 0.0
    %1610 = vmatprep.subr.mxu0 0.0
    %1611 = vmatpush1.xpose.msra.mxu0 0.0
    %1612 = vmatprep.subr.mxu0 0.0
    %1613 = vmatpush1.xpose.msra.mxu0 0.0
    %1614 = vmatprep.subr.mxu0 0.0
    %1615 = vmatpush1.xpose.msra.mxu0 0.0
    %1616 = vmatprep.subr.mxu0 0.0
    %1617 = vmatpush1.xpose.msra.mxu0 0.0
    %1618 = vmatprep.subr.mxu0 0.0
    %1619 = vmatpush1.xpose.msra.mxu0 0.0
    %1620 = vmatprep.subr.mxu0 0.0
    %1621 = vmatpush1.xpose.msra.mxu0 0.0
    %1622 = vmatprep.subr.mxu0 0.0
    %1623 = vmatpush1.xpose.msra.mxu0 0.0
    %1624 = vmatprep.subr.mxu0 0.0
    %1625 = vmatpush1.xpose.msra.mxu0 0.0
    %1626 = vmatprep.subr.mxu0 0.0
    %1627 = vmatpush1.xpose.msra.mxu0 0.0
    %1628 = vmatprep.subr.mxu0 0.0
    %1629 = vmatpush1.xpose.msra.mxu0 0.0
    %1630 = vmatprep.subr.mxu0 0.0
    %1631 = vmatpush1.xpose.msra.mxu0 0.0
    %1632 = vmatprep.subr.mxu0 0.0
    %1633 = vmatpush1.xpose.msra.mxu0 0.0
    %1634 = vmatprep.subr.mxu0 0.0
    %1635 = vmatpush1.xpose.msra.mxu0 0.0
    %1636 = vmatprep.subr.mxu0 0.0
    %1637 = vmatpush1.xpose.msra.mxu0 0.0
    %1638 = vmatprep.subr.mxu0 0.0
    %1639 = vmatpush1.xpose.msra.mxu0 0.0
    %1640 = vmatprep.subr.mxu0 0.0
    %1641 = vmatpush1.xpose.msra.mxu0 0.0
    %1642 = vmatprep.subr.mxu0 0.0
    %1643 = vmatpush1.xpose.msra.mxu0 0.0
    %1644 = vmatprep.subr.mxu0 0.0
    %1645 = vmatpush1.xpose.msra.mxu0 0.0
    %1646 = vmatprep.subr.mxu0 0.0
    %1647 = vmatpush1.xpose.msra.mxu0 0.0
    %1648 = vmatprep.subr.mxu0 0.0
    %1649 = vmatpush1.xpose.msra.mxu0 0.0
    %1650 = vmatprep.subr.mxu0 0.0
    %1651 = vmatpush1.xpose.msra.mxu0 0.0
    %1652 = vmatprep.subr.mxu0 0.0
    %1653 = vmatpush1.xpose.msra.mxu0 0.0
    %1654 = vmatprep.subr.mxu0 0.0
    %1655 = vmatpush1.xpose.msra.mxu0 0.0
    %1656 = vmatprep.mubr.f32.mxu0 0.0
    %1657 = vmatmul.mubr.f32.gmra.mrb[0].mxu0 %v1588
    %v1658 = vpop.f32.mrb[0].mxu0
    %v1659 = vadd.f32 0.0, %v1658
    %v1660 = vpop.f32.mrb[0].mxu0
    %1661 = vdwg.mxu0
    %v1662 = vmul.f32 %v1659, 0.35355338
    %v1663 = vadd.f32 %v1662, %v1147
    %v1664 = vsel %vm374, %v1663, -inf
    %1665 = vmax.xlane.f32.xlu0 %v1664
    %v1666 = vpop.xlane.xlu0 %1665
    %v1667 = vsub.f32 %v1663, %v1666
    %v1668 = vmul.f32 %v1667, 1.442695
    %v1669 = vpow.pop %v1668
    %v1670 = vsel %vm374, %v1669, 0.0
    %1671 = vadd.xlane.f32.xlu0 %v1670
    %v1672 = vpop.xlane.xlu0 %1671
    %v1673 = vmax.f32 %v1672, 1e-30
    %v1674 = vrcp.pop %v1673
    %v1675 = vmul.f32 %v1669, %v1674
    %1676 = vrot.lane.b32.xlu0 %v368, 40
    %v1677 = vpop.permute.xlu0 %1676
    %v1680 = vsel %vm374, %v1675, 0
    %1682 = vmatprep.subr.mxu0 0.0
    %1683 = vmatpush1.msra.mxu0 %v1677
    %1684 = vmatprep.subr.mxu0 0.0
    %1685 = vmatpush1.msra.mxu0 0.0
    %1686 = vmatprep.subr.mxu0 0.0
    %1687 = vmatpush1.msra.mxu0 0.0
    %1688 = vmatprep.subr.mxu0 0.0
    %1689 = vmatpush1.msra.mxu0 0.0
    %1690 = vmatprep.subr.mxu0 0.0
    %1691 = vmatpush1.msra.mxu0 0.0
    %1692 = vmatprep.subr.mxu0 0.0
    %1693 = vmatpush1.msra.mxu0 0.0
    %1694 = vmatprep.subr.mxu0 0.0
    %1695 = vmatpush1.msra.mxu0 0.0
    %1696 = vmatprep.subr.mxu0 0.0
    %1697 = vmatpush1.msra.mxu0 0.0
    %1698 = vmatprep.subr.mxu0 0.0
    %1699 = vmatpush1.msra.mxu0 0.0
    %1700 = vmatprep.subr.mxu0 0.0
    %1701 = vmatpush1.msra.mxu0 0.0
    %1702 = vmatprep.subr.mxu0 0.0
    %1703 = vmatpush1.msra.mxu0 0.0
    %1704 = vmatprep.subr.mxu0 0.0
    %1705 = vmatpush1.msra.mxu0 0.0
    %1706 = vmatprep.subr.mxu0 0.0
    %1707 = vmatpush1.msra.mxu0 0.0
    %1708 = vmatprep.subr.mxu0 0.0
    %1709 = vmatpush1.msra.mxu0 0.0
    %1710 = vmatprep.subr.mxu0 0.0
    %1711 = vmatpush1.msra.mxu0 0.0
    %1712 = vmatprep.subr.mxu0 0.0
    %1713 = vmatpush1.msra.mxu0 0.0
    %1714 = vmatprep.subr.mxu0 0.0
    %1715 = vmatpush1.msra.mxu0 0.0
    %1716 = vmatprep.subr.mxu0 0.0
    %1717 = vmatpush1.msra.mxu0 0.0
    %1718 = vmatprep.subr.mxu0 0.0
    %1719 = vmatpush1.msra.mxu0 0.0
    %1720 = vmatprep.subr.mxu0 0.0
    %1721 = vmatpush1.msra.mxu0 0.0
    %1722 = vmatprep.subr.mxu0 0.0
    %1723 = vmatpush1.msra.mxu0 0.0
    %1724 = vmatprep.subr.mxu0 0.0
    %1725 = vmatpush1.msra.mxu0 0.0
    %1726 = vmatprep.subr.mxu0 0.0
    %1727 = vmatpush1.msra.mxu0 0.0
    %1728 = vmatprep.subr.mxu0 0.0
    %1729 = vmatpush1.msra.mxu0 0.0
    %1730 = vmatprep.subr.mxu0 0.0
    %1731 = vmatpush1.msra.mxu0 0.0
    %1732 = vmatprep.subr.mxu0 0.0
    %1733 = vmatpush1.msra.mxu0 0.0
    %1734 = vmatprep.subr.mxu0 0.0
    %1735 = vmatpush1.msra.mxu0 0.0
    %1736 = vmatprep.subr.mxu0 0.0
    %1737 = vmatpush1.msra.mxu0 0.0
    %1738 = vmatprep.subr.mxu0 0.0
    %1739 = vmatpush1.msra.mxu0 0.0
    %1740 = vmatprep.subr.mxu0 0.0
    %1741 = vmatpush1.msra.mxu0 0.0
    %1742 = vmatprep.subr.mxu0 0.0
    %1743 = vmatpush1.msra.mxu0 0.0
    %1744 = vmatprep.subr.mxu0 0.0
    %1745 = vmatpush1.msra.mxu0 0.0
    %1746 = vmatprep.mubr.f32.mxu0 0.0
    %1747 = vmatmul.mubr.f32.gmra.mrb[0].mxu0 %v1680
    %v1748 = vpop.f32.mrb[0].mxu0
    %v1749 = vadd.f32 0.0, %v1748
    %v1750 = vpop.f32.mrb[0].mxu0
    %1751 = vdwg.mxu0
    %1753 = vrot.lane.b32.xlu0 %v1749, 24
    %v1754 = vpop.permute.xlu0 %1753
    %1756 = vst.msk [vmem:[#allocation2 + $0x8] sm:$0xff] %vm1064, %v1754
    %v1757 = vld [vmem:[#allocation2] sm:$0xff]
    %v1758 = vld [vmem:[#allocation2 + $0x8] sm:$0xff]
    %v1759 = vld [vmem:[%s7] sm:$0xff]
    %v1760 = vld [vmem:[%s7 + $0x8] sm:$0xff]
    %v1761 = vld [vmem:[%s7 + $0x10] sm:$0xff]
    %v1762 = vld [vmem:[%s7 + $0x18] sm:$0xff]
    %v1763 = vld [vmem:[%s8] sm:$0x1]
    %v1765 = vlaneseq
    %v1766 = vshrl.u32 %v1765, 7
    %v1767 = vsub.s32 0, %v1766
    %v1768 = vrot.slane %v1763, %v1767
    %v1771 = vsel %vm86, %v1757, 0
    %v1774 = vsel %vm86, %v1758, 0
    %1776 = vmatprep.subr.mxu0 0.0
    %1777 = vmatpush1.msra.mxu0 %v1759
    %1778 = vmatprep.subr.mxu0 0.0
    %1779 = vmatpush1.msra.mxu0 %v1760
    %1780 = vmatprep.subr.mxu0 0.0
    %1781 = vmatpush1.msra.mxu0 %v1761
    %1782 = vmatprep.subr.mxu0 0.0
    %1783 = vmatpush1.msra.mxu0 %v1762
    %1784 = vmatprep.subr.mxu0 0.0
    %1785 = vmatpush1.msra.mxu0 0.0
    %1786 = vmatprep.subr.mxu0 0.0
    %1787 = vmatpush1.msra.mxu0 0.0
    %1788 = vmatprep.subr.mxu0 0.0
    %1789 = vmatpush1.msra.mxu0 0.0
    %1790 = vmatprep.subr.mxu0 0.0
    %1791 = vmatpush1.msra.mxu0 0.0
    %1792 = vmatprep.subr.mxu0 0.0
    %1793 = vmatpush1.msra.mxu0 0.0
    %1794 = vmatprep.subr.mxu0 0.0
    %1795 = vmatpush1.msra.mxu0 0.0
    %1796 = vmatprep.subr.mxu0 0.0
    %1797 = vmatpush1.msra.mxu0 0.0
    %1798 = vmatprep.subr.mxu0 0.0
    %1799 = vmatpush1.msra.mxu0 0.0
    %1800 = vmatprep.subr.mxu0 0.0
    %1801 = vmatpush1.msra.mxu0 0.0
    %1802 = vmatprep.subr.mxu0 0.0
    %1803 = vmatpush1.msra.mxu0 0.0
    %1804 = vmatprep.subr.mxu0 0.0
    %1805 = vmatpush1.msra.mxu0 0.0
    %1806 = vmatprep.subr.mxu0 0.0
    %1807 = vmatpush1.msra.mxu0 0.0
    %1808 = vmatprep.subr.mxu0 0.0
    %1809 = vmatpush1.msra.mxu0 0.0
    %1810 = vmatprep.subr.mxu0 0.0
    %1811 = vmatpush1.msra.mxu0 0.0
    %1812 = vmatprep.subr.mxu0 0.0
    %1813 = vmatpush1.msra.mxu0 0.0
    %1814 = vmatprep.subr.mxu0 0.0
    %1815 = vmatpush1.msra.mxu0 0.0
    %1816 = vmatprep.subr.mxu0 0.0
    %1817 = vmatpush1.msra.mxu0 0.0
    %1818 = vmatprep.subr.mxu0 0.0
    %1819 = vmatpush1.msra.mxu0 0.0
    %1820 = vmatprep.subr.mxu0 0.0
    %1821 = vmatpush1.msra.mxu0 0.0
    %1822 = vmatprep.subr.mxu0 0.0
    %1823 = vmatpush1.msra.mxu0 0.0
    %1824 = vmatprep.subr.mxu0 0.0
    %1825 = vmatpush1.msra.mxu0 0.0
    %1826 = vmatprep.subr.mxu0 0.0
    %1827 = vmatpush1.msra.mxu0 0.0
    %1828 = vmatprep.subr.mxu0 0.0
    %1829 = vmatpush1.msra.mxu0 0.0
    %1830 = vmatprep.subr.mxu0 0.0
    %1831 = vmatpush1.msra.mxu0 0.0
    %1832 = vmatprep.subr.mxu0 0.0
    %1833 = vmatpush1.msra.mxu0 0.0
    %1834 = vmatprep.subr.mxu0 0.0
    %1835 = vmatpush1.msra.mxu0 0.0
    %1836 = vmatprep.subr.mxu0 0.0
    %1837 = vmatpush1.msra.mxu0 0.0
    %1838 = vmatprep.subr.mxu0 0.0
    %1839 = vmatpush1.msra.mxu0 0.0
    %1840 = vmatprep.mubr.f32.mxu0 0.0
    %1841 = vmatmul.mubr.f32.gmra.mrb[0].mxu0 %v1771
    %v1842 = vpop.f32.mrb[0].mxu0
    %v1843 = vadd.f32 %v1768, %v1842
    %v1844 = vpop.f32.mrb[0].mxu0
    %1845 = vmatprep.mubr.f32.mxu0 0.0
    %1846 = vmatmul.mubr.f32.gmra.mrb[0].mxu0 %v1774
    %v1847 = vpop.f32.mrb[0].mxu0
    %v1848 = vadd.f32 %v1768, %v1847
    %v1849 = vpop.f32.mrb[0].mxu0
    %1850 = vdwg.mxu0
    %v1851 = vadd.f32 %v276, %v1843
    %v1852 = vadd.f32 %v277, %v1848
    %v1853 = vld [vmem:[%s9] sm:$0x1]
    %v1854 = vld [vmem:[%s10] sm:$0x1]
    %v1855 = vsel %vm86, %v1851, 0.0
    %1856 = vadd.xlane.f32.xlu0 %v1855
    %v1857 = vpop.xlane.xlu0 %1856
    %v1858 = vsel %vm86, %v1852, 0.0
    %1859 = vadd.xlane.f32.xlu0 %v1858
    %v1860 = vpop.xlane.xlu0 %1859
    %v1861 = vrcp.pop 32.0
    %v1862 = vmul.f32 %v1857, %v1861
    %v1863 = vmul.f32 %v1860, %v1861
    %v1864 = vsub.f32 %v1851, %v1862
    %v1865 = vsub.f32 %v1852, %v1863
    %v1866 = vmul.f32 %v1864, %v1864
    %v1867 = vmul.f32 %v1865, %v1865
    %v1868 = vsel %vm86, %v1866, 0.0
    %1869 = vadd.xlane.f32.xlu0 %v1868
    %v1870 = vpop.xlane.xlu0 %1869
    %v1871 = vsel %vm86, %v1867, 0.0
    %1872 = vadd.xlane.f32.xlu0 %v1871
    %v1873 = vpop.xlane.xlu0 %1872
    %v1874 = vmul.f32 %v1870, %v1861
    %v1875 = vmul.f32 %v1873, %v1861
    %v1876 = vadd.f32 %v1874, 1e-05
    %v1877 = vadd.f32 %v1875, 1e-05
    %v1878 = vrsqrt.pop %v1876
    %v1879 = vrsqrt.pop %v1877
    %v1880 = vmul.f32 %v1864, %v1878
    %v1881 = vmul.f32 %v1865, %v1879
    %v1883 = vlaneseq
    %v1884 = vshrl.u32 %v1883, 7
    %v1885 = vsub.s32 0, %v1884
    %v1886 = vrot.slane %v1853, %v1885
    %v1888 = vmul.f32 %v1880, %v1886
    %v1889 = vmul.f32 %v1881, %v1886
    %v1891 = vlaneseq
    %v1892 = vshrl.u32 %v1891, 7
    %v1893 = vsub.s32 0, %v1892
    %v1894 = vrot.slane %v1854, %v1893
    %v1896 = vadd.f32 %v1888, %v1894
    %v1897 = vadd.f32 %v1889, %v1894
    %v1898 = vld [vmem:[#allocation3] sm:$0xff]
    %v1899 = vld [vmem:[#allocation3 + $0x8] sm:$0xff]
    %v1900 = vld [vmem:[#allocation3 + $0x10] sm:$0xff]
    %v1901 = vld [vmem:[#allocation3 + $0x18] sm:$0xff]
    %v1902 = vld [vmem:[%s12] sm:$0x1]
    %v1904 = vlaneseq
    %v1905 = vshrl.u32 %v1904, 7
    %v1906 = vsub.s32 0, %v1905
    %v1907 = vrot.slane %v1902, %v1906
    %v1910 = vsel %vm86, %v1896, 0
    %v1913 = vsel %vm86, %v1897, 0
    %1915 = vmatprep.subr.mxu0 0.0
    %1916 = vmatpush1.msra.mxu0 %v1898
    %1917 = vmatprep.subr.mxu0 0.0
    %1918 = vmatpush1.msra.mxu0 %v1899
    %1919 = vmatprep.subr.mxu0 0.0
    %1920 = vmatpush1.msra.mxu0 %v1900
    %1921 = vmatprep.subr.mxu0 0.0
    %1922 = vmatpush1.msra.mxu0 %v1901
    %1923 = vmatprep.subr.mxu0 0.0
    %1924 = vmatpush1.msra.mxu0 0.0
    %1925 = vmatprep.subr.mxu0 0.0
    %1926 = vmatpush1.msra.mxu0 0.0
    %1927 = vmatprep.subr.mxu0 0.0
    %1928 = vmatpush1.msra.mxu0 0.0
    %1929 = vmatprep.subr.mxu0 0.0
    %1930 = vmatpush1.msra.mxu0 0.0
    %1931 = vmatprep.subr.mxu0 0.0
    %1932 = vmatpush1.msra.mxu0 0.0
    %1933 = vmatprep.subr.mxu0 0.0
    %1934 = vmatpush1.msra.mxu0 0.0
    %1935 = vmatprep.subr.mxu0 0.0
    %1936 = vmatpush1.msra.mxu0 0.0
    %1937 = vmatprep.subr.mxu0 0.0
    %1938 = vmatpush1.msra.mxu0 0.0
    %1939 = vmatprep.subr.mxu0 0.0
    %1940 = vmatpush1.msra.mxu0 0.0
    %1941 = vmatprep.subr.mxu0 0.0
    %1942 = vmatpush1.msra.mxu0 0.0
    %1943 = vmatprep.subr.mxu0 0.0
    %1944 = vmatpush1.msra.mxu0 0.0
    %1945 = vmatprep.subr.mxu0 0.0
    %1946 = vmatpush1.msra.mxu0 0.0
    %1947 = vmatprep.subr.mxu0 0.0
    %1948 = vmatpush1.msra.mxu0 0.0
    %1949 = vmatprep.subr.mxu0 0.0
    %1950 = vmatpush1.msra.mxu0 0.0
    %1951 = vmatprep.subr.mxu0 0.0
    %1952 = vmatpush1.msra.mxu0 0.0
    %1953 = vmatprep.subr.mxu0 0.0
    %1954 = vmatpush1.msra.mxu0 0.0
    %1955 = vmatprep.subr.mxu0 0.0
    %1956 = vmatpush1.msra.mxu0 0.0
    %1957 = vmatprep.subr.mxu0 0.0
    %1958 = vmatpush1.msra.mxu0 0.0
    %1959 = vmatprep.subr.mxu0 0.0
    %1960 = vmatpush1.msra.mxu0 0.0
    %1961 = vmatprep.subr.mxu0 0.0
    %1962 = vmatpush1.msra.mxu0 0.0
    %1963 = vmatprep.subr.mxu0 0.0
    %1964 = vmatpush1.msra.mxu0 0.0
    %1965 = vmatprep.subr.mxu0 0.0
    %1966 = vmatpush1.msra.mxu0 0.0
    %1967 = vmatprep.subr.mxu0 0.0
    %1968 = vmatpush1.msra.mxu0 0.0
    %1969 = vmatprep.subr.mxu0 0.0
    %1970 = vmatpush1.msra.mxu0 0.0
    %1971 = vmatprep.subr.mxu0 0.0
    %1972 = vmatpush1.msra.mxu0 0.0
    %1973 = vmatprep.subr.mxu0 0.0
    %1974 = vmatpush1.msra.mxu0 0.0
    %1975 = vmatprep.subr.mxu0 0.0
    %1976 = vmatpush1.msra.mxu0 0.0
    %1977 = vmatprep.subr.mxu0 0.0
    %1978 = vmatpush1.msra.mxu0 0.0
    %1979 = vmatprep.mubr.f32.mxu0 0.0
    %1980 = vmatmul.mubr.f32.gmra.mrb[0].mxu0 %v1910
    %v1981 = vpop.f32.mrb[0].mxu0
    %v1982 = vadd.f32 %v1907, %v1981
    %v1983 = vpop.f32.mrb[0].mxu0
    %1984 = vmatprep.mubr.f32.mxu0 0.0
    %1985 = vmatmul.mubr.f32.gmra.mrb[0].mxu0 %v1913
    %v1986 = vpop.f32.mrb[0].mxu0
    %v1987 = vadd.f32 %v1907, %v1986
    %v1988 = vpop.f32.mrb[0].mxu0
    %1989 = vdwg.mxu0
    %v1990 = vmax.f32 %v1982, 0.0
    %v1991 = vmax.f32 %v1987, 0.0
    %v1992 = vld [vmem:[%s13] sm:$0xff]
    %v1993 = vld [vmem:[%s13 + $0x8] sm:$0xff]
    %v1994 = vld [vmem:[%s13 + $0x10] sm:$0xff]
    %v1995 = vld [vmem:[%s13 + $0x18] sm:$0xff]
    %v1996 = vld [vmem:[%s13 + $0x20] sm:$0xff]
    %v1997 = vld [vmem:[%s13 + $0x28] sm:$0xff]
    %v1998 = vld [vmem:[%s13 + $0x30] sm:$0xff]
    %v1999 = vld [vmem:[%s13 + $0x38] sm:$0xff]
    %v2000 = vld [vmem:[%s14] sm:$0x1]
    %v2002 = vlaneseq
    %v2003 = vshrl.u32 %v2002, 7
    %v2004 = vsub.s32 0, %v2003
    %v2005 = vrot.slane %v2000, %v2004
    %vm2007 = vcmask 523264
    %v2009 = vsel %vm2007, %v1990, 0
    %v2012 = vsel %vm2007, %v1991, 0
    %2014 = vmatprep.subr.mxu0 0.0
    %2015 = vmatpush1.msra.mxu0 %v1992
    %2016 = vmatprep.subr.mxu0 0.0
    %2017 = vmatpush1.msra.mxu0 %v1993
    %2018 = vmatprep.subr.mxu0 0.0
    %2019 = vmatpush1.msra.mxu0 %v1994
    %2020 = vmatprep.subr.mxu0 0.0
    %2021 = vmatpush1.msra.mxu0 %v1995
    %2022 = vmatprep.subr.mxu0 0.0
    %2023 = vmatpush1.msra.mxu0 %v1996
    %2024 = vmatprep.subr.mxu0 0.0
    %2025 = vmatpush1.msra.mxu0 %v1997
    %2026 = vmatprep.subr.mxu0 0.0
    %2027 = vmatpush1.msra.mxu0 %v1998
    %2028 = vmatprep.subr.mxu0 0.0
    %2029 = vmatpush1.msra.mxu0 %v1999
    %2030 = vmatprep.subr.mxu0 0.0
    %2031 = vmatpush1.msra.mxu0 0.0
    %2032 = vmatprep.subr.mxu0 0.0
    %2033 = vmatpush1.msra.mxu0 0.0
    %2034 = vmatprep.subr.mxu0 0.0
    %2035 = vmatpush1.msra.mxu0 0.0
    %2036 = vmatprep.subr.mxu0 0.0
    %2037 = vmatpush1.msra.mxu0 0.0
    %2038 = vmatprep.subr.mxu0 0.0
    %2039 = vmatpush1.msra.mxu0 0.0
    %2040 = vmatprep.subr.mxu0 0.0
    %2041 = vmatpush1.msra.mxu0 0.0
    %2042 = vmatprep.subr.mxu0 0.0
    %2043 = vmatpush1.msra.mxu0 0.0
    %2044 = vmatprep.subr.mxu0 0.0
    %2045 = vmatpush1.msra.mxu0 0.0
    %2046 = vmatprep.subr.mxu0 0.0
    %2047 = vmatpush1.msra.mxu0 0.0
    %2048 = vmatprep.subr.mxu0 0.0
    %2049 = vmatpush1.msra.mxu0 0.0
    %2050 = vmatprep.subr.mxu0 0.0
    %2051 = vmatpush1.msra.mxu0 0.0
    %2052 = vmatprep.subr.mxu0 0.0
    %2053 = vmatpush1.msra.mxu0 0.0
    %2054 = vmatprep.subr.mxu0 0.0
    %2055 = vmatpush1.msra.mxu0 0.0
    %2056 = vmatprep.subr.mxu0 0.0
    %2057 = vmatpush1.msra.mxu0 0.0
    %2058 = vmatprep.subr.mxu0 0.0
    %2059 = vmatpush1.msra.mxu0 0.0
    %2060 = vmatprep.subr.mxu0 0.0
    %2061 = vmatpush1.msra.mxu0 0.0
    %2062 = vmatprep.subr.mxu0 0.0
    %2063 = vmatpush1.msra.mxu0 0.0
    %2064 = vmatprep.subr.mxu0 0.0
    %2065 = vmatpush1.msra.mxu0 0.0
    %2066 = vmatprep.subr.mxu0 0.0
    %2067 = vmatpush1.msra.mxu0 0.0
    %2068 = vmatprep.subr.mxu0 0.0
    %2069 = vmatpush1.msra.mxu0 0.0
    %2070 = vmatprep.subr.mxu0 0.0
    %2071 = vmatpush1.msra.mxu0 0.0
    %2072 = vmatprep.subr.mxu0 0.0
    %2073 = vmatpush1.msra.mxu0 0.0
    %2074 = vmatprep.subr.mxu0 0.0
    %2075 = vmatpush1.msra.mxu0 0.0
    %2076 = vmatprep.subr.mxu0 0.0
    %2077 = vmatpush1.msra.mxu0 0.0
    %2078 = vmatprep.mubr.f32.mxu0 0.0
    %2079 = vmatmul.mubr.f32.gmra.mrb[0].mxu0 %v2009
    %v2080 = vpop.f32.mrb[0].mxu0
    %v2081 = vadd.f32 %v2005, %v2080
    %v2082 = vpop.f32.mrb[0].mxu0
    %2083 = vmatprep.mubr.f32.mxu0 0.0
    %2084 = vmatmul.mubr.f32.gmra.mrb[0].mxu0 %v2012
    %v2085 = vpop.f32.mrb[0].mxu0
    %v2086 = vadd.f32 %v2005, %v2085
    %v2087 = vpop.f32.mrb[0].mxu0
    %2088 = vdwg.mxu0
    %v2089 = vadd.f32 %v1896, %v2081
    %v2090 = vadd.f32 %v1897, %v2086
    %v2091 = vld [vmem:[%s15] sm:$0x1]
    %v2092 = vld [vmem:[%s16] sm:$0x1]
    %v2093 = vsel %vm86, %v2089, 0.0
    %2094 = vadd.xlane.f32.xlu0 %v2093
    %v2095 = vpop.xlane.xlu0 %2094
    %v2096 = vsel %vm86, %v2090, 0.0
    %2097 = vadd.xlane.f32.xlu0 %v2096
    %v2098 = vpop.xlane.xlu0 %2097
    %v2099 = vmul.f32 %v2095, %v1861
    %v2100 = vmul.f32 %v2098, %v1861
    %v2101 = vsub.f32 %v2089, %v2099
    %v2102 = vsub.f32 %v2090, %v2100
    %v2103 = vmul.f32 %v2101, %v2101
    %v2104 = vmul.f32 %v2102, %v2102
    %v2105 = vsel %vm86, %v2103, 0.0
    %2106 = vadd.xlane.f32.xlu0 %v2105
    %v2107 = vpop.xlane.xlu0 %2106
    %v2108 = vsel %vm86, %v2104, 0.0
    %2109 = vadd.xlane.f32.xlu0 %v2108
    %v2110 = vpop.xlane.xlu0 %2109
    %v2111 = vmul.f32 %v2107, %v1861
    %v2112 = vmul.f32 %v2110, %v1861
    %v2113 = vadd.f32 %v2111, 1e-05
    %v2114 = vadd.f32 %v2112, 1e-05
    %v2115 = vrsqrt.pop %v2113
    %v2116 = vrsqrt.pop %v2114
    %v2117 = vmul.f32 %v2101, %v2115
    %v2118 = vmul.f32 %v2102, %v2116
    %v2120 = vlaneseq
    %v2121 = vshrl.u32 %v2120, 7
    %v2122 = vsub.s32 0, %v2121
    %v2123 = vrot.slane %v2091, %v2122
    %v2125 = vmul.f32 %v2117, %v2123
    %v2126 = vmul.f32 %v2118, %v2123
    %v2128 = vlaneseq
    %v2129 = vshrl.u32 %v2128, 7
    %v2130 = vsub.s32 0, %v2129
    %v2131 = vrot.slane %v2092, %v2130
    %v2133 = vadd.f32 %v2125, %v2131
    %v2134 = vadd.f32 %v2126, %v2131
    %s2135 = scalar_lea.vmem %s5, 32
    %v2136 = vld [vmem:[%s2135] sm:$0xff]
    %v2137 = vld [vmem:[%s2135 + $0x8] sm:$0xff]
    %v2138 = vld [vmem:[%s2135 + $0x10] sm:$0xff]
    %v2139 = vld [vmem:[%s2135 + $0x18] sm:$0xff]
    %s2140 = scalar_lea.vmem %s6, 1
    %v2141 = vld [vmem:[%s2140] sm:$0x1]
    %v2143 = vlaneseq
    %v2144 = vshrl.u32 %v2143, 7
    %v2145 = vsub.s32 0, %v2144
    %v2146 = vrot.slane %v2141, %v2145
    %v2149 = vsel %vm86, %v2133, 0
    %v2152 = vsel %vm86, %v2134, 0
    %2154 = vmatprep.subr.mxu0 0.0
    %2155 = vmatpush1.msra.mxu0 %v2136
    %2156 = vmatprep.subr.mxu0 0.0
    %2157 = vmatpush1.msra.mxu0 %v2137
    %2158 = vmatprep.subr.mxu0 0.0
    %2159 = vmatpush1.msra.mxu0 %v2138
    %2160 = vmatprep.subr.mxu0 0.0
    %2161 = vmatpush1.msra.mxu0 %v2139
    %2162 = vmatprep.subr.mxu0 0.0
    %2163 = vmatpush1.msra.mxu0 0.0
    %2164 = vmatprep.subr.mxu0 0.0
    %2165 = vmatpush1.msra.mxu0 0.0
    %2166 = vmatprep.subr.mxu0 0.0
    %2167 = vmatpush1.msra.mxu0 0.0
    %2168 = vmatprep.subr.mxu0 0.0
    %2169 = vmatpush1.msra.mxu0 0.0
    %2170 = vmatprep.subr.mxu0 0.0
    %2171 = vmatpush1.msra.mxu0 0.0
    %2172 = vmatprep.subr.mxu0 0.0
    %2173 = vmatpush1.msra.mxu0 0.0
    %2174 = vmatprep.subr.mxu0 0.0
    %2175 = vmatpush1.msra.mxu0 0.0
    %2176 = vmatprep.subr.mxu0 0.0
    %2177 = vmatpush1.msra.mxu0 0.0
    %2178 = vmatprep.subr.mxu0 0.0
    %2179 = vmatpush1.msra.mxu0 0.0
    %2180 = vmatprep.subr.mxu0 0.0
    %2181 = vmatpush1.msra.mxu0 0.0
    %2182 = vmatprep.subr.mxu0 0.0
    %2183 = vmatpush1.msra.mxu0 0.0
    %2184 = vmatprep.subr.mxu0 0.0
    %2185 = vmatpush1.msra.mxu0 0.0
    %2186 = vmatprep.subr.mxu0 0.0
    %2187 = vmatpush1.msra.mxu0 0.0
    %2188 = vmatprep.subr.mxu0 0.0
    %2189 = vmatpush1.msra.mxu0 0.0
    %2190 = vmatprep.subr.mxu0 0.0
    %2191 = vmatpush1.msra.mxu0 0.0
    %2192 = vmatprep.subr.mxu0 0.0
    %2193 = vmatpush1.msra.mxu0 0.0
    %2194 = vmatprep.subr.mxu0 0.0
    %2195 = vmatpush1.msra.mxu0 0.0
    %2196 = vmatprep.subr.mxu0 0.0
    %2197 = vmatpush1.msra.mxu0 0.0
    %2198 = vmatprep.subr.mxu0 0.0
    %2199 = vmatpush1.msra.mxu0 0.0
    %2200 = vmatprep.subr.mxu0 0.0
    %2201 = vmatpush1.msra.mxu0 0.0
    %2202 = vmatprep.subr.mxu0 0.0
    %2203 = vmatpush1.msra.mxu0 0.0
    %2204 = vmatprep.subr.mxu0 0.0
    %2205 = vmatpush1.msra.mxu0 0.0
    %2206 = vmatprep.subr.mxu0 0.0
    %2207 = vmatpush1.msra.mxu0 0.0
    %2208 = vmatprep.subr.mxu0 0.0
    %2209 = vmatpush1.msra.mxu0 0.0
    %2210 = vmatprep.subr.mxu0 0.0
    %2211 = vmatpush1.msra.mxu0 0.0
    %2212 = vmatprep.subr.mxu0 0.0
    %2213 = vmatpush1.msra.mxu0 0.0
    %2214 = vmatprep.subr.mxu0 0.0
    %2215 = vmatpush1.msra.mxu0 0.0
    %2216 = vmatprep.subr.mxu0 0.0
    %2217 = vmatpush1.msra.mxu0 0.0
    %2218 = vmatprep.mubr.f32.mxu0 0.0
    %2219 = vmatmul.mubr.f32.gmra.mrb[0].mxu0 %v2149
    %v2220 = vpop.f32.mrb[0].mxu0
    %v2221 = vadd.f32 %v2146, %v2220
    %v2222 = vpop.f32.mrb[0].mxu0
    %2223 = vmatprep.mubr.f32.mxu0 0.0
    %2224 = vmatmul.mubr.f32.gmra.mrb[0].mxu0 %v2152
    %v2225 = vpop.f32.mrb[0].mxu0
    %v2226 = vadd.f32 %v2146, %v2225
    %v2227 = vpop.f32.mrb[0].mxu0
    %2228 = vdwg.mxu0
    %2230 = vrot.lane.b32.xlu0 %v2221, 96
    %v2231 = vpop.permute.xlu0 %2230
    %v2232 = vsel %vm374, %v2221, 0
    %v2234 = vsel %vm374, %v2231, 0
    %2236 = vmatprep.subr.mxu0 0.0
    %2237 = vmatpush1.xpose.msra.mxu0 %v2234
    %2238 = vmatprep.subr.mxu0 0.0
    %2239 = vmatpush1.xpose.msra.mxu0 0.0
    %2240 = vmatprep.subr.mxu0 0.0
    %2241 = vmatpush1.xpose.msra.mxu0 0.0
    %2242 = vmatprep.subr.mxu0 0.0
    %2243 = vmatpush1.xpose.msra.mxu0 0.0
    %2244 = vmatprep.subr.mxu0 0.0
    %2245 = vmatpush1.xpose.msra.mxu0 0.0
    %2246 = vmatprep.subr.mxu0 0.0
    %2247 = vmatpush1.xpose.msra.mxu0 0.0
    %2248 = vmatprep.subr.mxu0 0.0
    %2249 = vmatpush1.xpose.msra.mxu0 0.0
    %2250 = vmatprep.subr.mxu0 0.0
    %2251 = vmatpush1.xpose.msra.mxu0 0.0
    %2252 = vmatprep.subr.mxu0 0.0
    %2253 = vmatpush1.xpose.msra.mxu0 0.0
    %2254 = vmatprep.subr.mxu0 0.0
    %2255 = vmatpush1.xpose.msra.mxu0 0.0
    %2256 = vmatprep.subr.mxu0 0.0
    %2257 = vmatpush1.xpose.msra.mxu0 0.0
    %2258 = vmatprep.subr.mxu0 0.0
    %2259 = vmatpush1.xpose.msra.mxu0 0.0
    %2260 = vmatprep.subr.mxu0 0.0
    %2261 = vmatpush1.xpose.msra.mxu0 0.0
    %2262 = vmatprep.subr.mxu0 0.0
    %2263 = vmatpush1.xpose.msra.mxu0 0.0
    %2264 = vmatprep.subr.mxu0 0.0
    %2265 = vmatpush1.xpose.msra.mxu0 0.0
    %2266 = vmatprep.subr.mxu0 0.0
    %2267 = vmatpush1.xpose.msra.mxu0 0.0
    %2268 = vmatprep.subr.mxu0 0.0
    %2269 = vmatpush1.xpose.msra.mxu0 0.0
    %2270 = vmatprep.subr.mxu0 0.0
    %2271 = vmatpush1.xpose.msra.mxu0 0.0
    %2272 = vmatprep.subr.mxu0 0.0
    %2273 = vmatpush1.xpose.msra.mxu0 0.0
    %2274 = vmatprep.subr.mxu0 0.0
    %2275 = vmatpush1.xpose.msra.mxu0 0.0
    %2276 = vmatprep.subr.mxu0 0.0
    %2277 = vmatpush1.xpose.msra.mxu0 0.0
    %2278 = vmatprep.subr.mxu0 0.0
    %2279 = vmatpush1.xpose.msra.mxu0 0.0
    %2280 = vmatprep.subr.mxu0 0.0
    %2281 = vmatpush1.xpose.msra.mxu0 0.0
    %2282 = vmatprep.subr.mxu0 0.0
    %2283 = vmatpush1.xpose.msra.mxu0 0.0
    %2284 = vmatprep.subr.mxu0 0.0
    %2285 = vmatpush1.xpose.msra.mxu0 0.0
    %2286 = vmatprep.subr.mxu0 0.0
    %2287 = vmatpush1.xpose.msra.mxu0 0.0
    %2288 = vmatprep.subr.mxu0 0.0
    %2289 = vmatpush1.xpose.msra.mxu0 0.0
    %2290 = vmatprep.subr.mxu0 0.0
    %2291 = vmatpush1.xpose.msra.mxu0 0.0
    %2292 = vmatprep.subr.mxu0 0.0
    %2293 = vmatpush1.xpose.msra.mxu0 0.0
    %2294 = vmatprep.subr.mxu0 0.0
    %2295 = vmatpush1.xpose.msra.mxu0 0.0
    %2296 = vmatprep.subr.mxu0 0.0
    %2297 = vmatpush1.xpose.msra.mxu0 0.0
    %2298 = vmatprep.subr.mxu0 0.0
    %2299 = vmatpush1.xpose.msra.mxu0 0.0
    %2300 = vmatprep.mubr.f32.mxu0 0.0
    %2301 = vmatmul.mubr.f32.gmra.mrb[0].mxu0 %v2232
    %v2302 = vpop.f32.mrb[0].mxu0
    %v2303 = vadd.f32 0.0, %v2302
    %v2304 = vpop.f32.mrb[0].mxu0
    %2305 = vdwg.mxu0
    %v2306 = vmul.f32 %v2303, 0.35355338
    %v2307 = vadd.f32 %v2306, %v453
    %v2308 = vsel %vm374, %v2307, -inf
    %2309 = vmax.xlane.f32.xlu0 %v2308
    %v2310 = vpop.xlane.xlu0 %2309
    %v2311 = vsub.f32 %v2307, %v2310
    %v2312 = vmul.f32 %v2311, 1.442695
    %v2313 = vpow.pop %v2312
    %v2314 = vsel %vm374, %v2313, 0.0
    %2315 = vadd.xlane.f32.xlu0 %v2314
    %v2316 = vpop.xlane.xlu0 %2315
    %v2317 = vmax.f32 %v2316, 1e-30
    %v2318 = vrcp.pop %v2317
    %v2319 = vmul.f32 %v2313, %v2318
    %2320 = vrot.lane.b32.xlu0 %v2221, 64
    %v2321 = vpop.permute.xlu0 %2320
    %v2324 = vsel %vm374, %v2319, 0
    %2326 = vmatprep.subr.mxu0 0.0
    %2327 = vmatpush1.msra.mxu0 %v2321
    %2328 = vmatprep.subr.mxu0 0.0
    %2329 = vmatpush1.msra.mxu0 0.0
    %2330 = vmatprep.subr.mxu0 0.0
    %2331 = vmatpush1.msra.mxu0 0.0
    %2332 = vmatprep.subr.mxu0 0.0
    %2333 = vmatpush1.msra.mxu0 0.0
    %2334 = vmatprep.subr.mxu0 0.0
    %2335 = vmatpush1.msra.mxu0 0.0
    %2336 = vmatprep.subr.mxu0 0.0
    %2337 = vmatpush1.msra.mxu0 0.0
    %2338 = vmatprep.subr.mxu0 0.0
    %2339 = vmatpush1.msra.mxu0 0.0
    %2340 = vmatprep.subr.mxu0 0.0
    %2341 = vmatpush1.msra.mxu0 0.0
    %2342 = vmatprep.subr.mxu0 0.0
    %2343 = vmatpush1.msra.mxu0 0.0
    %2344 = vmatprep.subr.mxu0 0.0
    %2345 = vmatpush1.msra.mxu0 0.0
    %2346 = vmatprep.subr.mxu0 0.0
    %2347 = vmatpush1.msra.mxu0 0.0
    %2348 = vmatprep.subr.mxu0 0.0
    %2349 = vmatpush1.msra.mxu0 0.0
    %2350 = vmatprep.subr.mxu0 0.0
    %2351 = vmatpush1.msra.mxu0 0.0
    %2352 = vmatprep.subr.mxu0 0.0
    %2353 = vmatpush1.msra.mxu0 0.0
    %2354 = vmatprep.subr.mxu0 0.0
    %2355 = vmatpush1.msra.mxu0 0.0
    %2356 = vmatprep.subr.mxu0 0.0
    %2357 = vmatpush1.msra.mxu0 0.0
    %2358 = vmatprep.subr.mxu0 0.0
    %2359 = vmatpush1.msra.mxu0 0.0
    %2360 = vmatprep.subr.mxu0 0.0
    %2361 = vmatpush1.msra.mxu0 0.0
    %2362 = vmatprep.subr.mxu0 0.0
    %2363 = vmatpush1.msra.mxu0 0.0
    %2364 = vmatprep.subr.mxu0 0.0
    %2365 = vmatpush1.msra.mxu0 0.0
    %2366 = vmatprep.subr.mxu0 0.0
    %2367 = vmatpush1.msra.mxu0 0.0
    %2368 = vmatprep.subr.mxu0 0.0
    %2369 = vmatpush1.msra.mxu0 0.0
    %2370 = vmatprep.subr.mxu0 0.0
    %2371 = vmatpush1.msra.mxu0 0.0
    %2372 = vmatprep.subr.mxu0 0.0
    %2373 = vmatpush1.msra.mxu0 0.0
    %2374 = vmatprep.subr.mxu0 0.0
    %2375 = vmatpush1.msra.mxu0 0.0
    %2376 = vmatprep.subr.mxu0 0.0
    %2377 = vmatpush1.msra.mxu0 0.0
    %2378 = vmatprep.subr.mxu0 0.0
    %2379 = vmatpush1.msra.mxu0 0.0
    %2380 = vmatprep.subr.mxu0 0.0
    %2381 = vmatpush1.msra.mxu0 0.0
    %2382 = vmatprep.subr.mxu0 0.0
    %2383 = vmatpush1.msra.mxu0 0.0
    %2384 = vmatprep.subr.mxu0 0.0
    %2385 = vmatpush1.msra.mxu0 0.0
    %2386 = vmatprep.subr.mxu0 0.0
    %2387 = vmatpush1.msra.mxu0 0.0
    %2388 = vmatprep.subr.mxu0 0.0
    %2389 = vmatpush1.msra.mxu0 0.0
    %2390 = vmatprep.mubr.f32.mxu0 0.0
    %2391 = vmatmul.mubr.f32.gmra.mrb[0].mxu0 %v2324
    %v2392 = vpop.f32.mrb[0].mxu0
    %v2393 = vadd.f32 0.0, %v2392
    %v2394 = vpop.f32.mrb[0].mxu0
    %2395 = vdwg.mxu0
    %2396 = vst.msk [vmem:[#allocation2] sm:$0xff] %vm374, %v2393
    %2397 = vrot.lane.b32.xlu0 %v2221, 120
    %v2398 = vpop.permute.xlu0 %2397
    %2399 = vrot.lane.b32.xlu0 %v2221, 88
    %v2400 = vpop.permute.xlu0 %2399
    %v2401 = vsel %vm374, %v2398, 0
    %v2403 = vsel %vm374, %v2400, 0
    %2405 = vmatprep.subr.mxu0 0.0
    %2406 = vmatpush1.xpose.msra.mxu0 %v2403
    %2407 = vmatprep.subr.mxu0 0.0
    %2408 = vmatpush1.xpose.msra.mxu0 0.0
    %2409 = vmatprep.subr.mxu0 0.0
    %2410 = vmatpush1.xpose.msra.mxu0 0.0
    %2411 = vmatprep.subr.mxu0 0.0
    %2412 = vmatpush1.xpose.msra.mxu0 0.0
    %2413 = vmatprep.subr.mxu0 0.0
    %2414 = vmatpush1.xpose.msra.mxu0 0.0
    %2415 = vmatprep.subr.mxu0 0.0
    %2416 = vmatpush1.xpose.msra.mxu0 0.0
    %2417 = vmatprep.subr.mxu0 0.0
    %2418 = vmatpush1.xpose.msra.mxu0 0.0
    %2419 = vmatprep.subr.mxu0 0.0
    %2420 = vmatpush1.xpose.msra.mxu0 0.0
    %2421 = vmatprep.subr.mxu0 0.0
    %2422 = vmatpush1.xpose.msra.mxu0 0.0
    %2423 = vmatprep.subr.mxu0 0.0
    %2424 = vmatpush1.xpose.msra.mxu0 0.0
    %2425 = vmatprep.subr.mxu0 0.0
    %2426 = vmatpush1.xpose.msra.mxu0 0.0
    %2427 = vmatprep.subr.mxu0 0.0
    %2428 = vmatpush1.xpose.msra.mxu0 0.0
    %2429 = vmatprep.subr.mxu0 0.0
    %2430 = vmatpush1.xpose.msra.mxu0 0.0
    %2431 = vmatprep.subr.mxu0 0.0
    %2432 = vmatpush1.xpose.msra.mxu0 0.0
    %2433 = vmatprep.subr.mxu0 0.0
    %2434 = vmatpush1.xpose.msra.mxu0 0.0
    %2435 = vmatprep.subr.mxu0 0.0
    %2436 = vmatpush1.xpose.msra.mxu0 0.0
    %2437 = vmatprep.subr.mxu0 0.0
    %2438 = vmatpush1.xpose.msra.mxu0 0.0
    %2439 = vmatprep.subr.mxu0 0.0
    %2440 = vmatpush1.xpose.msra.mxu0 0.0
    %2441 = vmatprep.subr.mxu0 0.0
    %2442 = vmatpush1.xpose.msra.mxu0 0.0
    %2443 = vmatprep.subr.mxu0 0.0
    %2444 = vmatpush1.xpose.msra.mxu0 0.0
    %2445 = vmatprep.subr.mxu0 0.0
    %2446 = vmatpush1.xpose.msra.mxu0 0.0
    %2447 = vmatprep.subr.mxu0 0.0
    %2448 = vmatpush1.xpose.msra.mxu0 0.0
    %2449 = vmatprep.subr.mxu0 0.0
    %2450 = vmatpush1.xpose.msra.mxu0 0.0
    %2451 = vmatprep.subr.mxu0 0.0
    %2452 = vmatpush1.xpose.msra.mxu0 0.0
    %2453 = vmatprep.subr.mxu0 0.0
    %2454 = vmatpush1.xpose.msra.mxu0 0.0
    %2455 = vmatprep.subr.mxu0 0.0
    %2456 = vmatpush1.xpose.msra.mxu0 0.0
    %2457 = vmatprep.subr.mxu0 0.0
    %2458 = vmatpush1.xpose.msra.mxu0 0.0
    %2459 = vmatprep.subr.mxu0 0.0
    %2460 = vmatpush1.xpose.msra.mxu0 0.0
    %2461 = vmatprep.subr.mxu0 0.0
    %2462 = vmatpush1.xpose.msra.mxu0 0.0
    %2463 = vmatprep.subr.mxu0 0.0
    %2464 = vmatpush1.xpose.msra.mxu0 0.0
    %2465 = vmatprep.subr.mxu0 0.0
    %2466 = vmatpush1.xpose.msra.mxu0 0.0
    %2467 = vmatprep.subr.mxu0 0.0
    %2468 = vmatpush1.xpose.msra.mxu0 0.0
    %2469 = vmatprep.mubr.f32.mxu0 0.0
    %2470 = vmatmul.mubr.f32.gmra.mrb[0].mxu0 %v2401
    %v2471 = vpop.f32.mrb[0].mxu0
    %v2472 = vadd.f32 0.0, %v2471
    %v2473 = vpop.f32.mrb[0].mxu0
    %2474 = vdwg.mxu0
    %v2475 = vmul.f32 %v2472, 0.35355338
    %v2476 = vadd.f32 %v2475, %v453
    %v2477 = vsel %vm374, %v2476, -inf
    %2478 = vmax.xlane.f32.xlu0 %v2477
    %v2479 = vpop.xlane.xlu0 %2478
    %v2480 = vsub.f32 %v2476, %v2479
    %v2481 = vmul.f32 %v2480, 1.442695
    %v2482 = vpow.pop %v2481
    %v2483 = vsel %vm374, %v2482, 0.0
    %2484 = vadd.xlane.f32.xlu0 %v2483
    %v2485 = vpop.xlane.xlu0 %2484
    %v2486 = vmax.f32 %v2485, 1e-30
    %v2487 = vrcp.pop %v2486
    %v2488 = vmul.f32 %v2482, %v2487
    %2489 = vrot.lane.b32.xlu0 %v2221, 56
    %v2490 = vpop.permute.xlu0 %2489
    %v2493 = vsel %vm374, %v2488, 0
    %2495 = vmatprep.subr.mxu0 0.0
    %2496 = vmatpush1.msra.mxu0 %v2490
    %2497 = vmatprep.subr.mxu0 0.0
    %2498 = vmatpush1.msra.mxu0 0.0
    %2499 = vmatprep.subr.mxu0 0.0
    %2500 = vmatpush1.msra.mxu0 0.0
    %2501 = vmatprep.subr.mxu0 0.0
    %2502 = vmatpush1.msra.mxu0 0.0
    %2503 = vmatprep.subr.mxu0 0.0
    %2504 = vmatpush1.msra.mxu0 0.0
    %2505 = vmatprep.subr.mxu0 0.0
    %2506 = vmatpush1.msra.mxu0 0.0
    %2507 = vmatprep.subr.mxu0 0.0
    %2508 = vmatpush1.msra.mxu0 0.0
    %2509 = vmatprep.subr.mxu0 0.0
    %2510 = vmatpush1.msra.mxu0 0.0
    %2511 = vmatprep.subr.mxu0 0.0
    %2512 = vmatpush1.msra.mxu0 0.0
    %2513 = vmatprep.subr.mxu0 0.0
    %2514 = vmatpush1.msra.mxu0 0.0
    %2515 = vmatprep.subr.mxu0 0.0
    %2516 = vmatpush1.msra.mxu0 0.0
    %2517 = vmatprep.subr.mxu0 0.0
    %2518 = vmatpush1.msra.mxu0 0.0
    %2519 = vmatprep.subr.mxu0 0.0
    %2520 = vmatpush1.msra.mxu0 0.0
    %2521 = vmatprep.subr.mxu0 0.0
    %2522 = vmatpush1.msra.mxu0 0.0
    %2523 = vmatprep.subr.mxu0 0.0
    %2524 = vmatpush1.msra.mxu0 0.0
    %2525 = vmatprep.subr.mxu0 0.0
    %2526 = vmatpush1.msra.mxu0 0.0
    %2527 = vmatprep.subr.mxu0 0.0
    %2528 = vmatpush1.msra.mxu0 0.0
    %2529 = vmatprep.subr.mxu0 0.0
    %2530 = vmatpush1.msra.mxu0 0.0
    %2531 = vmatprep.subr.mxu0 0.0
    %2532 = vmatpush1.msra.mxu0 0.0
    %2533 = vmatprep.subr.mxu0 0.0
    %2534 = vmatpush1.msra.mxu0 0.0
    %2535 = vmatprep.subr.mxu0 0.0
    %2536 = vmatpush1.msra.mxu0 0.0
    %2537 = vmatprep.subr.mxu0 0.0
    %2538 = vmatpush1.msra.mxu0 0.0
    %2539 = vmatprep.subr.mxu0 0.0
    %2540 = vmatpush1.msra.mxu0 0.0
    %2541 = vmatprep.subr.mxu0 0.0
    %2542 = vmatpush1.msra.mxu0 0.0
    %2543 = vmatprep.subr.mxu0 0.0
    %2544 = vmatpush1.msra.mxu0 0.0
    %2545 = vmatprep.subr.mxu0 0.0
    %2546 = vmatpush1.msra.mxu0 0.0
    %2547 = vmatprep.subr.mxu0 0.0
    %2548 = vmatpush1.msra.mxu0 0.0
    %2549 = vmatprep.subr.mxu0 0.0
    %2550 = vmatpush1.msra.mxu0 0.0
    %2551 = vmatprep.subr.mxu0 0.0
    %2552 = vmatpush1.msra.mxu0 0.0
    %2553 = vmatprep.subr.mxu0 0.0
    %2554 = vmatpush1.msra.mxu0 0.0
    %2555 = vmatprep.subr.mxu0 0.0
    %2556 = vmatpush1.msra.mxu0 0.0
    %2557 = vmatprep.subr.mxu0 0.0
    %2558 = vmatpush1.msra.mxu0 0.0
    %2559 = vmatprep.mubr.f32.mxu0 0.0
    %2560 = vmatmul.mubr.f32.gmra.mrb[0].mxu0 %v2493
    %v2561 = vpop.f32.mrb[0].mxu0
    %v2562 = vadd.f32 0.0, %v2561
    %v2563 = vpop.f32.mrb[0].mxu0
    %2564 = vdwg.mxu0
    %2566 = vrot.lane.b32.xlu0 %v2562, 8
    %v2567 = vpop.permute.xlu0 %2566
    %2569 = vst.msk [vmem:[#allocation2] sm:$0xff] %vm716, %v2567
    %2570 = vrot.lane.b32.xlu0 %v2221, 112
    %v2571 = vpop.permute.xlu0 %2570
    %2572 = vrot.lane.b32.xlu0 %v2221, 80
    %v2573 = vpop.permute.xlu0 %2572
    %v2574 = vsel %vm374, %v2571, 0
    %v2576 = vsel %vm374, %v2573, 0
    %2578 = vmatprep.subr.mxu0 0.0
    %2579 = vmatpush1.xpose.msra.mxu0 %v2576
    %2580 = vmatprep.subr.mxu0 0.0
    %2581 = vmatpush1.xpose.msra.mxu0 0.0
    %2582 = vmatprep.subr.mxu0 0.0
    %2583 = vmatpush1.xpose.msra.mxu0 0.0
    %2584 = vmatprep.subr.mxu0 0.0
    %2585 = vmatpush1.xpose.msra.mxu0 0.0
    %2586 = vmatprep.subr.mxu0 0.0
    %2587 = vmatpush1.xpose.msra.mxu0 0.0
    %2588 = vmatprep.subr.mxu0 0.0
    %2589 = vmatpush1.xpose.msra.mxu0 0.0
    %2590 = vmatprep.subr.mxu0 0.0
    %2591 = vmatpush1.xpose.msra.mxu0 0.0
    %2592 = vmatprep.subr.mxu0 0.0
    %2593 = vmatpush1.xpose.msra.mxu0 0.0
    %2594 = vmatprep.subr.mxu0 0.0
    %2595 = vmatpush1.xpose.msra.mxu0 0.0
    %2596 = vmatprep.subr.mxu0 0.0
    %2597 = vmatpush1.xpose.msra.mxu0 0.0
    %2598 = vmatprep.subr.mxu0 0.0
    %2599 = vmatpush1.xpose.msra.mxu0 0.0
    %2600 = vmatprep.subr.mxu0 0.0
    %2601 = vmatpush1.xpose.msra.mxu0 0.0
    %2602 = vmatprep.subr.mxu0 0.0
    %2603 = vmatpush1.xpose.msra.mxu0 0.0
    %2604 = vmatprep.subr.mxu0 0.0
    %2605 = vmatpush1.xpose.msra.mxu0 0.0
    %2606 = vmatprep.subr.mxu0 0.0
    %2607 = vmatpush1.xpose.msra.mxu0 0.0
    %2608 = vmatprep.subr.mxu0 0.0
    %2609 = vmatpush1.xpose.msra.mxu0 0.0
    %2610 = vmatprep.subr.mxu0 0.0
    %2611 = vmatpush1.xpose.msra.mxu0 0.0
    %2612 = vmatprep.subr.mxu0 0.0
    %2613 = vmatpush1.xpose.msra.mxu0 0.0
    %2614 = vmatprep.subr.mxu0 0.0
    %2615 = vmatpush1.xpose.msra.mxu0 0.0
    %2616 = vmatprep.subr.mxu0 0.0
    %2617 = vmatpush1.xpose.msra.mxu0 0.0
    %2618 = vmatprep.subr.mxu0 0.0
    %2619 = vmatpush1.xpose.msra.mxu0 0.0
    %2620 = vmatprep.subr.mxu0 0.0
    %2621 = vmatpush1.xpose.msra.mxu0 0.0
    %2622 = vmatprep.subr.mxu0 0.0
    %2623 = vmatpush1.xpose.msra.mxu0 0.0
    %2624 = vmatprep.subr.mxu0 0.0
    %2625 = vmatpush1.xpose.msra.mxu0 0.0
    %2626 = vmatprep.subr.mxu0 0.0
    %2627 = vmatpush1.xpose.msra.mxu0 0.0
    %2628 = vmatprep.subr.mxu0 0.0
    %2629 = vmatpush1.xpose.msra.mxu0 0.0
    %2630 = vmatprep.subr.mxu0 0.0
    %2631 = vmatpush1.xpose.msra.mxu0 0.0
    %2632 = vmatprep.subr.mxu0 0.0
    %2633 = vmatpush1.xpose.msra.mxu0 0.0
    %2634 = vmatprep.subr.mxu0 0.0
    %2635 = vmatpush1.xpose.msra.mxu0 0.0
    %2636 = vmatprep.subr.mxu0 0.0
    %2637 = vmatpush1.xpose.msra.mxu0 0.0
    %2638 = vmatprep.subr.mxu0 0.0
    %2639 = vmatpush1.xpose.msra.mxu0 0.0
    %2640 = vmatprep.subr.mxu0 0.0
    %2641 = vmatpush1.xpose.msra.mxu0 0.0
    %2642 = vmatprep.mubr.f32.mxu0 0.0
    %2643 = vmatmul.mubr.f32.gmra.mrb[0].mxu0 %v2574
    %v2644 = vpop.f32.mrb[0].mxu0
    %v2645 = vadd.f32 0.0, %v2644
    %v2646 = vpop.f32.mrb[0].mxu0
    %2647 = vdwg.mxu0
    %v2648 = vmul.f32 %v2645, 0.35355338
    %v2649 = vadd.f32 %v2648, %v453
    %v2650 = vsel %vm374, %v2649, -inf
    %2651 = vmax.xlane.f32.xlu0 %v2650
    %v2652 = vpop.xlane.xlu0 %2651
    %v2653 = vsub.f32 %v2649, %v2652
    %v2654 = vmul.f32 %v2653, 1.442695
    %v2655 = vpow.pop %v2654
    %v2656 = vsel %vm374, %v2655, 0.0
    %2657 = vadd.xlane.f32.xlu0 %v2656
    %v2658 = vpop.xlane.xlu0 %2657
    %v2659 = vmax.f32 %v2658, 1e-30
    %v2660 = vrcp.pop %v2659
    %v2661 = vmul.f32 %v2655, %v2660
    %2662 = vrot.lane.b32.xlu0 %v2221, 48
    %v2663 = vpop.permute.xlu0 %2662
    %v2666 = vsel %vm374, %v2661, 0
    %2668 = vmatprep.subr.mxu0 0.0
    %2669 = vmatpush1.msra.mxu0 %v2663
    %2670 = vmatprep.subr.mxu0 0.0
    %2671 = vmatpush1.msra.mxu0 0.0
    %2672 = vmatprep.subr.mxu0 0.0
    %2673 = vmatpush1.msra.mxu0 0.0
    %2674 = vmatprep.subr.mxu0 0.0
    %2675 = vmatpush1.msra.mxu0 0.0
    %2676 = vmatprep.subr.mxu0 0.0
    %2677 = vmatpush1.msra.mxu0 0.0
    %2678 = vmatprep.subr.mxu0 0.0
    %2679 = vmatpush1.msra.mxu0 0.0
    %2680 = vmatprep.subr.mxu0 0.0
    %2681 = vmatpush1.msra.mxu0 0.0
    %2682 = vmatprep.subr.mxu0 0.0
    %2683 = vmatpush1.msra.mxu0 0.0
    %2684 = vmatprep.subr.mxu0 0.0
    %2685 = vmatpush1.msra.mxu0 0.0
    %2686 = vmatprep.subr.mxu0 0.0
    %2687 = vmatpush1.msra.mxu0 0.0
    %2688 = vmatprep.subr.mxu0 0.0
    %2689 = vmatpush1.msra.mxu0 0.0
    %2690 = vmatprep.subr.mxu0 0.0
    %2691 = vmatpush1.msra.mxu0 0.0
    %2692 = vmatprep.subr.mxu0 0.0
    %2693 = vmatpush1.msra.mxu0 0.0
    %2694 = vmatprep.subr.mxu0 0.0
    %2695 = vmatpush1.msra.mxu0 0.0
    %2696 = vmatprep.subr.mxu0 0.0
    %2697 = vmatpush1.msra.mxu0 0.0
    %2698 = vmatprep.subr.mxu0 0.0
    %2699 = vmatpush1.msra.mxu0 0.0
    %2700 = vmatprep.subr.mxu0 0.0
    %2701 = vmatpush1.msra.mxu0 0.0
    %2702 = vmatprep.subr.mxu0 0.0
    %2703 = vmatpush1.msra.mxu0 0.0
    %2704 = vmatprep.subr.mxu0 0.0
    %2705 = vmatpush1.msra.mxu0 0.0
    %2706 = vmatprep.subr.mxu0 0.0
    %2707 = vmatpush1.msra.mxu0 0.0
    %2708 = vmatprep.subr.mxu0 0.0
    %2709 = vmatpush1.msra.mxu0 0.0
    %2710 = vmatprep.subr.mxu0 0.0
    %2711 = vmatpush1.msra.mxu0 0.0
    %2712 = vmatprep.subr.mxu0 0.0
    %2713 = vmatpush1.msra.mxu0 0.0
    %2714 = vmatprep.subr.mxu0 0.0
    %2715 = vmatpush1.msra.mxu0 0.0
    %2716 = vmatprep.subr.mxu0 0.0
    %2717 = vmatpush1.msra.mxu0 0.0
    %2718 = vmatprep.subr.mxu0 0.0
    %2719 = vmatpush1.msra.mxu0 0.0
    %2720 = vmatprep.subr.mxu0 0.0
    %2721 = vmatpush1.msra.mxu0 0.0
    %2722 = vmatprep.subr.mxu0 0.0
    %2723 = vmatpush1.msra.mxu0 0.0
    %2724 = vmatprep.subr.mxu0 0.0
    %2725 = vmatpush1.msra.mxu0 0.0
    %2726 = vmatprep.subr.mxu0 0.0
    %2727 = vmatpush1.msra.mxu0 0.0
    %2728 = vmatprep.subr.mxu0 0.0
    %2729 = vmatpush1.msra.mxu0 0.0
    %2730 = vmatprep.subr.mxu0 0.0
    %2731 = vmatpush1.msra.mxu0 0.0
    %2732 = vmatprep.mubr.f32.mxu0 0.0
    %2733 = vmatmul.mubr.f32.gmra.mrb[0].mxu0 %v2666
    %v2734 = vpop.f32.mrb[0].mxu0
    %v2735 = vadd.f32 0.0, %v2734
    %v2736 = vpop.f32.mrb[0].mxu0
    %2737 = vdwg.mxu0
    %2739 = vrot.lane.b32.xlu0 %v2735, 16
    %v2740 = vpop.permute.xlu0 %2739
    %2742 = vst.msk [vmem:[#allocation2] sm:$0xff] %vm890, %v2740
    %2743 = vrot.lane.b32.xlu0 %v2221, 104
    %v2744 = vpop.permute.xlu0 %2743
    %2745 = vrot.lane.b32.xlu0 %v2221, 72
    %v2746 = vpop.permute.xlu0 %2745
    %v2747 = vsel %vm374, %v2744, 0
    %v2749 = vsel %vm374, %v2746, 0
    %2751 = vmatprep.subr.mxu0 0.0
    %2752 = vmatpush1.xpose.msra.mxu0 %v2749
    %2753 = vmatprep.subr.mxu0 0.0
    %2754 = vmatpush1.xpose.msra.mxu0 0.0
    %2755 = vmatprep.subr.mxu0 0.0
    %2756 = vmatpush1.xpose.msra.mxu0 0.0
    %2757 = vmatprep.subr.mxu0 0.0
    %2758 = vmatpush1.xpose.msra.mxu0 0.0
    %2759 = vmatprep.subr.mxu0 0.0
    %2760 = vmatpush1.xpose.msra.mxu0 0.0
    %2761 = vmatprep.subr.mxu0 0.0
    %2762 = vmatpush1.xpose.msra.mxu0 0.0
    %2763 = vmatprep.subr.mxu0 0.0
    %2764 = vmatpush1.xpose.msra.mxu0 0.0
    %2765 = vmatprep.subr.mxu0 0.0
    %2766 = vmatpush1.xpose.msra.mxu0 0.0
    %2767 = vmatprep.subr.mxu0 0.0
    %2768 = vmatpush1.xpose.msra.mxu0 0.0
    %2769 = vmatprep.subr.mxu0 0.0
    %2770 = vmatpush1.xpose.msra.mxu0 0.0
    %2771 = vmatprep.subr.mxu0 0.0
    %2772 = vmatpush1.xpose.msra.mxu0 0.0
    %2773 = vmatprep.subr.mxu0 0.0
    %2774 = vmatpush1.xpose.msra.mxu0 0.0
    %2775 = vmatprep.subr.mxu0 0.0
    %2776 = vmatpush1.xpose.msra.mxu0 0.0
    %2777 = vmatprep.subr.mxu0 0.0
    %2778 = vmatpush1.xpose.msra.mxu0 0.0
    %2779 = vmatprep.subr.mxu0 0.0
    %2780 = vmatpush1.xpose.msra.mxu0 0.0
    %2781 = vmatprep.subr.mxu0 0.0
    %2782 = vmatpush1.xpose.msra.mxu0 0.0
    %2783 = vmatprep.subr.mxu0 0.0
    %2784 = vmatpush1.xpose.msra.mxu0 0.0
    %2785 = vmatprep.subr.mxu0 0.0
    %2786 = vmatpush1.xpose.msra.mxu0 0.0
    %2787 = vmatprep.subr.mxu0 0.0
    %2788 = vmatpush1.xpose.msra.mxu0 0.0
    %2789 = vmatprep.subr.mxu0 0.0
    %2790 = vmatpush1.xpose.msra.mxu0 0.0
    %2791 = vmatprep.subr.mxu0 0.0
    %2792 = vmatpush1.xpose.msra.mxu0 0.0
    %2793 = vmatprep.subr.mxu0 0.0
    %2794 = vmatpush1.xpose.msra.mxu0 0.0
    %2795 = vmatprep.subr.mxu0 0.0
    %2796 = vmatpush1.xpose.msra.mxu0 0.0
    %2797 = vmatprep.subr.mxu0 0.0
    %2798 = vmatpush1.xpose.msra.mxu0 0.0
    %2799 = vmatprep.subr.mxu0 0.0
    %2800 = vmatpush1.xpose.msra.mxu0 0.0
    %2801 = vmatprep.subr.mxu0 0.0
    %2802 = vmatpush1.xpose.msra.mxu0 0.0
    %2803 = vmatprep.subr.mxu0 0.0
    %2804 = vmatpush1.xpose.msra.mxu0 0.0
    %2805 = vmatprep.subr.mxu0 0.0
    %2806 = vmatpush1.xpose.msra.mxu0 0.0
    %2807 = vmatprep.subr.mxu0 0.0
    %2808 = vmatpush1.xpose.msra.mxu0 0.0
    %2809 = vmatprep.subr.mxu0 0.0
    %2810 = vmatpush1.xpose.msra.mxu0 0.0
    %2811 = vmatprep.subr.mxu0 0.0
    %2812 = vmatpush1.xpose.msra.mxu0 0.0
    %2813 = vmatprep.subr.mxu0 0.0
    %2814 = vmatpush1.xpose.msra.mxu0 0.0
    %2815 = vmatprep.mubr.f32.mxu0 0.0
    %2816 = vmatmul.mubr.f32.gmra.mrb[0].mxu0 %v2747
    %v2817 = vpop.f32.mrb[0].mxu0
    %v2818 = vadd.f32 0.0, %v2817
    %v2819 = vpop.f32.mrb[0].mxu0
    %2820 = vdwg.mxu0
    %v2821 = vmul.f32 %v2818, 0.35355338
    %v2822 = vadd.f32 %v2821, %v453
    %v2823 = vsel %vm374, %v2822, -inf
    %2824 = vmax.xlane.f32.xlu0 %v2823
    %v2825 = vpop.xlane.xlu0 %2824
    %v2826 = vsub.f32 %v2822, %v2825
    %v2827 = vmul.f32 %v2826, 1.442695
    %v2828 = vpow.pop %v2827
    %v2829 = vsel %vm374, %v2828, 0.0
    %2830 = vadd.xlane.f32.xlu0 %v2829
    %v2831 = vpop.xlane.xlu0 %2830
    %v2832 = vmax.f32 %v2831, 1e-30
    %v2833 = vrcp.pop %v2832
    %v2834 = vmul.f32 %v2828, %v2833
    %2835 = vrot.lane.b32.xlu0 %v2221, 40
    %v2836 = vpop.permute.xlu0 %2835
    %v2839 = vsel %vm374, %v2834, 0
    %2841 = vmatprep.subr.mxu0 0.0
    %2842 = vmatpush1.msra.mxu0 %v2836
    %2843 = vmatprep.subr.mxu0 0.0
    %2844 = vmatpush1.msra.mxu0 0.0
    %2845 = vmatprep.subr.mxu0 0.0
    %2846 = vmatpush1.msra.mxu0 0.0
    %2847 = vmatprep.subr.mxu0 0.0
    %2848 = vmatpush1.msra.mxu0 0.0
    %2849 = vmatprep.subr.mxu0 0.0
    %2850 = vmatpush1.msra.mxu0 0.0
    %2851 = vmatprep.subr.mxu0 0.0
    %2852 = vmatpush1.msra.mxu0 0.0
    %2853 = vmatprep.subr.mxu0 0.0
    %2854 = vmatpush1.msra.mxu0 0.0
    %2855 = vmatprep.subr.mxu0 0.0
    %2856 = vmatpush1.msra.mxu0 0.0
    %2857 = vmatprep.subr.mxu0 0.0
    %2858 = vmatpush1.msra.mxu0 0.0
    %2859 = vmatprep.subr.mxu0 0.0
    %2860 = vmatpush1.msra.mxu0 0.0
    %2861 = vmatprep.subr.mxu0 0.0
    %2862 = vmatpush1.msra.mxu0 0.0
    %2863 = vmatprep.subr.mxu0 0.0
    %2864 = vmatpush1.msra.mxu0 0.0
    %2865 = vmatprep.subr.mxu0 0.0
    %2866 = vmatpush1.msra.mxu0 0.0
    %2867 = vmatprep.subr.mxu0 0.0
    %2868 = vmatpush1.msra.mxu0 0.0
    %2869 = vmatprep.subr.mxu0 0.0
    %2870 = vmatpush1.msra.mxu0 0.0
    %2871 = vmatprep.subr.mxu0 0.0
    %2872 = vmatpush1.msra.mxu0 0.0
    %2873 = vmatprep.subr.mxu0 0.0
    %2874 = vmatpush1.msra.mxu0 0.0
    %2875 = vmatprep.subr.mxu0 0.0
    %2876 = vmatpush1.msra.mxu0 0.0
    %2877 = vmatprep.subr.mxu0 0.0
    %2878 = vmatpush1.msra.mxu0 0.0
    %2879 = vmatprep.subr.mxu0 0.0
    %2880 = vmatpush1.msra.mxu0 0.0
    %2881 = vmatprep.subr.mxu0 0.0
    %2882 = vmatpush1.msra.mxu0 0.0
    %2883 = vmatprep.subr.mxu0 0.0
    %2884 = vmatpush1.msra.mxu0 0.0
    %2885 = vmatprep.subr.mxu0 0.0
    %2886 = vmatpush1.msra.mxu0 0.0
    %2887 = vmatprep.subr.mxu0 0.0
    %2888 = vmatpush1.msra.mxu0 0.0
    %2889 = vmatprep.subr.mxu0 0.0
    %2890 = vmatpush1.msra.mxu0 0.0
    %2891 = vmatprep.subr.mxu0 0.0
    %2892 = vmatpush1.msra.mxu0 0.0
    %2893 = vmatprep.subr.mxu0 0.0
    %2894 = vmatpush1.msra.mxu0 0.0
    %2895 = vmatprep.subr.mxu0 0.0
    %2896 = vmatpush1.msra.mxu0 0.0
    %2897 = vmatprep.subr.mxu0 0.0
    %2898 = vmatpush1.msra.mxu0 0.0
    %2899 = vmatprep.subr.mxu0 0.0
    %2900 = vmatpush1.msra.mxu0 0.0
    %2901 = vmatprep.subr.mxu0 0.0
    %2902 = vmatpush1.msra.mxu0 0.0
    %2903 = vmatprep.subr.mxu0 0.0
    %2904 = vmatpush1.msra.mxu0 0.0
    %2905 = vmatprep.mubr.f32.mxu0 0.0
    %2906 = vmatmul.mubr.f32.gmra.mrb[0].mxu0 %v2839
    %v2907 = vpop.f32.mrb[0].mxu0
    %v2908 = vadd.f32 0.0, %v2907
    %v2909 = vpop.f32.mrb[0].mxu0
    %2910 = vdwg.mxu0
    %2912 = vrot.lane.b32.xlu0 %v2908, 24
    %v2913 = vpop.permute.xlu0 %2912
    %2915 = vst.msk [vmem:[#allocation2] sm:$0xff] %vm1064, %v2913
    %2917 = vrot.lane.b32.xlu0 %v2226, 96
    %v2918 = vpop.permute.xlu0 %2917
    %v2919 = vsel %vm374, %v2226, 0
    %v2921 = vsel %vm374, %v2918, 0
    %2923 = vmatprep.subr.mxu0 0.0
    %2924 = vmatpush1.xpose.msra.mxu0 %v2921
    %2925 = vmatprep.subr.mxu0 0.0
    %2926 = vmatpush1.xpose.msra.mxu0 0.0
    %2927 = vmatprep.subr.mxu0 0.0
    %2928 = vmatpush1.xpose.msra.mxu0 0.0
    %2929 = vmatprep.subr.mxu0 0.0
    %2930 = vmatpush1.xpose.msra.mxu0 0.0
    %2931 = vmatprep.subr.mxu0 0.0
    %2932 = vmatpush1.xpose.msra.mxu0 0.0
    %2933 = vmatprep.subr.mxu0 0.0
    %2934 = vmatpush1.xpose.msra.mxu0 0.0
    %2935 = vmatprep.subr.mxu0 0.0
    %2936 = vmatpush1.xpose.msra.mxu0 0.0
    %2937 = vmatprep.subr.mxu0 0.0
    %2938 = vmatpush1.xpose.msra.mxu0 0.0
    %2939 = vmatprep.subr.mxu0 0.0
    %2940 = vmatpush1.xpose.msra.mxu0 0.0
    %2941 = vmatprep.subr.mxu0 0.0
    %2942 = vmatpush1.xpose.msra.mxu0 0.0
    %2943 = vmatprep.subr.mxu0 0.0
    %2944 = vmatpush1.xpose.msra.mxu0 0.0
    %2945 = vmatprep.subr.mxu0 0.0
    %2946 = vmatpush1.xpose.msra.mxu0 0.0
    %2947 = vmatprep.subr.mxu0 0.0
    %2948 = vmatpush1.xpose.msra.mxu0 0.0
    %2949 = vmatprep.subr.mxu0 0.0
    %2950 = vmatpush1.xpose.msra.mxu0 0.0
    %2951 = vmatprep.subr.mxu0 0.0
    %2952 = vmatpush1.xpose.msra.mxu0 0.0
    %2953 = vmatprep.subr.mxu0 0.0
    %2954 = vmatpush1.xpose.msra.mxu0 0.0
    %2955 = vmatprep.subr.mxu0 0.0
    %2956 = vmatpush1.xpose.msra.mxu0 0.0
    %2957 = vmatprep.subr.mxu0 0.0
    %2958 = vmatpush1.xpose.msra.mxu0 0.0
    %2959 = vmatprep.subr.mxu0 0.0
    %2960 = vmatpush1.xpose.msra.mxu0 0.0
    %2961 = vmatprep.subr.mxu0 0.0
    %2962 = vmatpush1.xpose.msra.mxu0 0.0
    %2963 = vmatprep.subr.mxu0 0.0
    %2964 = vmatpush1.xpose.msra.mxu0 0.0
    %2965 = vmatprep.subr.mxu0 0.0
    %2966 = vmatpush1.xpose.msra.mxu0 0.0
    %2967 = vmatprep.subr.mxu0 0.0
    %2968 = vmatpush1.xpose.msra.mxu0 0.0
    %2969 = vmatprep.subr.mxu0 0.0
    %2970 = vmatpush1.xpose.msra.mxu0 0.0
    %2971 = vmatprep.subr.mxu0 0.0
    %2972 = vmatpush1.xpose.msra.mxu0 0.0
    %2973 = vmatprep.subr.mxu0 0.0
    %2974 = vmatpush1.xpose.msra.mxu0 0.0
    %2975 = vmatprep.subr.mxu0 0.0
    %2976 = vmatpush1.xpose.msra.mxu0 0.0
    %2977 = vmatprep.subr.mxu0 0.0
    %2978 = vmatpush1.xpose.msra.mxu0 0.0
    %2979 = vmatprep.subr.mxu0 0.0
    %2980 = vmatpush1.xpose.msra.mxu0 0.0
    %2981 = vmatprep.subr.mxu0 0.0
    %2982 = vmatpush1.xpose.msra.mxu0 0.0
    %2983 = vmatprep.subr.mxu0 0.0
    %2984 = vmatpush1.xpose.msra.mxu0 0.0
    %2985 = vmatprep.subr.mxu0 0.0
    %2986 = vmatpush1.xpose.msra.mxu0 0.0
    %2987 = vmatprep.mubr.f32.mxu0 0.0
    %2988 = vmatmul.mubr.f32.gmra.mrb[0].mxu0 %v2919
    %v2989 = vpop.f32.mrb[0].mxu0
    %v2990 = vadd.f32 0.0, %v2989
    %v2991 = vpop.f32.mrb[0].mxu0
    %2992 = vdwg.mxu0
    %v2993 = vmul.f32 %v2990, 0.35355338
    %v2994 = vadd.f32 %v2993, %v1147
    %v2995 = vsel %vm374, %v2994, -inf
    %2996 = vmax.xlane.f32.xlu0 %v2995
    %v2997 = vpop.xlane.xlu0 %2996
    %v2998 = vsub.f32 %v2994, %v2997
    %v2999 = vmul.f32 %v2998, 1.442695
    %v3000 = vpow.pop %v2999
    %v3001 = vsel %vm374, %v3000, 0.0
    %3002 = vadd.xlane.f32.xlu0 %v3001
    %v3003 = vpop.xlane.xlu0 %3002
    %v3004 = vmax.f32 %v3003, 1e-30
    %v3005 = vrcp.pop %v3004
    %v3006 = vmul.f32 %v3000, %v3005
    %3007 = vrot.lane.b32.xlu0 %v2226, 64
    %v3008 = vpop.permute.xlu0 %3007
    %v3011 = vsel %vm374, %v3006, 0
    %3013 = vmatprep.subr.mxu0 0.0
    %3014 = vmatpush1.msra.mxu0 %v3008
    %3015 = vmatprep.subr.mxu0 0.0
    %3016 = vmatpush1.msra.mxu0 0.0
    %3017 = vmatprep.subr.mxu0 0.0
    %3018 = vmatpush1.msra.mxu0 0.0
    %3019 = vmatprep.subr.mxu0 0.0
    %3020 = vmatpush1.msra.mxu0 0.0
    %3021 = vmatprep.subr.mxu0 0.0
    %3022 = vmatpush1.msra.mxu0 0.0
    %3023 = vmatprep.subr.mxu0 0.0
    %3024 = vmatpush1.msra.mxu0 0.0
    %3025 = vmatprep.subr.mxu0 0.0
    %3026 = vmatpush1.msra.mxu0 0.0
    %3027 = vmatprep.subr.mxu0 0.0
    %3028 = vmatpush1.msra.mxu0 0.0
    %3029 = vmatprep.subr.mxu0 0.0
    %3030 = vmatpush1.msra.mxu0 0.0
    %3031 = vmatprep.subr.mxu0 0.0
    %3032 = vmatpush1.msra.mxu0 0.0
    %3033 = vmatprep.subr.mxu0 0.0
    %3034 = vmatpush1.msra.mxu0 0.0
    %3035 = vmatprep.subr.mxu0 0.0
    %3036 = vmatpush1.msra.mxu0 0.0
    %3037 = vmatprep.subr.mxu0 0.0
    %3038 = vmatpush1.msra.mxu0 0.0
    %3039 = vmatprep.subr.mxu0 0.0
    %3040 = vmatpush1.msra.mxu0 0.0
    %3041 = vmatprep.subr.mxu0 0.0
    %3042 = vmatpush1.msra.mxu0 0.0
    %3043 = vmatprep.subr.mxu0 0.0
    %3044 = vmatpush1.msra.mxu0 0.0
    %3045 = vmatprep.subr.mxu0 0.0
    %3046 = vmatpush1.msra.mxu0 0.0
    %3047 = vmatprep.subr.mxu0 0.0
    %3048 = vmatpush1.msra.mxu0 0.0
    %3049 = vmatprep.subr.mxu0 0.0
    %3050 = vmatpush1.msra.mxu0 0.0
    %3051 = vmatprep.subr.mxu0 0.0
    %3052 = vmatpush1.msra.mxu0 0.0
    %3053 = vmatprep.subr.mxu0 0.0
    %3054 = vmatpush1.msra.mxu0 0.0
    %3055 = vmatprep.subr.mxu0 0.0
    %3056 = vmatpush1.msra.mxu0 0.0
    %3057 = vmatprep.subr.mxu0 0.0
    %3058 = vmatpush1.msra.mxu0 0.0
    %3059 = vmatprep.subr.mxu0 0.0
    %3060 = vmatpush1.msra.mxu0 0.0
    %3061 = vmatprep.subr.mxu0 0.0
    %3062 = vmatpush1.msra.mxu0 0.0
    %3063 = vmatprep.subr.mxu0 0.0
    %3064 = vmatpush1.msra.mxu0 0.0
    %3065 = vmatprep.subr.mxu0 0.0
    %3066 = vmatpush1.msra.mxu0 0.0
    %3067 = vmatprep.subr.mxu0 0.0
    %3068 = vmatpush1.msra.mxu0 0.0
    %3069 = vmatprep.subr.mxu0 0.0
    %3070 = vmatpush1.msra.mxu0 0.0
    %3071 = vmatprep.subr.mxu0 0.0
    %3072 = vmatpush1.msra.mxu0 0.0
    %3073 = vmatprep.subr.mxu0 0.0
    %3074 = vmatpush1.msra.mxu0 0.0
    %3075 = vmatprep.subr.mxu0 0.0
    %3076 = vmatpush1.msra.mxu0 0.0
    %3077 = vmatprep.mubr.f32.mxu0 0.0
    %3078 = vmatmul.mubr.f32.gmra.mrb[0].mxu0 %v3011
    %v3079 = vpop.f32.mrb[0].mxu0
    %v3080 = vadd.f32 0.0, %v3079
    %v3081 = vpop.f32.mrb[0].mxu0
    %3082 = vdwg.mxu0
    %3083 = vst.msk [vmem:[#allocation2 + $0x8] sm:$0xff] %vm374, %v3080
    %3084 = vrot.lane.b32.xlu0 %v2226, 120
    %v3085 = vpop.permute.xlu0 %3084
    %3086 = vrot.lane.b32.xlu0 %v2226, 88
    %v3087 = vpop.permute.xlu0 %3086
    %v3088 = vsel %vm374, %v3085, 0
    %v3090 = vsel %vm374, %v3087, 0
    %3092 = vmatprep.subr.mxu0 0.0
    %3093 = vmatpush1.xpose.msra.mxu0 %v3090
    %3094 = vmatprep.subr.mxu0 0.0
    %3095 = vmatpush1.xpose.msra.mxu0 0.0
    %3096 = vmatprep.subr.mxu0 0.0
    %3097 = vmatpush1.xpose.msra.mxu0 0.0
    %3098 = vmatprep.subr.mxu0 0.0
    %3099 = vmatpush1.xpose.msra.mxu0 0.0
    %3100 = vmatprep.subr.mxu0 0.0
    %3101 = vmatpush1.xpose.msra.mxu0 0.0
    %3102 = vmatprep.subr.mxu0 0.0
    %3103 = vmatpush1.xpose.msra.mxu0 0.0
    %3104 = vmatprep.subr.mxu0 0.0
    %3105 = vmatpush1.xpose.msra.mxu0 0.0
    %3106 = vmatprep.subr.mxu0 0.0
    %3107 = vmatpush1.xpose.msra.mxu0 0.0
    %3108 = vmatprep.subr.mxu0 0.0
    %3109 = vmatpush1.xpose.msra.mxu0 0.0
    %3110 = vmatprep.subr.mxu0 0.0
    %3111 = vmatpush1.xpose.msra.mxu0 0.0
    %3112 = vmatprep.subr.mxu0 0.0
    %3113 = vmatpush1.xpose.msra.mxu0 0.0
    %3114 = vmatprep.subr.mxu0 0.0
    %3115 = vmatpush1.xpose.msra.mxu0 0.0
    %3116 = vmatprep.subr.mxu0 0.0
    %3117 = vmatpush1.xpose.msra.mxu0 0.0
    %3118 = vmatprep.subr.mxu0 0.0
    %3119 = vmatpush1.xpose.msra.mxu0 0.0
    %3120 = vmatprep.subr.mxu0 0.0
    %3121 = vmatpush1.xpose.msra.mxu0 0.0
    %3122 = vmatprep.subr.mxu0 0.0
    %3123 = vmatpush1.xpose.msra.mxu0 0.0
    %3124 = vmatprep.subr.mxu0 0.0
    %3125 = vmatpush1.xpose.msra.mxu0 0.0
    %3126 = vmatprep.subr.mxu0 0.0
    %3127 = vmatpush1.xpose.msra.mxu0 0.0
    %3128 = vmatprep.subr.mxu0 0.0
    %3129 = vmatpush1.xpose.msra.mxu0 0.0
    %3130 = vmatprep.subr.mxu0 0.0
    %3131 = vmatpush1.xpose.msra.mxu0 0.0
    %3132 = vmatprep.subr.mxu0 0.0
    %3133 = vmatpush1.xpose.msra.mxu0 0.0
    %3134 = vmatprep.subr.mxu0 0.0
    %3135 = vmatpush1.xpose.msra.mxu0 0.0
    %3136 = vmatprep.subr.mxu0 0.0
    %3137 = vmatpush1.xpose.msra.mxu0 0.0
    %3138 = vmatprep.subr.mxu0 0.0
    %3139 = vmatpush1.xpose.msra.mxu0 0.0
    %3140 = vmatprep.subr.mxu0 0.0
    %3141 = vmatpush1.xpose.msra.mxu0 0.0
    %3142 = vmatprep.subr.mxu0 0.0
    %3143 = vmatpush1.xpose.msra.mxu0 0.0
    %3144 = vmatprep.subr.mxu0 0.0
    %3145 = vmatpush1.xpose.msra.mxu0 0.0
    %3146 = vmatprep.subr.mxu0 0.0
    %3147 = vmatpush1.xpose.msra.mxu0 0.0
    %3148 = vmatprep.subr.mxu0 0.0
    %3149 = vmatpush1.xpose.msra.mxu0 0.0
    %3150 = vmatprep.subr.mxu0 0.0
    %3151 = vmatpush1.xpose.msra.mxu0 0.0
    %3152 = vmatprep.subr.mxu0 0.0
    %3153 = vmatpush1.xpose.msra.mxu0 0.0
    %3154 = vmatprep.subr.mxu0 0.0
    %3155 = vmatpush1.xpose.msra.mxu0 0.0
    %3156 = vmatprep.mubr.f32.mxu0 0.0
    %3157 = vmatmul.mubr.f32.gmra.mrb[0].mxu0 %v3088
    %v3158 = vpop.f32.mrb[0].mxu0
    %v3159 = vadd.f32 0.0, %v3158
    %v3160 = vpop.f32.mrb[0].mxu0
    %3161 = vdwg.mxu0
    %v3162 = vmul.f32 %v3159, 0.35355338
    %v3163 = vadd.f32 %v3162, %v1147
    %v3164 = vsel %vm374, %v3163, -inf
    %3165 = vmax.xlane.f32.xlu0 %v3164
    %v3166 = vpop.xlane.xlu0 %3165
    %v3167 = vsub.f32 %v3163, %v3166
    %v3168 = vmul.f32 %v3167, 1.442695
    %v3169 = vpow.pop %v3168
    %v3170 = vsel %vm374, %v3169, 0.0
    %3171 = vadd.xlane.f32.xlu0 %v3170
    %v3172 = vpop.xlane.xlu0 %3171
    %v3173 = vmax.f32 %v3172, 1e-30
    %v3174 = vrcp.pop %v3173
    %v3175 = vmul.f32 %v3169, %v3174
    %3176 = vrot.lane.b32.xlu0 %v2226, 56
    %v3177 = vpop.permute.xlu0 %3176
    %v3180 = vsel %vm374, %v3175, 0
    %3182 = vmatprep.subr.mxu0 0.0
    %3183 = vmatpush1.msra.mxu0 %v3177
    %3184 = vmatprep.subr.mxu0 0.0
    %3185 = vmatpush1.msra.mxu0 0.0
    %3186 = vmatprep.subr.mxu0 0.0
    %3187 = vmatpush1.msra.mxu0 0.0
    %3188 = vmatprep.subr.mxu0 0.0
    %3189 = vmatpush1.msra.mxu0 0.0
    %3190 = vmatprep.subr.mxu0 0.0
    %3191 = vmatpush1.msra.mxu0 0.0
    %3192 = vmatprep.subr.mxu0 0.0
    %3193 = vmatpush1.msra.mxu0 0.0
    %3194 = vmatprep.subr.mxu0 0.0
    %3195 = vmatpush1.msra.mxu0 0.0
    %3196 = vmatprep.subr.mxu0 0.0
    %3197 = vmatpush1.msra.mxu0 0.0
    %3198 = vmatprep.subr.mxu0 0.0
    %3199 = vmatpush1.msra.mxu0 0.0
    %3200 = vmatprep.subr.mxu0 0.0
    %3201 = vmatpush1.msra.mxu0 0.0
    %3202 = vmatprep.subr.mxu0 0.0
    %3203 = vmatpush1.msra.mxu0 0.0
    %3204 = vmatprep.subr.mxu0 0.0
    %3205 = vmatpush1.msra.mxu0 0.0
    %3206 = vmatprep.subr.mxu0 0.0
    %3207 = vmatpush1.msra.mxu0 0.0
    %3208 = vmatprep.subr.mxu0 0.0
    %3209 = vmatpush1.msra.mxu0 0.0
    %3210 = vmatprep.subr.mxu0 0.0
    %3211 = vmatpush1.msra.mxu0 0.0
    %3212 = vmatprep.subr.mxu0 0.0
    %3213 = vmatpush1.msra.mxu0 0.0
    %3214 = vmatprep.subr.mxu0 0.0
    %3215 = vmatpush1.msra.mxu0 0.0
    %3216 = vmatprep.subr.mxu0 0.0
    %3217 = vmatpush1.msra.mxu0 0.0
    %3218 = vmatprep.subr.mxu0 0.0
    %3219 = vmatpush1.msra.mxu0 0.0
    %3220 = vmatprep.subr.mxu0 0.0
    %3221 = vmatpush1.msra.mxu0 0.0
    %3222 = vmatprep.subr.mxu0 0.0
    %3223 = vmatpush1.msra.mxu0 0.0
    %3224 = vmatprep.subr.mxu0 0.0
    %3225 = vmatpush1.msra.mxu0 0.0
    %3226 = vmatprep.subr.mxu0 0.0
    %3227 = vmatpush1.msra.mxu0 0.0
    %3228 = vmatprep.subr.mxu0 0.0
    %3229 = vmatpush1.msra.mxu0 0.0
    %3230 = vmatprep.subr.mxu0 0.0
    %3231 = vmatpush1.msra.mxu0 0.0
    %3232 = vmatprep.subr.mxu0 0.0
    %3233 = vmatpush1.msra.mxu0 0.0
    %3234 = vmatprep.subr.mxu0 0.0
    %3235 = vmatpush1.msra.mxu0 0.0
    %3236 = vmatprep.subr.mxu0 0.0
    %3237 = vmatpush1.msra.mxu0 0.0
    %3238 = vmatprep.subr.mxu0 0.0
    %3239 = vmatpush1.msra.mxu0 0.0
    %3240 = vmatprep.subr.mxu0 0.0
    %3241 = vmatpush1.msra.mxu0 0.0
    %3242 = vmatprep.subr.mxu0 0.0
    %3243 = vmatpush1.msra.mxu0 0.0
    %3244 = vmatprep.subr.mxu0 0.0
    %3245 = vmatpush1.msra.mxu0 0.0
    %3246 = vmatprep.mubr.f32.mxu0 0.0
    %3247 = vmatmul.mubr.f32.gmra.mrb[0].mxu0 %v3180
    %v3248 = vpop.f32.mrb[0].mxu0
    %v3249 = vadd.f32 0.0, %v3248
    %v3250 = vpop.f32.mrb[0].mxu0
    %3251 = vdwg.mxu0
    %3253 = vrot.lane.b32.xlu0 %v3249, 8
    %v3254 = vpop.permute.xlu0 %3253
    %3256 = vst.msk [vmem:[#allocation2 + $0x8] sm:$0xff] %vm716, %v3254
    %3257 = vrot.lane.b32.xlu0 %v2226, 112
    %v3258 = vpop.permute.xlu0 %3257
    %3259 = vrot.lane.b32.xlu0 %v2226, 80
    %v3260 = vpop.permute.xlu0 %3259
    %v3261 = vsel %vm374, %v3258, 0
    %v3263 = vsel %vm374, %v3260, 0
    %3265 = vmatprep.subr.mxu0 0.0
    %3266 = vmatpush1.xpose.msra.mxu0 %v3263
    %3267 = vmatprep.subr.mxu0 0.0
    %3268 = vmatpush1.xpose.msra.mxu0 0.0
    %3269 = vmatprep.subr.mxu0 0.0
    %3270 = vmatpush1.xpose.msra.mxu0 0.0
    %3271 = vmatprep.subr.mxu0 0.0
    %3272 = vmatpush1.xpose.msra.mxu0 0.0
    %3273 = vmatprep.subr.mxu0 0.0
    %3274 = vmatpush1.xpose.msra.mxu0 0.0
    %3275 = vmatprep.subr.mxu0 0.0
    %3276 = vmatpush1.xpose.msra.mxu0 0.0
    %3277 = vmatprep.subr.mxu0 0.0
    %3278 = vmatpush1.xpose.msra.mxu0 0.0
    %3279 = vmatprep.subr.mxu0 0.0
    %3280 = vmatpush1.xpose.msra.mxu0 0.0
    %3281 = vmatprep.subr.mxu0 0.0
    %3282 = vmatpush1.xpose.msra.mxu0 0.0
    %3283 = vmatprep.subr.mxu0 0.0
    %3284 = vmatpush1.xpose.msra.mxu0 0.0
    %3285 = vmatprep.subr.mxu0 0.0
    %3286 = vmatpush1.xpose.msra.mxu0 0.0
    %3287 = vmatprep.subr.mxu0 0.0
    %3288 = vmatpush1.xpose.msra.mxu0 0.0
    %3289 = vmatprep.subr.mxu0 0.0
    %3290 = vmatpush1.xpose.msra.mxu0 0.0
    %3291 = vmatprep.subr.mxu0 0.0
    %3292 = vmatpush1.xpose.msra.mxu0 0.0
    %3293 = vmatprep.subr.mxu0 0.0
    %3294 = vmatpush1.xpose.msra.mxu0 0.0
    %3295 = vmatprep.subr.mxu0 0.0
    %3296 = vmatpush1.xpose.msra.mxu0 0.0
    %3297 = vmatprep.subr.mxu0 0.0
    %3298 = vmatpush1.xpose.msra.mxu0 0.0
    %3299 = vmatprep.subr.mxu0 0.0
    %3300 = vmatpush1.xpose.msra.mxu0 0.0
    %3301 = vmatprep.subr.mxu0 0.0
    %3302 = vmatpush1.xpose.msra.mxu0 0.0
    %3303 = vmatprep.subr.mxu0 0.0
    %3304 = vmatpush1.xpose.msra.mxu0 0.0
    %3305 = vmatprep.subr.mxu0 0.0
    %3306 = vmatpush1.xpose.msra.mxu0 0.0
    %3307 = vmatprep.subr.mxu0 0.0
    %3308 = vmatpush1.xpose.msra.mxu0 0.0
    %3309 = vmatprep.subr.mxu0 0.0
    %3310 = vmatpush1.xpose.msra.mxu0 0.0
    %3311 = vmatprep.subr.mxu0 0.0
    %3312 = vmatpush1.xpose.msra.mxu0 0.0
    %3313 = vmatprep.subr.mxu0 0.0
    %3314 = vmatpush1.xpose.msra.mxu0 0.0
    %3315 = vmatprep.subr.mxu0 0.0
    %3316 = vmatpush1.xpose.msra.mxu0 0.0
    %3317 = vmatprep.subr.mxu0 0.0
    %3318 = vmatpush1.xpose.msra.mxu0 0.0
    %3319 = vmatprep.subr.mxu0 0.0
    %3320 = vmatpush1.xpose.msra.mxu0 0.0
    %3321 = vmatprep.subr.mxu0 0.0
    %3322 = vmatpush1.xpose.msra.mxu0 0.0
    %3323 = vmatprep.subr.mxu0 0.0
    %3324 = vmatpush1.xpose.msra.mxu0 0.0
    %3325 = vmatprep.subr.mxu0 0.0
    %3326 = vmatpush1.xpose.msra.mxu0 0.0
    %3327 = vmatprep.subr.mxu0 0.0
    %3328 = vmatpush1.xpose.msra.mxu0 0.0
    %3329 = vmatprep.mubr.f32.mxu0 0.0
    %3330 = vmatmul.mubr.f32.gmra.mrb[0].mxu0 %v3261
    %v3331 = vpop.f32.mrb[0].mxu0
    %v3332 = vadd.f32 0.0, %v3331
    %v3333 = vpop.f32.mrb[0].mxu0
    %3334 = vdwg.mxu0
    %v3335 = vmul.f32 %v3332, 0.35355338
    %v3336 = vadd.f32 %v3335, %v1147
    %v3337 = vsel %vm374, %v3336, -inf
    %3338 = vmax.xlane.f32.xlu0 %v3337
    %v3339 = vpop.xlane.xlu0 %3338
    %v3340 = vsub.f32 %v3336, %v3339
    %v3341 = vmul.f32 %v3340, 1.442695
    %v3342 = vpow.pop %v3341
    %v3343 = vsel %vm374, %v3342, 0.0
    %3344 = vadd.xlane.f32.xlu0 %v3343
    %v3345 = vpop.xlane.xlu0 %3344
    %v3346 = vmax.f32 %v3345, 1e-30
    %v3347 = vrcp.pop %v3346
    %v3348 = vmul.f32 %v3342, %v3347
    %3349 = vrot.lane.b32.xlu0 %v2226, 48
    %v3350 = vpop.permute.xlu0 %3349
    %v3353 = vsel %vm374, %v3348, 0
    %3355 = vmatprep.subr.mxu0 0.0
    %3356 = vmatpush1.msra.mxu0 %v3350
    %3357 = vmatprep.subr.mxu0 0.0
    %3358 = vmatpush1.msra.mxu0 0.0
    %3359 = vmatprep.subr.mxu0 0.0
    %3360 = vmatpush1.msra.mxu0 0.0
    %3361 = vmatprep.subr.mxu0 0.0
    %3362 = vmatpush1.msra.mxu0 0.0
    %3363 = vmatprep.subr.mxu0 0.0
    %3364 = vmatpush1.msra.mxu0 0.0
    %3365 = vmatprep.subr.mxu0 0.0
    %3366 = vmatpush1.msra.mxu0 0.0
    %3367 = vmatprep.subr.mxu0 0.0
    %3368 = vmatpush1.msra.mxu0 0.0
    %3369 = vmatprep.subr.mxu0 0.0
    %3370 = vmatpush1.msra.mxu0 0.0
    %3371 = vmatprep.subr.mxu0 0.0
    %3372 = vmatpush1.msra.mxu0 0.0
    %3373 = vmatprep.subr.mxu0 0.0
    %3374 = vmatpush1.msra.mxu0 0.0
    %3375 = vmatprep.subr.mxu0 0.0
    %3376 = vmatpush1.msra.mxu0 0.0
    %3377 = vmatprep.subr.mxu0 0.0
    %3378 = vmatpush1.msra.mxu0 0.0
    %3379 = vmatprep.subr.mxu0 0.0
    %3380 = vmatpush1.msra.mxu0 0.0
    %3381 = vmatprep.subr.mxu0 0.0
    %3382 = vmatpush1.msra.mxu0 0.0
    %3383 = vmatprep.subr.mxu0 0.0
    %3384 = vmatpush1.msra.mxu0 0.0
    %3385 = vmatprep.subr.mxu0 0.0
    %3386 = vmatpush1.msra.mxu0 0.0
    %3387 = vmatprep.subr.mxu0 0.0
    %3388 = vmatpush1.msra.mxu0 0.0
    %3389 = vmatprep.subr.mxu0 0.0
    %3390 = vmatpush1.msra.mxu0 0.0
    %3391 = vmatprep.subr.mxu0 0.0
    %3392 = vmatpush1.msra.mxu0 0.0
    %3393 = vmatprep.subr.mxu0 0.0
    %3394 = vmatpush1.msra.mxu0 0.0
    %3395 = vmatprep.subr.mxu0 0.0
    %3396 = vmatpush1.msra.mxu0 0.0
    %3397 = vmatprep.subr.mxu0 0.0
    %3398 = vmatpush1.msra.mxu0 0.0
    %3399 = vmatprep.subr.mxu0 0.0
    %3400 = vmatpush1.msra.mxu0 0.0
    %3401 = vmatprep.subr.mxu0 0.0
    %3402 = vmatpush1.msra.mxu0 0.0
    %3403 = vmatprep.subr.mxu0 0.0
    %3404 = vmatpush1.msra.mxu0 0.0
    %3405 = vmatprep.subr.mxu0 0.0
    %3406 = vmatpush1.msra.mxu0 0.0
    %3407 = vmatprep.subr.mxu0 0.0
    %3408 = vmatpush1.msra.mxu0 0.0
    %3409 = vmatprep.subr.mxu0 0.0
    %3410 = vmatpush1.msra.mxu0 0.0
    %3411 = vmatprep.subr.mxu0 0.0
    %3412 = vmatpush1.msra.mxu0 0.0
    %3413 = vmatprep.subr.mxu0 0.0
    %3414 = vmatpush1.msra.mxu0 0.0
    %3415 = vmatprep.subr.mxu0 0.0
    %3416 = vmatpush1.msra.mxu0 0.0
    %3417 = vmatprep.subr.mxu0 0.0
    %3418 = vmatpush1.msra.mxu0 0.0
    %3419 = vmatprep.mubr.f32.mxu0 0.0
    %3420 = vmatmul.mubr.f32.gmra.mrb[0].mxu0 %v3353
    %v3421 = vpop.f32.mrb[0].mxu0
    %v3422 = vadd.f32 0.0, %v3421
    %v3423 = vpop.f32.mrb[0].mxu0
    %3424 = vdwg.mxu0
    %3426 = vrot.lane.b32.xlu0 %v3422, 16
    %v3427 = vpop.permute.xlu0 %3426
    %3429 = vst.msk [vmem:[#allocation2 + $0x8] sm:$0xff] %vm890, %v3427
    %3430 = vrot.lane.b32.xlu0 %v2226, 104
    %v3431 = vpop.permute.xlu0 %3430
    %3432 = vrot.lane.b32.xlu0 %v2226, 72
    %v3433 = vpop.permute.xlu0 %3432
    %v3434 = vsel %vm374, %v3431, 0
    %v3436 = vsel %vm374, %v3433, 0
    %3438 = vmatprep.subr.mxu0 0.0
    %3439 = vmatpush1.xpose.msra.mxu0 %v3436
    %3440 = vmatprep.subr.mxu0 0.0
    %3441 = vmatpush1.xpose.msra.mxu0 0.0
    %3442 = vmatprep.subr.mxu0 0.0
    %3443 = vmatpush1.xpose.msra.mxu0 0.0
    %3444 = vmatprep.subr.mxu0 0.0
    %3445 = vmatpush1.xpose.msra.mxu0 0.0
    %3446 = vmatprep.subr.mxu0 0.0
    %3447 = vmatpush1.xpose.msra.mxu0 0.0
    %3448 = vmatprep.subr.mxu0 0.0
    %3449 = vmatpush1.xpose.msra.mxu0 0.0
    %3450 = vmatprep.subr.mxu0 0.0
    %3451 = vmatpush1.xpose.msra.mxu0 0.0
    %3452 = vmatprep.subr.mxu0 0.0
    %3453 = vmatpush1.xpose.msra.mxu0 0.0
    %3454 = vmatprep.subr.mxu0 0.0
    %3455 = vmatpush1.xpose.msra.mxu0 0.0
    %3456 = vmatprep.subr.mxu0 0.0
    %3457 = vmatpush1.xpose.msra.mxu0 0.0
    %3458 = vmatprep.subr.mxu0 0.0
    %3459 = vmatpush1.xpose.msra.mxu0 0.0
    %3460 = vmatprep.subr.mxu0 0.0
    %3461 = vmatpush1.xpose.msra.mxu0 0.0
    %3462 = vmatprep.subr.mxu0 0.0
    %3463 = vmatpush1.xpose.msra.mxu0 0.0
    %3464 = vmatprep.subr.mxu0 0.0
    %3465 = vmatpush1.xpose.msra.mxu0 0.0
    %3466 = vmatprep.subr.mxu0 0.0
    %3467 = vmatpush1.xpose.msra.mxu0 0.0
    %3468 = vmatprep.subr.mxu0 0.0
    %3469 = vmatpush1.xpose.msra.mxu0 0.0
    %3470 = vmatprep.subr.mxu0 0.0
    %3471 = vmatpush1.xpose.msra.mxu0 0.0
    %3472 = vmatprep.subr.mxu0 0.0
    %3473 = vmatpush1.xpose.msra.mxu0 0.0
    %3474 = vmatprep.subr.mxu0 0.0
    %3475 = vmatpush1.xpose.msra.mxu0 0.0
    %3476 = vmatprep.subr.mxu0 0.0
    %3477 = vmatpush1.xpose.msra.mxu0 0.0
    %3478 = vmatprep.subr.mxu0 0.0
    %3479 = vmatpush1.xpose.msra.mxu0 0.0
    %3480 = vmatprep.subr.mxu0 0.0
    %3481 = vmatpush1.xpose.msra.mxu0 0.0
    %3482 = vmatprep.subr.mxu0 0.0
    %3483 = vmatpush1.xpose.msra.mxu0 0.0
    %3484 = vmatprep.subr.mxu0 0.0
    %3485 = vmatpush1.xpose.msra.mxu0 0.0
    %3486 = vmatprep.subr.mxu0 0.0
    %3487 = vmatpush1.xpose.msra.mxu0 0.0
    %3488 = vmatprep.subr.mxu0 0.0
    %3489 = vmatpush1.xpose.msra.mxu0 0.0
    %3490 = vmatprep.subr.mxu0 0.0
    %3491 = vmatpush1.xpose.msra.mxu0 0.0
    %3492 = vmatprep.subr.mxu0 0.0
    %3493 = vmatpush1.xpose.msra.mxu0 0.0
    %3494 = vmatprep.subr.mxu0 0.0
    %3495 = vmatpush1.xpose.msra.mxu0 0.0
    %3496 = vmatprep.subr.mxu0 0.0
    %3497 = vmatpush1.xpose.msra.mxu0 0.0
    %3498 = vmatprep.subr.mxu0 0.0
    %3499 = vmatpush1.xpose.msra.mxu0 0.0
    %3500 = vmatprep.subr.mxu0 0.0
    %3501 = vmatpush1.xpose.msra.mxu0 0.0
    %3502 = vmatprep.mubr.f32.mxu0 0.0
    %3503 = vmatmul.mubr.f32.gmra.mrb[0].mxu0 %v3434
    %v3504 = vpop.f32.mrb[0].mxu0
    %v3505 = vadd.f32 0.0, %v3504
    %v3506 = vpop.f32.mrb[0].mxu0
    %3507 = vdwg.mxu0
    %v3508 = vmul.f32 %v3505, 0.35355338
    %v3509 = vadd.f32 %v3508, %v1147
    %v3510 = vsel %vm374, %v3509, -inf
    %3511 = vmax.xlane.f32.xlu0 %v3510
    %v3512 = vpop.xlane.xlu0 %3511
    %v3513 = vsub.f32 %v3509, %v3512
    %v3514 = vmul.f32 %v3513, 1.442695
    %v3515 = vpow.pop %v3514
    %v3516 = vsel %vm374, %v3515, 0.0
    %3517 = vadd.xlane.f32.xlu0 %v3516
    %v3518 = vpop.xlane.xlu0 %3517
    %v3519 = vmax.f32 %v3518, 1e-30
    %v3520 = vrcp.pop %v3519
    %v3521 = vmul.f32 %v3515, %v3520
    %3522 = vrot.lane.b32.xlu0 %v2226, 40
    %v3523 = vpop.permute.xlu0 %3522
    %v3526 = vsel %vm374, %v3521, 0
    %3528 = vmatprep.subr.mxu0 0.0
    %3529 = vmatpush1.msra.mxu0 %v3523
    %3530 = vmatprep.subr.mxu0 0.0
    %3531 = vmatpush1.msra.mxu0 0.0
    %3532 = vmatprep.subr.mxu0 0.0
    %3533 = vmatpush1.msra.mxu0 0.0
    %3534 = vmatprep.subr.mxu0 0.0
    %3535 = vmatpush1.msra.mxu0 0.0
    %3536 = vmatprep.subr.mxu0 0.0
    %3537 = vmatpush1.msra.mxu0 0.0
    %3538 = vmatprep.subr.mxu0 0.0
    %3539 = vmatpush1.msra.mxu0 0.0
    %3540 = vmatprep.subr.mxu0 0.0
    %3541 = vmatpush1.msra.mxu0 0.0
    %3542 = vmatprep.subr.mxu0 0.0
    %3543 = vmatpush1.msra.mxu0 0.0
    %3544 = vmatprep.subr.mxu0 0.0
    %3545 = vmatpush1.msra.mxu0 0.0
    %3546 = vmatprep.subr.mxu0 0.0
    %3547 = vmatpush1.msra.mxu0 0.0
    %3548 = vmatprep.subr.mxu0 0.0
    %3549 = vmatpush1.msra.mxu0 0.0
    %3550 = vmatprep.subr.mxu0 0.0
    %3551 = vmatpush1.msra.mxu0 0.0
    %3552 = vmatprep.subr.mxu0 0.0
    %3553 = vmatpush1.msra.mxu0 0.0
    %3554 = vmatprep.subr.mxu0 0.0
    %3555 = vmatpush1.msra.mxu0 0.0
    %3556 = vmatprep.subr.mxu0 0.0
    %3557 = vmatpush1.msra.mxu0 0.0
    %3558 = vmatprep.subr.mxu0 0.0
    %3559 = vmatpush1.msra.mxu0 0.0
    %3560 = vmatprep.subr.mxu0 0.0
    %3561 = vmatpush1.msra.mxu0 0.0
    %3562 = vmatprep.subr.mxu0 0.0
    %3563 = vmatpush1.msra.mxu0 0.0
    %3564 = vmatprep.subr.mxu0 0.0
    %3565 = vmatpush1.msra.mxu0 0.0
    %3566 = vmatprep.subr.mxu0 0.0
    %3567 = vmatpush1.msra.mxu0 0.0
    %3568 = vmatprep.subr.mxu0 0.0
    %3569 = vmatpush1.msra.mxu0 0.0
    %3570 = vmatprep.subr.mxu0 0.0
    %3571 = vmatpush1.msra.mxu0 0.0
    %3572 = vmatprep.subr.mxu0 0.0
    %3573 = vmatpush1.msra.mxu0 0.0
    %3574 = vmatprep.subr.mxu0 0.0
    %3575 = vmatpush1.msra.mxu0 0.0
    %3576 = vmatprep.subr.mxu0 0.0
    %3577 = vmatpush1.msra.mxu0 0.0
    %3578 = vmatprep.subr.mxu0 0.0
    %3579 = vmatpush1.msra.mxu0 0.0
    %3580 = vmatprep.subr.mxu0 0.0
    %3581 = vmatpush1.msra.mxu0 0.0
    %3582 = vmatprep.subr.mxu0 0.0
    %3583 = vmatpush1.msra.mxu0 0.0
    %3584 = vmatprep.subr.mxu0 0.0
    %3585 = vmatpush1.msra.mxu0 0.0
    %3586 = vmatprep.subr.mxu0 0.0
    %3587 = vmatpush1.msra.mxu0 0.0
    %3588 = vmatprep.subr.mxu0 0.0
    %3589 = vmatpush1.msra.mxu0 0.0
    %3590 = vmatprep.subr.mxu0 0.0
    %3591 = vmatpush1.msra.mxu0 0.0
    %3592 = vmatprep.mubr.f32.mxu0 0.0
    %3593 = vmatmul.mubr.f32.gmra.mrb[0].mxu0 %v3526
    %v3594 = vpop.f32.mrb[0].mxu0
    %v3595 = vadd.f32 0.0, %v3594
    %v3596 = vpop.f32.mrb[0].mxu0
    %3597 = vdwg.mxu0
    %3599 = vrot.lane.b32.xlu0 %v3595, 24
    %v3600 = vpop.permute.xlu0 %3599
    %3602 = vst.msk [vmem:[#allocation2 + $0x8] sm:$0xff] %vm1064, %v3600
    %v3603 = vld [vmem:[#allocation2] sm:$0xff]
    %v3604 = vld [vmem:[#allocation2 + $0x8] sm:$0xff]
    %s3605 = scalar_lea.vmem %s7, 32
    %v3606 = vld [vmem:[%s3605] sm:$0xff]
    %v3607 = vld [vmem:[%s3605 + $0x8] sm:$0xff]
    %v3608 = vld [vmem:[%s3605 + $0x10] sm:$0xff]
    %v3609 = vld [vmem:[%s3605 + $0x18] sm:$0xff]
    %s3610 = scalar_lea.vmem %s8, 1
    %v3611 = vld [vmem:[%s3610] sm:$0x1]
    %v3613 = vlaneseq
    %v3614 = vshrl.u32 %v3613, 7
    %v3615 = vsub.s32 0, %v3614
    %v3616 = vrot.slane %v3611, %v3615
    %v3619 = vsel %vm86, %v3603, 0
    %v3622 = vsel %vm86, %v3604, 0
    %3624 = vmatprep.subr.mxu0 0.0
    %3625 = vmatpush1.msra.mxu0 %v3606
    %3626 = vmatprep.subr.mxu0 0.0
    %3627 = vmatpush1.msra.mxu0 %v3607
    %3628 = vmatprep.subr.mxu0 0.0
    %3629 = vmatpush1.msra.mxu0 %v3608
    %3630 = vmatprep.subr.mxu0 0.0
    %3631 = vmatpush1.msra.mxu0 %v3609
    %3632 = vmatprep.subr.mxu0 0.0
    %3633 = vmatpush1.msra.mxu0 0.0
    %3634 = vmatprep.subr.mxu0 0.0
    %3635 = vmatpush1.msra.mxu0 0.0
    %3636 = vmatprep.subr.mxu0 0.0
    %3637 = vmatpush1.msra.mxu0 0.0
    %3638 = vmatprep.subr.mxu0 0.0
    %3639 = vmatpush1.msra.mxu0 0.0
    %3640 = vmatprep.subr.mxu0 0.0
    %3641 = vmatpush1.msra.mxu0 0.0
    %3642 = vmatprep.subr.mxu0 0.0
    %3643 = vmatpush1.msra.mxu0 0.0
    %3644 = vmatprep.subr.mxu0 0.0
    %3645 = vmatpush1.msra.mxu0 0.0
    %3646 = vmatprep.subr.mxu0 0.0
    %3647 = vmatpush1.msra.mxu0 0.0
    %3648 = vmatprep.subr.mxu0 0.0
    %3649 = vmatpush1.msra.mxu0 0.0
    %3650 = vmatprep.subr.mxu0 0.0
    %3651 = vmatpush1.msra.mxu0 0.0
    %3652 = vmatprep.subr.mxu0 0.0
    %3653 = vmatpush1.msra.mxu0 0.0
    %3654 = vmatprep.subr.mxu0 0.0
    %3655 = vmatpush1.msra.mxu0 0.0
    %3656 = vmatprep.subr.mxu0 0.0
    %3657 = vmatpush1.msra.mxu0 0.0
    %3658 = vmatprep.subr.mxu0 0.0
    %3659 = vmatpush1.msra.mxu0 0.0
    %3660 = vmatprep.subr.mxu0 0.0
    %3661 = vmatpush1.msra.mxu0 0.0
    %3662 = vmatprep.subr.mxu0 0.0
    %3663 = vmatpush1.msra.mxu0 0.0
    %3664 = vmatprep.subr.mxu0 0.0
    %3665 = vmatpush1.msra.mxu0 0.0
    %3666 = vmatprep.subr.mxu0 0.0
    %3667 = vmatpush1.msra.mxu0 0.0
    %3668 = vmatprep.subr.mxu0 0.0
    %3669 = vmatpush1.msra.mxu0 0.0
    %3670 = vmatprep.subr.mxu0 0.0
    %3671 = vmatpush1.msra.mxu0 0.0
    %3672 = vmatprep.subr.mxu0 0.0
    %3673 = vmatpush1.msra.mxu0 0.0
    %3674 = vmatprep.subr.mxu0 0.0
    %3675 = vmatpush1.msra.mxu0 0.0
    %3676 = vmatprep.subr.mxu0 0.0
    %3677 = vmatpush1.msra.mxu0 0.0
    %3678 = vmatprep.subr.mxu0 0.0
    %3679 = vmatpush1.msra.mxu0 0.0
    %3680 = vmatprep.subr.mxu0 0.0
    %3681 = vmatpush1.msra.mxu0 0.0
    %3682 = vmatprep.subr.mxu0 0.0
    %3683 = vmatpush1.msra.mxu0 0.0
    %3684 = vmatprep.subr.mxu0 0.0
    %3685 = vmatpush1.msra.mxu0 0.0
    %3686 = vmatprep.subr.mxu0 0.0
    %3687 = vmatpush1.msra.mxu0 0.0
    %3688 = vmatprep.mubr.f32.mxu0 0.0
    %3689 = vmatmul.mubr.f32.gmra.mrb[0].mxu0 %v3619
    %v3690 = vpop.f32.mrb[0].mxu0
    %v3691 = vadd.f32 %v3616, %v3690
    %v3692 = vpop.f32.mrb[0].mxu0
    %3693 = vmatprep.mubr.f32.mxu0 0.0
    %3694 = vmatmul.mubr.f32.gmra.mrb[0].mxu0 %v3622
    %v3695 = vpop.f32.mrb[0].mxu0
    %v3696 = vadd.f32 %v3616, %v3695
    %v3697 = vpop.f32.mrb[0].mxu0
    %3698 = vdwg.mxu0
    %v3699 = vadd.f32 %v2133, %v3691
    %v3700 = vadd.f32 %v2134, %v3696
    %s3701 = scalar_lea.vmem %s9, 1
    %v3702 = vld [vmem:[%s3701] sm:$0x1]
    %s3703 = scalar_lea.vmem %s10, 1
    %v3704 = vld [vmem:[%s3703] sm:$0x1]
    %v3705 = vsel %vm86, %v3699, 0.0
    %3706 = vadd.xlane.f32.xlu0 %v3705
    %v3707 = vpop.xlane.xlu0 %3706
    %v3708 = vsel %vm86, %v3700, 0.0
    %3709 = vadd.xlane.f32.xlu0 %v3708
    %v3710 = vpop.xlane.xlu0 %3709
    %v3711 = vmul.f32 %v3707, %v1861
    %v3712 = vmul.f32 %v3710, %v1861
    %v3713 = vsub.f32 %v3699, %v3711
    %v3714 = vsub.f32 %v3700, %v3712
    %v3715 = vmul.f32 %v3713, %v3713
    %v3716 = vmul.f32 %v3714, %v3714
    %v3717 = vsel %vm86, %v3715, 0.0
    %3718 = vadd.xlane.f32.xlu0 %v3717
    %v3719 = vpop.xlane.xlu0 %3718
    %v3720 = vsel %vm86, %v3716, 0.0
    %3721 = vadd.xlane.f32.xlu0 %v3720
    %v3722 = vpop.xlane.xlu0 %3721
    %v3723 = vmul.f32 %v3719, %v1861
    %v3724 = vmul.f32 %v3722, %v1861
    %v3725 = vadd.f32 %v3723, 1e-05
    %v3726 = vadd.f32 %v3724, 1e-05
    %v3727 = vrsqrt.pop %v3725
    %v3728 = vrsqrt.pop %v3726
    %v3729 = vmul.f32 %v3713, %v3727
    %v3730 = vmul.f32 %v3714, %v3728
    %v3732 = vlaneseq
    %v3733 = vshrl.u32 %v3732, 7
    %v3734 = vsub.s32 0, %v3733
    %v3735 = vrot.slane %v3702, %v3734
    %v3737 = vmul.f32 %v3729, %v3735
    %v3738 = vmul.f32 %v3730, %v3735
    %v3740 = vlaneseq
    %v3741 = vshrl.u32 %v3740, 7
    %v3742 = vsub.s32 0, %v3741
    %v3743 = vrot.slane %v3704, %v3742
    %v3745 = vadd.f32 %v3737, %v3743
    %v3746 = vadd.f32 %v3738, %v3743
    %s3747 = scalar_lea.vmem [#allocation3], 32
    %v3748 = vld [vmem:[%s3747] sm:$0xff]
    %v3749 = vld [vmem:[%s3747 + $0x8] sm:$0xff]
    %v3750 = vld [vmem:[%s3747 + $0x10] sm:$0xff]
    %v3751 = vld [vmem:[%s3747 + $0x18] sm:$0xff]
    %s3752 = scalar_lea.vmem %s12, 1
    %v3753 = vld [vmem:[%s3752] sm:$0x1]
    %v3755 = vlaneseq
    %v3756 = vshrl.u32 %v3755, 7
    %v3757 = vsub.s32 0, %v3756
    %v3758 = vrot.slane %v3753, %v3757
    %v3761 = vsel %vm86, %v3745, 0
    %v3764 = vsel %vm86, %v3746, 0
    %3766 = vmatprep.subr.mxu0 0.0
    %3767 = vmatpush1.msra.mxu0 %v3748
    %3768 = vmatprep.subr.mxu0 0.0
    %3769 = vmatpush1.msra.mxu0 %v3749
    %3770 = vmatprep.subr.mxu0 0.0
    %3771 = vmatpush1.msra.mxu0 %v3750
    %3772 = vmatprep.subr.mxu0 0.0
    %3773 = vmatpush1.msra.mxu0 %v3751
    %3774 = vmatprep.subr.mxu0 0.0
    %3775 = vmatpush1.msra.mxu0 0.0
    %3776 = vmatprep.subr.mxu0 0.0
    %3777 = vmatpush1.msra.mxu0 0.0
    %3778 = vmatprep.subr.mxu0 0.0
    %3779 = vmatpush1.msra.mxu0 0.0
    %3780 = vmatprep.subr.mxu0 0.0
    %3781 = vmatpush1.msra.mxu0 0.0
    %3782 = vmatprep.subr.mxu0 0.0
    %3783 = vmatpush1.msra.mxu0 0.0
    %3784 = vmatprep.subr.mxu0 0.0
    %3785 = vmatpush1.msra.mxu0 0.0
    %3786 = vmatprep.subr.mxu0 0.0
    %3787 = vmatpush1.msra.mxu0 0.0
    %3788 = vmatprep.subr.mxu0 0.0
    %3789 = vmatpush1.msra.mxu0 0.0
    %3790 = vmatprep.subr.mxu0 0.0
    %3791 = vmatpush1.msra.mxu0 0.0
    %3792 = vmatprep.subr.mxu0 0.0
    %3793 = vmatpush1.msra.mxu0 0.0
    %3794 = vmatprep.subr.mxu0 0.0
    %3795 = vmatpush1.msra.mxu0 0.0
    %3796 = vmatprep.subr.mxu0 0.0
    %3797 = vmatpush1.msra.mxu0 0.0
    %3798 = vmatprep.subr.mxu0 0.0
    %3799 = vmatpush1.msra.mxu0 0.0
    %3800 = vmatprep.subr.mxu0 0.0
    %3801 = vmatpush1.msra.mxu0 0.0
    %3802 = vmatprep.subr.mxu0 0.0
    %3803 = vmatpush1.msra.mxu0 0.0
    %3804 = vmatprep.subr.mxu0 0.0
    %3805 = vmatpush1.msra.mxu0 0.0
    %3806 = vmatprep.subr.mxu0 0.0
    %3807 = vmatpush1.msra.mxu0 0.0
    %3808 = vmatprep.subr.mxu0 0.0
    %3809 = vmatpush1.msra.mxu0 0.0
    %3810 = vmatprep.subr.mxu0 0.0
    %3811 = vmatpush1.msra.mxu0 0.0
    %3812 = vmatprep.subr.mxu0 0.0
    %3813 = vmatpush1.msra.mxu0 0.0
    %3814 = vmatprep.subr.mxu0 0.0
    %3815 = vmatpush1.msra.mxu0 0.0
    %3816 = vmatprep.subr.mxu0 0.0
    %3817 = vmatpush1.msra.mxu0 0.0
    %3818 = vmatprep.subr.mxu0 0.0
    %3819 = vmatpush1.msra.mxu0 0.0
    %3820 = vmatprep.subr.mxu0 0.0
    %3821 = vmatpush1.msra.mxu0 0.0
    %3822 = vmatprep.subr.mxu0 0.0
    %3823 = vmatpush1.msra.mxu0 0.0
    %3824 = vmatprep.subr.mxu0 0.0
    %3825 = vmatpush1.msra.mxu0 0.0
    %3826 = vmatprep.subr.mxu0 0.0
    %3827 = vmatpush1.msra.mxu0 0.0
    %3828 = vmatprep.subr.mxu0 0.0
    %3829 = vmatpush1.msra.mxu0 0.0
    %3830 = vmatprep.mubr.f32.mxu0 0.0
    %3831 = vmatmul.mubr.f32.gmra.mrb[0].mxu0 %v3761
    %v3832 = vpop.f32.mrb[0].mxu0
    %v3833 = vadd.f32 %v3758, %v3832
    %v3834 = vpop.f32.mrb[0].mxu0
    %3835 = vmatprep.mubr.f32.mxu0 0.0
    %3836 = vmatmul.mubr.f32.gmra.mrb[0].mxu0 %v3764
    %v3837 = vpop.f32.mrb[0].mxu0
    %v3838 = vadd.f32 %v3758, %v3837
    %v3839 = vpop.f32.mrb[0].mxu0
    %3840 = vdwg.mxu0
    %v3841 = vmax.f32 %v3833, 0.0
    %v3842 = vmax.f32 %v3838, 0.0
    %s3843 = scalar_lea.vmem %s13, 64
    %v3844 = vld [vmem:[%s3843] sm:$0xff]
    %v3845 = vld [vmem:[%s3843 + $0x8] sm:$0xff]
    %v3846 = vld [vmem:[%s3843 + $0x10] sm:$0xff]
    %v3847 = vld [vmem:[%s3843 + $0x18] sm:$0xff]
    %v3848 = vld [vmem:[%s3843 + $0x20] sm:$0xff]
    %v3849 = vld [vmem:[%s3843 + $0x28] sm:$0xff]
    %v3850 = vld [vmem:[%s3843 + $0x30] sm:$0xff]
    %v3851 = vld [vmem:[%s3843 + $0x38] sm:$0xff]
    %s3852 = scalar_lea.vmem %s14, 1
    %v3853 = vld [vmem:[%s3852] sm:$0x1]
    %v3855 = vlaneseq
    %v3856 = vshrl.u32 %v3855, 7
    %v3857 = vsub.s32 0, %v3856
    %v3858 = vrot.slane %v3853, %v3857
    %v3861 = vsel %vm2007, %v3841, 0
    %v3864 = vsel %vm2007, %v3842, 0
    %3866 = vmatprep.subr.mxu0 0.0
    %3867 = vmatpush1.msra.mxu0 %v3844
    %3868 = vmatprep.subr.mxu0 0.0
    %3869 = vmatpush1.msra.mxu0 %v3845
    %3870 = vmatprep.subr.mxu0 0.0
    %3871 = vmatpush1.msra.mxu0 %v3846
    %3872 = vmatprep.subr.mxu0 0.0
    %3873 = vmatpush1.msra.mxu0 %v3847
    %3874 = vmatprep.subr.mxu0 0.0
    %3875 = vmatpush1.msra.mxu0 %v3848
    %3876 = vmatprep.subr.mxu0 0.0
    %3877 = vmatpush1.msra.mxu0 %v3849
    %3878 = vmatprep.subr.mxu0 0.0
    %3879 = vmatpush1.msra.mxu0 %v3850
    %3880 = vmatprep.subr.mxu0 0.0
    %3881 = vmatpush1.msra.mxu0 %v3851
    %3882 = vmatprep.subr.mxu0 0.0
    %3883 = vmatpush1.msra.mxu0 0.0
    %3884 = vmatprep.subr.mxu0 0.0
    %3885 = vmatpush1.msra.mxu0 0.0
    %3886 = vmatprep.subr.mxu0 0.0
    %3887 = vmatpush1.msra.mxu0 0.0
    %3888 = vmatprep.subr.mxu0 0.0
    %3889 = vmatpush1.msra.mxu0 0.0
    %3890 = vmatprep.subr.mxu0 0.0
    %3891 = vmatpush1.msra.mxu0 0.0
    %3892 = vmatprep.subr.mxu0 0.0
    %3893 = vmatpush1.msra.mxu0 0.0
    %3894 = vmatprep.subr.mxu0 0.0
    %3895 = vmatpush1.msra.mxu0 0.0
    %3896 = vmatprep.subr.mxu0 0.0
    %3897 = vmatpush1.msra.mxu0 0.0
    %3898 = vmatprep.subr.mxu0 0.0
    %3899 = vmatpush1.msra.mxu0 0.0
    %3900 = vmatprep.subr.mxu0 0.0
    %3901 = vmatpush1.msra.mxu0 0.0
    %3902 = vmatprep.subr.mxu0 0.0
    %3903 = vmatpush1.msra.mxu0 0.0
    %3904 = vmatprep.subr.mxu0 0.0
    %3905 = vmatpush1.msra.mxu0 0.0
    %3906 = vmatprep.subr.mxu0 0.0
    %3907 = vmatpush1.msra.mxu0 0.0
    %3908 = vmatprep.subr.mxu0 0.0
    %3909 = vmatpush1.msra.mxu0 0.0
    %3910 = vmatprep.subr.mxu0 0.0
    %3911 = vmatpush1.msra.mxu0 0.0
    %3912 = vmatprep.subr.mxu0 0.0
    %3913 = vmatpush1.msra.mxu0 0.0
    %3914 = vmatprep.subr.mxu0 0.0
    %3915 = vmatpush1.msra.mxu0 0.0
    %3916 = vmatprep.subr.mxu0 0.0
    %3917 = vmatpush1.msra.mxu0 0.0
    %3918 = vmatprep.subr.mxu0 0.0
    %3919 = vmatpush1.msra.mxu0 0.0
    %3920 = vmatprep.subr.mxu0 0.0
    %3921 = vmatpush1.msra.mxu0 0.0
    %3922 = vmatprep.subr.mxu0 0.0
    %3923 = vmatpush1.msra.mxu0 0.0
    %3924 = vmatprep.subr.mxu0 0.0
    %3925 = vmatpush1.msra.mxu0 0.0
    %3926 = vmatprep.subr.mxu0 0.0
    %3927 = vmatpush1.msra.mxu0 0.0
    %3928 = vmatprep.subr.mxu0 0.0
    %3929 = vmatpush1.msra.mxu0 0.0
    %3930 = vmatprep.mubr.f32.mxu0 0.0
    %3931 = vmatmul.mubr.f32.gmra.mrb[0].mxu0 %v3861
    %v3932 = vpop.f32.mrb[0].mxu0
    %v3933 = vadd.f32 %v3858, %v3932
    %v3934 = vpop.f32.mrb[0].mxu0
    %3935 = vmatprep.mubr.f32.mxu0 0.0
    %3936 = vmatmul.mubr.f32.gmra.mrb[0].mxu0 %v3864
    %v3937 = vpop.f32.mrb[0].mxu0
    %v3938 = vadd.f32 %v3858, %v3937
    %v3939 = vpop.f32.mrb[0].mxu0
    %3940 = vdwg.mxu0
    %v3941 = vadd.f32 %v3745, %v3933
    %v3942 = vadd.f32 %v3746, %v3938
    %s3943 = scalar_lea.vmem %s15, 1
    %v3944 = vld [vmem:[%s3943] sm:$0x1]
    %s3945 = scalar_lea.vmem %s16, 1
    %v3946 = vld [vmem:[%s3945] sm:$0x1]
    %v3947 = vsel %vm86, %v3941, 0.0
    %3948 = vadd.xlane.f32.xlu0 %v3947
    %v3949 = vpop.xlane.xlu0 %3948
    %v3950 = vsel %vm86, %v3942, 0.0
    %3951 = vadd.xlane.f32.xlu0 %v3950
    %v3952 = vpop.xlane.xlu0 %3951
    %v3953 = vmul.f32 %v3949, %v1861
    %v3954 = vmul.f32 %v3952, %v1861
    %v3955 = vsub.f32 %v3941, %v3953
    %v3956 = vsub.f32 %v3942, %v3954
    %v3957 = vmul.f32 %v3955, %v3955
    %v3958 = vmul.f32 %v3956, %v3956
    %v3959 = vsel %vm86, %v3957, 0.0
    %3960 = vadd.xlane.f32.xlu0 %v3959
    %v3961 = vpop.xlane.xlu0 %3960
    %v3962 = vsel %vm86, %v3958, 0.0
    %3963 = vadd.xlane.f32.xlu0 %v3962
    %v3964 = vpop.xlane.xlu0 %3963
    %v3965 = vmul.f32 %v3961, %v1861
    %v3966 = vmul.f32 %v3964, %v1861
    %v3967 = vadd.f32 %v3965, 1e-05
    %v3968 = vadd.f32 %v3966, 1e-05
    %v3969 = vrsqrt.pop %v3967
    %v3970 = vrsqrt.pop %v3968
    %v3971 = vmul.f32 %v3955, %v3969
    %v3972 = vmul.f32 %v3956, %v3970
    %v3974 = vlaneseq
    %v3975 = vshrl.u32 %v3974, 7
    %v3976 = vsub.s32 0, %v3975
    %v3977 = vrot.slane %v3944, %v3976
    %v3979 = vmul.f32 %v3971, %v3977
    %v3980 = vmul.f32 %v3972, %v3977
    %v3982 = vlaneseq
    %v3983 = vshrl.u32 %v3982, 7
    %v3984 = vsub.s32 0, %v3983
    %v3985 = vrot.slane %v3946, %v3984
    %v3987 = vadd.f32 %v3979, %v3985
    %v3988 = vadd.f32 %v3980, %v3985
    %v3989 = vmul.f32 %v3987, %v269
    %v3990 = vmul.f32 %v3988, %v274
    %3991 = vst.msk [vmem:[%s17] sm:$0xff] %vm86, %v3989
    %3992 = vst.msk [vmem:[%s17 + $0x8] sm:$0xff] %vm86, %v3990
    // Predicated region
    $region74: #{branch_encoder_forward.1} parent=1 // pred_check
      _
    $region75: #{branch_encoder_forward.1} parent=1 // pred_check_branch
      %3994 = sbr.rel (0) target = $region77
    $region76: #{branch_encoder_forward.1} parent=1 // pred_region
      _
    $region77: #{branch_encoder_forward.1} parent=1 // pred_fallthru
      _
    // Predicated region
    $region78: #{branch_encoder_forward.1} parent=1 // pred_check
      _
    $region79: #{branch_encoder_forward.1} parent=1 // pred_check_branch
      %3996 = sbr.rel (0) target = $region81
    $region80: #{branch_encoder_forward.1} parent=1 // pred_region
      _
    $region81: #{branch_encoder_forward.1} parent=1 // pred_fallthru
      _
    %3997 = vsyncpa [#allocation4], 1

</llo_original>
